<compile_context>
chip_gen: v5e
topology: v5e:2x2
jax: 0.10.0
libtpu: 0.0.40
codegen_flags: <defaults>
</compile_context>

<pallas_src>
import functools

import jax
import jax.numpy as jnp
from jax.experimental import pallas as pl
from jax.experimental.pallas import tpu as pltpu

BN_EPS = 1e-5
LEAKY_SLOPE = 0.1


def _round_up(x, m):
    return ((x + m - 1) // m) * m


def _vmem_cap_bytes():
    # Generation-aware cap: 64 MiB/TC on v7x, 128 MiB on v5e/v6e. Leave headroom.
    try:
        cap = pltpu.get_tpu_info().vmem_capacity_bytes
    except Exception:  # query unavailable -> assume the smallest (v7x) VMEM
        cap = 64 << 20
    return (int(cap) * 3) // 4


def _vmem_limit_bytes(x_blk, w_res, y_blk, o_blk, mo_pad, cp):
    acc_bytes = mo_pad * cp * 4                         # in-kernel f32 accumulator
    stats_bytes = 4 * (cp * 4)
    # The two passes are separate pallas_calls -> size them independently, take max.
    pass1 = 2 * x_blk + w_res + 2 * y_blk + 2 * acc_bytes + stats_bytes
    pass2 = 2 * y_blk + 2 * o_blk + stats_bytes
    need = max(pass1, pass2) + (4 << 20)                # headroom for temporaries
    return int(min(max(need, 32 << 20), _vmem_cap_bytes()))


def _conv_stats_kernel(x_ref, w_ref, y_ref, sum_ref, sqs_ref, *,
                       kh, kw, stride, ho, wo):
    """Per-image conv (kh*kw taps built in-kernel) + per-image BN partial sums.

    x_ref:   (stride*stride, Hs, Ws, Cin) bf16  phase-decomposed padded image
    w_ref:   (kh*kw, Cin, Cp) bf16              tap-major weights (VMEM-resident)
    y_ref:   (1, Mo_pad, Cp)  bf16              raw conv rows for this image
    sum_ref: (1, 1, Cp)       f32               per-image channel sum (real rows)
    sqs_ref: (1, 1, Cp)       f32               per-image channel sum of squares
    """
    cin = x_ref.shape[-1]
    cp = w_ref.shape[-1]
    mo = ho * wo

    acc = jnp.zeros((mo, cp), jnp.float32)
    for t in range(kh * kw):                       # static, unrolled tap loop
        i, j = divmod(t, kw)
        # Tap (i, j) lives in phase (i % s, j % s) at a unit-stride window offset
        # (i // s, j // s) -> no strided reads needed for any stride.
        tap = x_ref[(i % stride) * stride + (j % stride),
                    pl.ds(i // stride, ho), pl.ds(j // stride, wo), :]
        acc = acc + jnp.dot(tap.reshape(mo, cin), w_ref[t],
                            preferred_element_type=jnp.float32)

    # Per-image partial statistics from the f32 accumulator (real rows only);
    # tree-reduced outside the kernel so this grid axis stays "parallel".
    sum_ref[...] = jnp.sum(acc, axis=0, keepdims=True).reshape(1, 1, cp)
    sqs_ref[...] = jnp.sum(acc * acc, axis=0, keepdims=True).reshape(1, 1, cp)

    mo_pad = y_ref.shape[1]
    if mo_pad > mo:                                # keep stored block (8,128)-aligned
        acc = jnp.pad(acc, ((0, mo_pad - mo), (0, 0)))
    y_ref[...] = acc.astype(y_ref.dtype).reshape(1, mo_pad, cp)


def _bn_act_kernel(y_ref, a_ref, b_ref, o_ref):
    # BN folded to per-channel scale/shift (f32 math), then LeakyReLU(0.1).
    z = y_ref[...].astype(jnp.float32) * a_ref[...] + b_ref[...]
    o_ref[...] = jnp.where(z > 0, z, LEAKY_SLOPE * z)


def basic_conv(x_nchw, weight_oihw, gamma, beta, stride=1):
    """BasicConv forward. x_nchw: (N, Cin, H, W) f32 -> (N, Cout, Ho, Wo) f32."""
    N, Cin, H, W = x_nchw.shape
    Cout, _, kh, kw = weight_oihw.shape
    pad = kh // 2
    s = int(stride)

    Ho = (H + 2 * pad - kh) // s + 1
    Wo = (W + 2 * pad - kw) // s + 1
    Hp, Wp = H + 2 * pad, W + 2 * pad
    Hs, Ws = -(-Hp // s), -(-Wp // s)              # per-phase extents (ceil)
    Mo = Ho * Wo
    Mo_pad = _round_up(Mo, 8)
    Cp = _round_up(Cout, 128)
    n_taps = kh * kw

    # ---- wrapper glue: one relayout pass of the input (no im2col blow-up) ----
    #   xph[n*s*s + pi*s + pj, hs, ws, c] == x_padded[n, hs*s + pi, ws*s + pj, c]
    # TODO(synk): accept/produce bf16 NHWC directly when chaining BasicConvs to
    #             drop the NCHW<->NHWC transposes entirely.
    x_nhwc = jnp.transpose(x_nchw, (0, 2, 3, 1))
    xp = jnp.pad(x_nhwc, ((0, 0),
                          (pad, pad + Hs * s - Hp),
                          (pad, pad + Ws * s - Wp),
                          (0, 0)))
    xph = (jnp.transpose(xp.reshape(N, Hs, s, Ws, s, Cin), (0, 2, 4, 1, 3, 5))
           .reshape(N * s * s, Hs, Ws, Cin).astype(jnp.bfloat16))

    # Tap-major weights: (kh*kw, Cin, Cp), zero-padded output channels, bf16 MXU.
    w_taps = jnp.transpose(weight_oihw, (2, 3, 1, 0)).reshape(n_taps, Cin, Cout)
    w_taps = jnp.pad(w_taps.astype(jnp.float32),
                     ((0, 0), (0, 0), (0, Cp - Cout))).astype(jnp.bfloat16)

    vmem_limit = _vmem_limit_bytes(
        x_blk=s * s * Hs * Ws * Cin * 2,
        w_res=n_taps * Cin * Cp * 2,
        y_blk=Mo_pad * Cp * 2,
        o_blk=Mo_pad * Cp * 4,
        mo_pad=Mo_pad, cp=Cp)

    kern = functools.partial(_conv_stats_kernel,
                             kh=kh, kw=kw, stride=s, ho=Ho, wo=Wo)

    # ---- pass 1: per-image conv (taps in-kernel) + per-image BN partial sums ----
    conv_b16, csum_p, csqs_p = pl.pallas_call(
        kern,
        out_shape=(
            jax.ShapeDtypeStruct((N, Mo_pad, Cp), jnp.bfloat16),   # bf16 intermediate
            jax.ShapeDtypeStruct((N, 1, Cp), jnp.float32),
            jax.ShapeDtypeStruct((N, 1, Cp), jnp.float32),
        ),
        grid=(N,),
        in_specs=[
            pl.BlockSpec((s * s, Hs, Ws, Cin), lambda n: (n, 0, 0, 0)),
            pl.BlockSpec((n_taps, Cin, Cp), lambda n: (0, 0, 0)),  # resident weights
        ],
        out_specs=(
            pl.BlockSpec((1, Mo_pad, Cp), lambda n: (n, 0, 0)),
            pl.BlockSpec((1, 1, Cp), lambda n: (n, 0, 0)),
            pl.BlockSpec((1, 1, Cp), lambda n: (n, 0, 0)),
        ),
        compiler_params=pltpu.CompilerParams(
            dimension_semantics=("parallel",),       # no cross-step accumulator
            vmem_limit_bytes=vmem_limit,
        ),
    )(xph, w_taps)

    # ---- fold training-mode BN (biased batch stats over the N*Ho*Wo real rows)
    #      + affine into per-channel scale/shift; tiny f32 math outside kernels ----
    m_count = jnp.float32(N * Mo)
    csum = jnp.sum(csum_p, axis=0)                   # (1, Cp), tree-reduced
    csqs = jnp.sum(csqs_p, axis=0)
    mean = csum / m_count
    var = jnp.maximum(csqs / m_count - mean * mean, 0.0)
    inv = jax.lax.rsqrt(var + BN_EPS)
    gamma_p = jnp.pad(gamma.astype(jnp.float32), (0, Cp - Cout)).reshape(1, Cp)
    beta_p = jnp.pad(beta.astype(jnp.float32), (0, Cp - Cout)).reshape(1, Cp)
    a = (gamma_p * inv).reshape(1, 1, Cp)
    b = (beta_p - mean * gamma_p * inv).reshape(1, 1, Cp)

    # ---- pass 2: elementwise BN apply + LeakyReLU over the bf16 intermediate ----
    out3d = pl.pallas_call(
        _bn_act_kernel,
        out_shape=jax.ShapeDtypeStruct((N, Mo_pad, Cp), jnp.float32),
        grid=(N,),
        in_specs=[
            pl.BlockSpec((1, Mo_pad, Cp), lambda n: (n, 0, 0)),
            pl.BlockSpec((1, 1, Cp), lambda n: (0, 0, 0)),   # scale, resident
            pl.BlockSpec((1, 1, Cp), lambda n: (0, 0, 0)),   # shift, resident
        ],
        out_specs=pl.BlockSpec((1, Mo_pad, Cp), lambda n: (n, 0, 0)),
        compiler_params=pltpu.CompilerParams(
            dimension_semantics=("parallel",),
            vmem_limit_bytes=vmem_limit,
        ),
    )(conv_b16, a, b)

    out = out3d[:, :Mo, :Cout].reshape(N, Ho, Wo, Cout)
    return jnp.transpose(out, (0, 3, 1, 2))          # back to NCHW (module interface)


def _reference(x_nchw, weight_oihw, gamma, beta, stride=1):
    """Pure-JAX f32 reference for correctness checking."""
    kh = weight_oihw.shape[2]
    pad = kh // 2
    y = jax.lax.conv_general_dilated(
        x_nchw, weight_oihw, window_strides=(stride, stride),
        padding=((pad, pad), (pad, pad)),
        dimension_numbers=("NCHW", "OIHW", "NCHW"))
    mean = jnp.mean(y, axis=(0, 2, 3), keepdims=True)
    var = jnp.var(y, axis=(0, 2, 3), keepdims=True)  # biased, as in BN training
    y = (y - mean) * jax.lax.rsqrt(var + BN_EPS)
    y = y * gamma.reshape(1, -1, 1, 1) + beta.reshape(1, -1, 1, 1)
    return jnp.where(y > 0, y, LEAKY_SLOPE * y)


if __name__ == "__main__":
    key = jax.random.PRNGKey(0)
    k_x, k_w, k_g, k_b, k_w2, k_g2, k_b2 = jax.random.split(key, 7)

    N, Cin, H, W = 2, 4, 16, 16
    Cout, ksize = 8, 3

    x = jax.random.normal(k_x, (N, Cin, H, W), dtype=jnp.float32)
    weight = 0.1 * jax.random.normal(k_w, (Cout, Cin, ksize, ksize), dtype=jnp.float32)
    gamma = 1.0 + 0.1 * jax.random.normal(k_g, (Cout,), dtype=jnp.float32)
    beta = 0.1 * jax.random.normal(k_b, (Cout,), dtype=jnp.float32)

    # bf16 MXU operands + bf16 inter-pass intermediate -> validate at 2e-2.
    TOL = dict(rtol=2e-2, atol=2e-2)

    # 1) stride-1 3x3 conv
    out = jax.block_until_ready(basic_conv(x, weight, gamma, beta, stride=1))
    ref = jax.block_until_ready(_reference(x, weight, gamma, beta, stride=1))
    assert out.shape == (N, Cout, H, W), out.shape
    assert jnp.allclose(out, ref, **TOL), float(jnp.max(jnp.abs(out - ref)))

    # 2) stride-2 downsampling conv (as used in yolo4_tiny), different Cout.
    Cout2, stride2 = 16, 2
    weight2 = 0.1 * jax.random.normal(k_w2, (Cout2, Cin, ksize, ksize), dtype=jnp.float32)
    gamma2 = 1.0 + 0.1 * jax.random.normal(k_g2, (Cout2,), dtype=jnp.float32)
    beta2 = 0.1 * jax.random.normal(k_b2, (Cout2,), dtype=jnp.float32)
    out2 = jax.block_until_ready(basic_conv(x, weight2, gamma2, beta2, stride=stride2))
    ref2 = jax.block_until_ready(_reference(x, weight2, gamma2, beta2, stride=stride2))
    assert out2.shape == (N, Cout2, H // 2, W // 2), out2.shape
    assert jnp.allclose(out2, ref2, **TOL), float(jnp.max(jnp.abs(out2 - ref2)))

    print("KERNEL_OK")
</pallas_src>

<mosaic_0001>
module attributes {stable_mosaic.version = 11 : i64} {
  func.func @_conv_stats_kernel(%arg0: i32, %arg1: memref<1x18x18x4xbf16, #tpu.memory_space<vmem>>, %arg2: memref<9x4x128xbf16, #tpu.memory_space<vmem>>, %arg3: memref<1x256x128xbf16, #tpu.memory_space<vmem>>, %arg4: memref<1x1x128xf32, #tpu.memory_space<vmem>>, %arg5: memref<1x1x128xf32, #tpu.memory_space<vmem>>) attributes {dimension_semantics = [#tpu.dimension_semantics<parallel>], iteration_bounds = array<i64: 2>, scalar_prefetch = 0 : i64, scratch_operands = 0 : i64, tpu.core_type = #tpu.core_type<tc>, window_params = [{transform_indices = @transform_0, window_bounds = array<i64: 1, 18, 18, 4>}, {pipeline_mode = #tpu.pipeline_mode<synchronous>, transform_indices = @transform_1, window_bounds = array<i64: 9, 4, 128>}, {transform_indices = @transform_2, window_bounds = array<i64: 1, 256, 128>}, {transform_indices = @transform_3, window_bounds = array<i64: 1, 1, 128>}, {transform_indices = @transform_4, window_bounds = array<i64: 1, 1, 128>}]} {
    %cst = arith.constant 0.000000e+00 : f32
    %0 = vector.broadcast %cst : f32 to vector<256x128xf32>
    %c0 = arith.constant 0 : index
    %c0_0 = arith.constant 0 : index
    %c0_1 = arith.constant 0 : index
    %c0_2 = arith.constant 0 : index
    %1 = vector.load %arg1[%c0, %c0_0, %c0_1, %c0_2] : memref<1x18x18x4xbf16, #tpu.memory_space<vmem>>, vector<1x16x16x4xbf16>
    %2 = vector.shape_cast %1 : vector<1x16x16x4xbf16> to vector<16x16x4xbf16>
    %3 = vector.shape_cast %2 : vector<16x16x4xbf16> to vector<256x4xbf16>
    %c0_3 = arith.constant 0 : index
    %c0_4 = arith.constant 0 : index
    %c0_5 = arith.constant 0 : index
    %4 = vector.load %arg2[%c0_3, %c0_4, %c0_5] : memref<9x4x128xbf16, #tpu.memory_space<vmem>>, vector<1x4x128xbf16>
    %5 = vector.shape_cast %4 : vector<1x4x128xbf16> to vector<4x128xbf16>
    %cst_6 = arith.constant dense<0.000000e+00> : vector<256x128xf32>
    %6 = tpu.matmul %3, %5, %cst_6 {dimension_numbers = #tpu.dot_dimension_numbers<[1], [0], [0], [1], [0, 0, 1, 1], [], []>} : vector<256x4xbf16>, vector<4x128xbf16>, vector<256x128xf32> -> vector<256x128xf32>
    %7 = arith.addf %0, %6 : vector<256x128xf32>
    %c0_7 = arith.constant 0 : index
    %c0_8 = arith.constant 0 : index
    %c1 = arith.constant 1 : index
    %c0_9 = arith.constant 0 : index
    %8 = vector.load %arg1[%c0_7, %c0_8, %c1, %c0_9] : memref<1x18x18x4xbf16, #tpu.memory_space<vmem>>, vector<1x16x16x4xbf16>
    %9 = vector.shape_cast %8 : vector<1x16x16x4xbf16> to vector<16x16x4xbf16>
    %10 = vector.shape_cast %9 : vector<16x16x4xbf16> to vector<256x4xbf16>
    %c1_10 = arith.constant 1 : index
    %c0_11 = arith.constant 0 : index
    %c0_12 = arith.constant 0 : index
    %11 = vector.load %arg2[%c1_10, %c0_11, %c0_12] : memref<9x4x128xbf16, #tpu.memory_space<vmem>>, vector<1x4x128xbf16>
    %12 = vector.shape_cast %11 : vector<1x4x128xbf16> to vector<4x128xbf16>
    %cst_13 = arith.constant dense<0.000000e+00> : vector<256x128xf32>
    %13 = tpu.matmul %10, %12, %cst_13 {dimension_numbers = #tpu.dot_dimension_numbers<[1], [0], [0], [1], [0, 0, 1, 1], [], []>} : vector<256x4xbf16>, vector<4x128xbf16>, vector<256x128xf32> -> vector<256x128xf32>
    %14 = arith.addf %7, %13 : vector<256x128xf32>
    %c0_14 = arith.constant 0 : index
    %c0_15 = arith.constant 0 : index
    %c2 = arith.constant 2 : index
    %c0_16 = arith.constant 0 : index
    %15 = vector.load %arg1[%c0_14, %c0_15, %c2, %c0_16] : memref<1x18x18x4xbf16, #tpu.memory_space<vmem>>, vector<1x16x16x4xbf16>
    %16 = vector.shape_cast %15 : vector<1x16x16x4xbf16> to vector<16x16x4xbf16>
    %17 = vector.shape_cast %16 : vector<16x16x4xbf16> to vector<256x4xbf16>
    %c2_17 = arith.constant 2 : index
    %c0_18 = arith.constant 0 : index
    %c0_19 = arith.constant 0 : index
    %18 = vector.load %arg2[%c2_17, %c0_18, %c0_19] : memref<9x4x128xbf16, #tpu.memory_space<vmem>>, vector<1x4x128xbf16>
    %19 = vector.shape_cast %18 : vector<1x4x128xbf16> to vector<4x128xbf16>
    %cst_20 = arith.constant dense<0.000000e+00> : vector<256x128xf32>
    %20 = tpu.matmul %17, %19, %cst_20 {dimension_numbers = #tpu.dot_dimension_numbers<[1], [0], [0], [1], [0, 0, 1, 1], [], []>} : vector<256x4xbf16>, vector<4x128xbf16>, vector<256x128xf32> -> vector<256x128xf32>
    %21 = arith.addf %14, %20 : vector<256x128xf32>
    %c0_21 = arith.constant 0 : index
    %c1_22 = arith.constant 1 : index
    %c0_23 = arith.constant 0 : index
    %c0_24 = arith.constant 0 : index
    %22 = vector.load %arg1[%c0_21, %c1_22, %c0_23, %c0_24] : memref<1x18x18x4xbf16, #tpu.memory_space<vmem>>, vector<1x16x16x4xbf16>
    %23 = vector.shape_cast %22 : vector<1x16x16x4xbf16> to vector<16x16x4xbf16>
    %24 = vector.shape_cast %23 : vector<16x16x4xbf16> to vector<256x4xbf16>
    %c3 = arith.constant 3 : index
    %c0_25 = arith.constant 0 : index
    %c0_26 = arith.constant 0 : index
    %25 = vector.load %arg2[%c3, %c0_25, %c0_26] : memref<9x4x128xbf16, #tpu.memory_space<vmem>>, vector<1x4x128xbf16>
    %26 = vector.shape_cast %25 : vector<1x4x128xbf16> to vector<4x128xbf16>
    %cst_27 = arith.constant dense<0.000000e+00> : vector<256x128xf32>
    %27 = tpu.matmul %24, %26, %cst_27 {dimension_numbers = #tpu.dot_dimension_numbers<[1], [0], [0], [1], [0, 0, 1, 1], [], []>} : vector<256x4xbf16>, vector<4x128xbf16>, vector<256x128xf32> -> vector<256x128xf32>
    %28 = arith.addf %21, %27 : vector<256x128xf32>
    %c0_28 = arith.constant 0 : index
    %c1_29 = arith.constant 1 : index
    %c1_30 = arith.constant 1 : index
    %c0_31 = arith.constant 0 : index
    %29 = vector.load %arg1[%c0_28, %c1_29, %c1_30, %c0_31] : memref<1x18x18x4xbf16, #tpu.memory_space<vmem>>, vector<1x16x16x4xbf16>
    %30 = vector.shape_cast %29 : vector<1x16x16x4xbf16> to vector<16x16x4xbf16>
    %31 = vector.shape_cast %30 : vector<16x16x4xbf16> to vector<256x4xbf16>
    %c4 = arith.constant 4 : index
    %c0_32 = arith.constant 0 : index
    %c0_33 = arith.constant 0 : index
    %32 = vector.load %arg2[%c4, %c0_32, %c0_33] : memref<9x4x128xbf16, #tpu.memory_space<vmem>>, vector<1x4x128xbf16>
    %33 = vector.shape_cast %32 : vector<1x4x128xbf16> to vector<4x128xbf16>
    %cst_34 = arith.constant dense<0.000000e+00> : vector<256x128xf32>
    %34 = tpu.matmul %31, %33, %cst_34 {dimension_numbers = #tpu.dot_dimension_numbers<[1], [0], [0], [1], [0, 0, 1, 1], [], []>} : vector<256x4xbf16>, vector<4x128xbf16>, vector<256x128xf32> -> vector<256x128xf32>
    %35 = arith.addf %28, %34 : vector<256x128xf32>
    %c0_35 = arith.constant 0 : index
    %c1_36 = arith.constant 1 : index
    %c2_37 = arith.constant 2 : index
    %c0_38 = arith.constant 0 : index
    %36 = vector.load %arg1[%c0_35, %c1_36, %c2_37, %c0_38] : memref<1x18x18x4xbf16, #tpu.memory_space<vmem>>, vector<1x16x16x4xbf16>
    %37 = vector.shape_cast %36 : vector<1x16x16x4xbf16> to vector<16x16x4xbf16>
    %38 = vector.shape_cast %37 : vector<16x16x4xbf16> to vector<256x4xbf16>
    %c5 = arith.constant 5 : index
    %c0_39 = arith.constant 0 : index
    %c0_40 = arith.constant 0 : index
    %39 = vector.load %arg2[%c5, %c0_39, %c0_40] : memref<9x4x128xbf16, #tpu.memory_space<vmem>>, vector<1x4x128xbf16>
    %40 = vector.shape_cast %39 : vector<1x4x128xbf16> to vector<4x128xbf16>
    %cst_41 = arith.constant dense<0.000000e+00> : vector<256x128xf32>
    %41 = tpu.matmul %38, %40, %cst_41 {dimension_numbers = #tpu.dot_dimension_numbers<[1], [0], [0], [1], [0, 0, 1, 1], [], []>} : vector<256x4xbf16>, vector<4x128xbf16>, vector<256x128xf32> -> vector<256x128xf32>
    %42 = arith.addf %35, %41 : vector<256x128xf32>
    %c0_42 = arith.constant 0 : index
    %c2_43 = arith.constant 2 : index
    %c0_44 = arith.constant 0 : index
    %c0_45 = arith.constant 0 : index
    %43 = vector.load %arg1[%c0_42, %c2_43, %c0_44, %c0_45] : memref<1x18x18x4xbf16, #tpu.memory_space<vmem>>, vector<1x16x16x4xbf16>
    %44 = vector.shape_cast %43 : vector<1x16x16x4xbf16> to vector<16x16x4xbf16>
    %45 = vector.shape_cast %44 : vector<16x16x4xbf16> to vector<256x4xbf16>
    %c6 = arith.constant 6 : index
    %c0_46 = arith.constant 0 : index
    %c0_47 = arith.constant 0 : index
    %46 = vector.load %arg2[%c6, %c0_46, %c0_47] : memref<9x4x128xbf16, #tpu.memory_space<vmem>>, vector<1x4x128xbf16>
    %47 = vector.shape_cast %46 : vector<1x4x128xbf16> to vector<4x128xbf16>
    %cst_48 = arith.constant dense<0.000000e+00> : vector<256x128xf32>
    %48 = tpu.matmul %45, %47, %cst_48 {dimension_numbers = #tpu.dot_dimension_numbers<[1], [0], [0], [1], [0, 0, 1, 1], [], []>} : vector<256x4xbf16>, vector<4x128xbf16>, vector<256x128xf32> -> vector<256x128xf32>
    %49 = arith.addf %42, %48 : vector<256x128xf32>
    %c0_49 = arith.constant 0 : index
    %c2_50 = arith.constant 2 : index
    %c1_51 = arith.constant 1 : index
    %c0_52 = arith.constant 0 : index
    %50 = vector.load %arg1[%c0_49, %c2_50, %c1_51, %c0_52] : memref<1x18x18x4xbf16, #tpu.memory_space<vmem>>, vector<1x16x16x4xbf16>
    %51 = vector.shape_cast %50 : vector<1x16x16x4xbf16> to vector<16x16x4xbf16>
    %52 = vector.shape_cast %51 : vector<16x16x4xbf16> to vector<256x4xbf16>
    %c7 = arith.constant 7 : index
    %c0_53 = arith.constant 0 : index
    %c0_54 = arith.constant 0 : index
    %53 = vector.load %arg2[%c7, %c0_53, %c0_54] : memref<9x4x128xbf16, #tpu.memory_space<vmem>>, vector<1x4x128xbf16>
    %54 = vector.shape_cast %53 : vector<1x4x128xbf16> to vector<4x128xbf16>
    %cst_55 = arith.constant dense<0.000000e+00> : vector<256x128xf32>
    %55 = tpu.matmul %52, %54, %cst_55 {dimension_numbers = #tpu.dot_dimension_numbers<[1], [0], [0], [1], [0, 0, 1, 1], [], []>} : vector<256x4xbf16>, vector<4x128xbf16>, vector<256x128xf32> -> vector<256x128xf32>
    %56 = arith.addf %49, %55 : vector<256x128xf32>
    %c0_56 = arith.constant 0 : index
    %c2_57 = arith.constant 2 : index
    %c2_58 = arith.constant 2 : index
    %c0_59 = arith.constant 0 : index
    %57 = vector.load %arg1[%c0_56, %c2_57, %c2_58, %c0_59] : memref<1x18x18x4xbf16, #tpu.memory_space<vmem>>, vector<1x16x16x4xbf16>
    %58 = vector.shape_cast %57 : vector<1x16x16x4xbf16> to vector<16x16x4xbf16>
    %59 = vector.shape_cast %58 : vector<16x16x4xbf16> to vector<256x4xbf16>
    %c8 = arith.constant 8 : index
    %c0_60 = arith.constant 0 : index
    %c0_61 = arith.constant 0 : index
    %60 = vector.load %arg2[%c8, %c0_60, %c0_61] : memref<9x4x128xbf16, #tpu.memory_space<vmem>>, vector<1x4x128xbf16>
    %61 = vector.shape_cast %60 : vector<1x4x128xbf16> to vector<4x128xbf16>
    %cst_62 = arith.constant dense<0.000000e+00> : vector<256x128xf32>
    %62 = tpu.matmul %59, %61, %cst_62 {dimension_numbers = #tpu.dot_dimension_numbers<[1], [0], [0], [1], [0, 0, 1, 1], [], []>} : vector<256x4xbf16>, vector<4x128xbf16>, vector<256x128xf32> -> vector<256x128xf32>
    %63 = arith.addf %56, %62 : vector<256x128xf32>
    %cst_63 = arith.constant dense<0.000000e+00> : vector<128xf32>
    %64 = vector.multi_reduction <add>, %63, %cst_63 [0] : vector<256x128xf32> to vector<128xf32>
    %65 = vector.shape_cast %64 : vector<128xf32> to vector<1x128xf32>
    %66 = vector.shape_cast %65 : vector<1x128xf32> to vector<1x1x128xf32>
    %c0_64 = arith.constant 0 : index
    %c0_65 = arith.constant 0 : index
    %c0_66 = arith.constant 0 : index
    %67 = vector.load %arg4[%c0_64, %c0_65, %c0_66] : memref<1x1x128xf32, #tpu.memory_space<vmem>>, vector<1x1x128xf32>
    tpu.vector_store %arg4[%c0_64, %c0_65, %c0_66], %66 {strides = array<i32>} : memref<1x1x128xf32, #tpu.memory_space<vmem>>, vector<1x1x128xf32>,
    %68 = arith.mulf %63, %63 : vector<256x128xf32>
    %cst_67 = arith.constant dense<0.000000e+00> : vector<128xf32>
    %69 = vector.multi_reduction <add>, %68, %cst_67 [0] : vector<256x128xf32> to vector<128xf32>
    %70 = vector.shape_cast %69 : vector<128xf32> to vector<1x128xf32>
    %71 = vector.shape_cast %70 : vector<1x128xf32> to vector<1x1x128xf32>
    %c0_68 = arith.constant 0 : index
    %c0_69 = arith.constant 0 : index
    %c0_70 = arith.constant 0 : index
    %72 = vector.load %arg5[%c0_68, %c0_69, %c0_70] : memref<1x1x128xf32, #tpu.memory_space<vmem>>, vector<1x1x128xf32>
    tpu.vector_store %arg5[%c0_68, %c0_69, %c0_70], %71 {strides = array<i32>} : memref<1x1x128xf32, #tpu.memory_space<vmem>>, vector<1x1x128xf32>,
    %73 = arith.truncf %63 : vector<256x128xf32> to vector<256x128xbf16>
    %74 = vector.shape_cast %73 : vector<256x128xbf16> to vector<1x256x128xbf16>
    %c0_71 = arith.constant 0 : index
    %c0_72 = arith.constant 0 : index
    %c0_73 = arith.constant 0 : index
    %75 = vector.load %arg3[%c0_71, %c0_72, %c0_73] : memref<1x256x128xbf16, #tpu.memory_space<vmem>>, vector<1x256x128xbf16>
    tpu.vector_store %arg3[%c0_71, %c0_72, %c0_73], %74 {strides = array<i32>} : memref<1x256x128xbf16, #tpu.memory_space<vmem>>, vector<1x256x128xbf16>,
    return
  }
  func.func @transform_0(%arg0: i32) -> (i32, i32, i32, i32) {
    %c0_i32 = arith.constant 0 : i32
    %c0_i32_0 = arith.constant 0 : i32
    %c0_i32_1 = arith.constant 0 : i32
    %c0_i32_2 = arith.constant 0 : i32
    return %arg0, %c0_i32, %c0_i32_0, %c0_i32_1 : i32, i32, i32, i32
  }
  func.func @transform_1(%arg0: i32) -> (i32, i32, i32) {
    %c0_i32 = arith.constant 0 : i32
    %c0_i32_0 = arith.constant 0 : i32
    %c0_i32_1 = arith.constant 0 : i32
    %c0_i32_2 = arith.constant 0 : i32
    return %c0_i32, %c0_i32_0, %c0_i32_1 : i32, i32, i32
  }
  func.func @transform_2(%arg0: i32) -> (i32, i32, i32) {
    %c0_i32 = arith.constant 0 : i32
    %c0_i32_0 = arith.constant 0 : i32
    %c0_i32_1 = arith.constant 0 : i32
    return %arg0, %c0_i32, %c0_i32_0 : i32, i32, i32
  }
  func.func @transform_3(%arg0: i32) -> (i32, i32, i32) {
    %c0_i32 = arith.constant 0 : i32
    %c0_i32_0 = arith.constant 0 : i32
    %c0_i32_1 = arith.constant 0 : i32
    return %arg0, %c0_i32, %c0_i32_0 : i32, i32, i32
  }
  func.func @transform_4(%arg0: i32) -> (i32, i32, i32) {
    %c0_i32 = arith.constant 0 : i32
    %c0_i32_0 = arith.constant 0 : i32
    %c0_i32_1 = arith.constant 0 : i32
    return %arg0, %c0_i32, %c0_i32_0 : i32, i32, i32
  }
}

</mosaic_0001>

<llo_original>
// kernel: tpu_custom_call.1
$region0: #{tpu_custom_call.1}
  #allocation0 [shape = 'u32[]', space=smem, size = 0x4, offset = 0x4, fixed_abs, tag = 'smem constant byte address 0x4 - core index']
  #allocation1 [shape = 'u32[72,128]{1,0:T(1,128)}', space=vmem, size = 0x9000, scoped, tag = 'internal scratch']
  %s0 = inlined_call_operand.vmem [shape: bf16[2,18,18,4], index: 0, kind: input, shape index: {}]
  %s1 = inlined_call_operand.vmem [shape: bf16[9,4,128], index: 1, kind: input, shape index: {}]
  %s2 = inlined_call_operand.hbm [shape: bf16[2,256,128], index: 2, kind: output, shape index: {0}]
  %s3 = inlined_call_operand.hbm [shape: f32[2,1,128], index: 3, kind: output, shape index: {1}]
  %s4 = inlined_call_operand.hbm [shape: f32[2,1,128], index: 4, kind: output, shape index: {2}]
  %5 = xla_tuple %s2, %s3, %s4
  %s6 = sld [smem:[#allocation0]]
  $region57: #{tpu_custom_call.1} parent=0
    _
  %s8 = ssub.s32 1, %s6
  %s9 = scalar_select 0, %s8, %s6
  $region1: #{tpu_custom_call.1} parent=0
    #allocation2 [shape = 'u8[131072]{0}', space=vmem, size = 0x20000, scoped, tag = 'output window, operand 0']
    #allocation3 [shape = 's32[2]{0}', space=sflag, size = 0x8, scoped, tag = 'scoped memory for tpu_custom_call.1']
    #allocation4 [shape = 'u8[1024]{0}', space=vmem, size = 0x400, scoped, tag = 'output window, operand 1']
    #allocation5 [shape = 's32[2]{0}', space=sflag, size = 0x8, scoped, tag = 'scoped memory for tpu_custom_call.1']
    #allocation6 [shape = 'u8[1024]{0}', space=vmem, size = 0x400, scoped, tag = 'output window, operand 2']
    %10 = vsyncpa [#allocation3], 0
    %s11 = scalar_lea.sflag [#allocation3], 1
    %12 = vsyncpa %s11, 0
    %13 = vsyncpa [#allocation5], 0
    %s14 = scalar_lea.sflag [#allocation5], 1
    %15 = vsyncpa %s14, 0
    loop: start=0, step=1, limit=4
    $region2: #{tpu_custom_call.1} parent=1 // loop_pre_header
      _
    $region3: #{tpu_custom_call.1} parent=1 // loop_header
      %s17 = sphi 0, %s21
      %p18 = scmp.ge.s32.totalorder %s17, 4
      %s27 = sphi 0, %s29
      %s30 = sphi 0, %s27
      %s31 = sphi 0, %s30
      %s47 = sphi 0, %s31
      %s51 = sphi 0, %s51
      %s53 = sphi 0, %s51
      %s54 = sphi 0, %s53
      %s68 = sphi 0, %s54
      %s74 = sphi 0, %s76
      %s77 = sphi 0, %s74
      %s78 = sphi 0, %s77
      %s94 = sphi 0, %s78
      %s100 = sphi 0, %s102
      %s103 = sphi 0, %s100
      %s104 = sphi 0, %s103
      %s120 = sphi 0, %s104
      %s126 = sphi 0, %s128
      %s129 = sphi 0, %s126
      %s130 = sphi 0, %s129
      %s146 = sphi 0, %s130
    $region4: #{tpu_custom_call.1} parent=1 // loop_header_branch
      %20 = sbr.rel (%p18) target = $region8
    $region5: #{tpu_custom_call.1} parent=1 // loop_body
      %s22 = ssub.s32 %s17, 1
      %s23 = ssub.s32 %s17, 2
      %s24 = sadd.s32 %s17, 1
      %s25 = ssub.s32 %s17, %s24
      %p26 = scmp.eq.s32.totalorder %s25, 0
      %s28 = sadd.s32 %s27, 1
      %s29 = scalar_select %p26, %s27, %s28
      %p32 = pneg %p26
      %p33 = scmp.eq.s32.totalorder %s17, 1
      %p34 = por %p32, %p33
      %p35 = scmp.ne.s32.totalorder %s27, %s30
      %p36 = scmp.eq.s32.totalorder %s17, 0
      %p37 = por %p35, %p36
      %p38 = scmp.ne.s32.totalorder %s27, %s30
      %p39 = scmp.eq.s32.totalorder %s22, 1
      %p40 = por %p38, %p39
      %p41 = scmp.ne.s32.totalorder %s30, %s31
      %p42 = scmp.eq.s32.totalorder %s22, 0
      %p43 = por %p41, %p42
      %p44 = scmp.ne.s32.totalorder %s30, %s31
      %p45 = scmp.eq.s32.totalorder %s23, 1
      %p46 = por %p44, %p45
      %p48 = scmp.ne.s32.totalorder %s31, %s47
      %p49 = scmp.eq.s32.totalorder %s23, 0
      %p50 = por %p48, %p49
      %s52 = sadd.s32 %s51, 1
      %p55 = scmp.eq.s32.totalorder %s17, 1
      %p56 = scmp.ne.s32.totalorder %s51, %s53
      %p57 = scmp.eq.s32.totalorder %s17, 0
      %p58 = por %p56, %p57
      %p59 = scmp.ne.s32.totalorder %s51, %s53
      %p60 = scmp.eq.s32.totalorder %s22, 1
      %p61 = por %p59, %p60
      %p62 = scmp.ne.s32.totalorder %s53, %s54
      %p63 = scmp.eq.s32.totalorder %s22, 0
      %p64 = por %p62, %p63
      %p65 = scmp.ne.s32.totalorder %s53, %s54
      %p66 = scmp.eq.s32.totalorder %s23, 1
      %p67 = por %p65, %p66
      %p69 = scmp.ne.s32.totalorder %s54, %s68
      %p70 = scmp.eq.s32.totalorder %s23, 0
      %p71 = por %p69, %p70
      %s72 = ssub.s32 %s17, %s24
      %p73 = scmp.eq.s32.totalorder %s72, 0
      %s75 = sadd.s32 %s74, 1
      %s76 = scalar_select %p73, %s74, %s75
      %p79 = pneg %p73
      %p80 = scmp.eq.s32.totalorder %s17, 1
      %p81 = por %p79, %p80
      %p82 = scmp.ne.s32.totalorder %s74, %s77
      %p83 = scmp.eq.s32.totalorder %s17, 0
      %p84 = por %p82, %p83
      %p85 = scmp.ne.s32.totalorder %s74, %s77
      %p86 = scmp.eq.s32.totalorder %s22, 1
      %p87 = por %p85, %p86
      %p88 = scmp.ne.s32.totalorder %s77, %s78
      %p89 = scmp.eq.s32.totalorder %s22, 0
      %p90 = por %p88, %p89
      %p91 = scmp.ne.s32.totalorder %s77, %s78
      %p92 = scmp.eq.s32.totalorder %s23, 1
      %p93 = por %p91, %p92
      %p95 = scmp.ne.s32.totalorder %s78, %s94
      %p96 = scmp.eq.s32.totalorder %s23, 0
      %p97 = por %p95, %p96
      %s98 = ssub.s32 %s17, %s24
      %p99 = scmp.eq.s32.totalorder %s98, 0
      %s101 = sadd.s32 %s100, 1
      %s102 = scalar_select %p99, %s100, %s101
      %p105 = pneg %p99
      %p106 = scmp.eq.s32.totalorder %s17, 1
      %p107 = por %p105, %p106
      %p108 = scmp.ne.s32.totalorder %s100, %s103
      %p109 = scmp.eq.s32.totalorder %s17, 0
      %p110 = por %p108, %p109
      %p111 = scmp.ne.s32.totalorder %s100, %s103
      %p112 = scmp.eq.s32.totalorder %s22, 1
      %p113 = por %p111, %p112
      %p114 = scmp.ne.s32.totalorder %s103, %s104
      %p115 = scmp.eq.s32.totalorder %s22, 0
      %p116 = por %p114, %p115
      %p117 = scmp.ne.s32.totalorder %s103, %s104
      %p118 = scmp.eq.s32.totalorder %s23, 1
      %p119 = por %p117, %p118
      %p121 = scmp.ne.s32.totalorder %s104, %s120
      %p122 = scmp.eq.s32.totalorder %s23, 0
      %p123 = por %p121, %p122
      %s124 = ssub.s32 %s17, %s24
      %p125 = scmp.eq.s32.totalorder %s124, 0
      %s127 = sadd.s32 %s126, 1
      %s128 = scalar_select %p125, %s126, %s127
      %p131 = pneg %p125
      %p132 = scmp.eq.s32.totalorder %s17, 1
      %p133 = por %p131, %p132
      %p134 = scmp.ne.s32.totalorder %s126, %s129
      %p135 = scmp.eq.s32.totalorder %s17, 0
      %p136 = por %p134, %p135
      %p137 = scmp.ne.s32.totalorder %s126, %s129
      %p138 = scmp.eq.s32.totalorder %s22, 1
      %p139 = por %p137, %p138
      %p140 = scmp.ne.s32.totalorder %s129, %s130
      %p141 = scmp.eq.s32.totalorder %s22, 0
      %p142 = por %p140, %p141
      %p143 = scmp.ne.s32.totalorder %s129, %s130
      %p144 = scmp.eq.s32.totalorder %s23, 1
      %p145 = por %p143, %p144
      %p147 = scmp.ne.s32.totalorder %s130, %s146
      %p148 = scmp.eq.s32.totalorder %s23, 0
      %p149 = por %p147, %p148
      %p150 = scmp.le.s32.totalorder 1, %s17
      %p151 = scmp.lt.s32.totalorder %s17, 3
      %p152 = pnand %p150, %p151
      %p153 = pneg %p152
      // Predicated region
      $region9: #{tpu_custom_call.1} parent=5 // pred_check
        _
      $region10: #{tpu_custom_call.1} parent=5 // pred_check_branch
        %155 = sbr.rel (%p152) target = $region12
      $region11: #{tpu_custom_call.1} parent=5 // pred_region
        %s156 = ssub.s32 %s17, 1
        // Predicated region
        $region13: #{tpu_custom_call.1} parent=11 // pred_check
          %p157 = pneg %p64
        $region14: #{tpu_custom_call.1} parent=11 // pred_check_branch
          %159 = sbr.rel (%p157) target = $region16
        $region15: #{tpu_custom_call.1} parent=11 // pred_region
          _
        $region16: #{tpu_custom_call.1} parent=11 // pred_fallthru
          _
      $region12: #{tpu_custom_call.1} parent=5 // pred_fallthru
        _
      %p160 = scmp.lt.s32.totalorder %s17, 2
      // Predicated region
      $region17: #{tpu_custom_call.1} parent=5 // pred_check
        %p161 = pneg %p160
      $region18: #{tpu_custom_call.1} parent=5 // pred_check_branch
        %163 = sbr.rel (%p161) target = $region20
      $region19: #{tpu_custom_call.1} parent=5 // pred_region
        // Predicated region
        $region21: #{tpu_custom_call.1} parent=19 // pred_check
          %p164 = pneg %p37
        $region22: #{tpu_custom_call.1} parent=19 // pred_check_branch
          %166 = sbr.rel (%p164) target = $region24
        $region23: #{tpu_custom_call.1} parent=19 // pred_region
          %p167 = scmp.lt.s32.totalorder %s17, 1
          %s168 = scalar_select %p167, %s17, 1
          %s169 = smul.addr %s168, 54
          %s170 = smul.addr %s169, 4
          %s171 = scalar_lea.vmem %s0, %s170
        $region24: #{tpu_custom_call.1} parent=19 // pred_fallthru
          _
      $region20: #{tpu_custom_call.1} parent=5 // pred_fallthru
        _
      %p172 = scmp.le.s32.totalorder 1, %s17
      %p173 = scmp.lt.s32.totalorder %s17, 3
      %p174 = pnand %p172, %p173
      %p175 = pneg %p174
      // Predicated region
      $region25: #{tpu_custom_call.1} parent=5 // pred_check
        _
      $region26: #{tpu_custom_call.1} parent=5 // pred_check_branch
        %177 = sbr.rel (%p174) target = $region28
      $region27: #{tpu_custom_call.1} parent=5 // pred_region
        %s178 = ssub.s32 %s17, 1
        %p179 = scmp.lt.s32.totalorder %s22, 1
        %s180 = scalar_select %p179, %s22, 1
        %s181 = smul.addr %s180, 54
        %s182 = smul.addr %s181, 4
        %s183 = scalar_lea.vmem %s0, %s182
        %p184 = pneg %p43
        %p185 = pneg %p40
        %p186 = pneg %p64
        %p187 = pneg %p61
        %p188 = pneg %p90
        %p189 = pneg %p87
        %s190 = sand.u32 %s77, 1
        %s191 = scalar_lea.sflag [#allocation3], %s190
        %s192 = sand.u32 %s77, 1
        %s193 = smul.addr %s192, 128
        %s194 = scalar_lea.vmem [#allocation2], %s193
        %p195 = pneg %p116
        %p196 = pneg %p113
        %s197 = sand.u32 %s22, 1
        %s198 = scalar_lea.sflag [#allocation5], %s197
        %s199 = sand.u32 %s103, 1
        %s200 = scalar_lea.vmem [#allocation4], %s199
        %p201 = pneg %p142
        %p202 = pneg %p139
        %s203 = sand.u32 %s22, 1
        %s204 = scalar_lea.sflag [#allocation5], %s203
        %s205 = sand.u32 %s129, 1
        %s206 = scalar_lea.vmem [#allocation6], %s205
        %p207 = scmp.lt.s32.totalorder %s22, 1
        %s208 = scalar_select %p207, %s22, 1
        %s209 = smul.addr %s208, 54
        %s210 = smul.addr %s209, 4
        %s211 = scalar_lea.vmem %s0, %s210
        %v213 = vld [vmem:[%s211] sm:$0xf]
        %v214 = vld [vmem:[%s211 + $0x4] sm:$0xf]
        %v215 = vld [vmem:[%s211 + $0xc] sm:$0xf]
        %v216 = vld [vmem:[%s211 + $0x10] sm:$0xf]
        %v217 = vld [vmem:[%s211 + $0x18] sm:$0xf]
        %v218 = vld [vmem:[%s211 + $0x1c] sm:$0xf]
        %v219 = vld [vmem:[%s211 + $0x24] sm:$0xf]
        %v220 = vld [vmem:[%s211 + $0x28] sm:$0xf]
        %v221 = vld [vmem:[%s211 + $0x30] sm:$0xf]
        %v222 = vld [vmem:[%s211 + $0x34] sm:$0xf]
        %v223 = vld [vmem:[%s211 + $0x3c] sm:$0xf]
        %v224 = vld [vmem:[%s211 + $0x40] sm:$0xf]
        %v225 = vld [vmem:[%s211 + $0x48] sm:$0xf]
        %v226 = vld [vmem:[%s211 + $0x4c] sm:$0xf]
        %v227 = vld [vmem:[%s211 + $0x54] sm:$0xf]
        %v228 = vld [vmem:[%s211 + $0x58] sm:$0xf]
        %v229 = vld [vmem:[%s211 + $0x60] sm:$0xf]
        %v230 = vld [vmem:[%s211 + $0x64] sm:$0xf]
        %v231 = vld [vmem:[%s211 + $0x6c] sm:$0xf]
        %v232 = vld [vmem:[%s211 + $0x70] sm:$0xf]
        %v233 = vld [vmem:[%s211 + $0x78] sm:$0xf]
        %v234 = vld [vmem:[%s211 + $0x7c] sm:$0xf]
        %v235 = vld [vmem:[%s211 + $0x84] sm:$0xf]
        %v236 = vld [vmem:[%s211 + $0x88] sm:$0xf]
        %v237 = vld [vmem:[%s211 + $0x90] sm:$0xf]
        %v238 = vld [vmem:[%s211 + $0x94] sm:$0xf]
        %v239 = vld [vmem:[%s211 + $0x9c] sm:$0xf]
        %v240 = vld [vmem:[%s211 + $0xa0] sm:$0xf]
        %v241 = vld [vmem:[%s211 + $0xa8] sm:$0xf]
        %v242 = vld [vmem:[%s211 + $0xac] sm:$0xf]
        %v243 = vld [vmem:[%s211 + $0xb4] sm:$0xf]
        %v244 = vld [vmem:[%s211 + $0xb8] sm:$0xf]
        %v245 = vld [vmem:[%s1] sm:$0x3]
        %v246 = vld [vmem:[%s211 + $0x8] sm:$0x1]
        %v247 = vld [vmem:[%s211 + $0x14] sm:$0x1]
        %v248 = vld [vmem:[%s211 + $0x20] sm:$0x1]
        %v249 = vld [vmem:[%s211 + $0x2c] sm:$0x1]
        %v250 = vld [vmem:[%s211 + $0x38] sm:$0x1]
        %v251 = vld [vmem:[%s211 + $0x44] sm:$0x1]
        %v252 = vld [vmem:[%s211 + $0x50] sm:$0x1]
        %v253 = vld [vmem:[%s211 + $0x5c] sm:$0x1]
        %v254 = vld [vmem:[%s211 + $0x68] sm:$0x1]
        %v255 = vld [vmem:[%s211 + $0x74] sm:$0x1]
        %v256 = vld [vmem:[%s211 + $0x80] sm:$0x1]
        %v257 = vld [vmem:[%s211 + $0x8c] sm:$0x1]
        %v258 = vld [vmem:[%s211 + $0x98] sm:$0x1]
        %v259 = vld [vmem:[%s211 + $0xa4] sm:$0x1]
        %v260 = vld [vmem:[%s211 + $0xb0] sm:$0x1]
        %v261 = vld [vmem:[%s211 + $0xbc] sm:$0x1]
        %vm262 = vsmask.f32 3328
        %vm263 = vsmask.f32 7440
        %vm264 = vmor %vm262, %vm263
        %v266 = vshrl.u32 %v213, 16
        %v268 = vrot.slane %v266, 4
        %v269 = vshll.u32 %v213, 16
        %v271 = vrot.slane %v269, 5
        %v272 = vor.u32 %v268, %v271
        %v273 = vrot.slane %v272, 4
        %v275 = vshll.u32 %v214, 16
        %v277 = vrot.slane %v275, 5
        %v278 = vsel %vm264, %v273, %v277
        %v279 = vshrl.u32 %v214, 16
        %v281 = vrot.slane %v279, 4
        %v282 = vor.u32 %v281, %v277
        %v283 = vrot.slane %v282, 4
        %v285 = vshll.u32 %v246, 16
        %v287 = vrot.slane %v285, 5
        %v288 = vsel %vm264, %v283, %v287
        %v290 = vshrl.u32 %v215, 16
        %v292 = vrot.slane %v290, 4
        %v293 = vshll.u32 %v215, 16
        %v295 = vrot.slane %v293, 5
        %v296 = vor.u32 %v292, %v295
        %v297 = vrot.slane %v296, 4
        %v299 = vshll.u32 %v216, 16
        %v301 = vrot.slane %v299, 5
        %v302 = vsel %vm264, %v297, %v301
        %v303 = vshrl.u32 %v216, 16
        %v305 = vrot.slane %v303, 4
        %v306 = vor.u32 %v305, %v301
        %v307 = vrot.slane %v306, 4
        %v309 = vshll.u32 %v247, 16
        %v311 = vrot.slane %v309, 5
        %v312 = vsel %vm264, %v307, %v311
        %v314 = vshrl.u32 %v217, 16
        %v316 = vrot.slane %v314, 4
        %v317 = vshll.u32 %v217, 16
        %v319 = vrot.slane %v317, 5
        %v320 = vor.u32 %v316, %v319
        %v321 = vrot.slane %v320, 4
        %v323 = vshll.u32 %v218, 16
        %v325 = vrot.slane %v323, 5
        %v326 = vsel %vm264, %v321, %v325
        %v327 = vshrl.u32 %v218, 16
        %v329 = vrot.slane %v327, 4
        %v330 = vor.u32 %v329, %v325
        %v331 = vrot.slane %v330, 4
        %v333 = vshll.u32 %v248, 16
        %v335 = vrot.slane %v333, 5
        %v336 = vsel %vm264, %v331, %v335
        %v338 = vshrl.u32 %v219, 16
        %v340 = vrot.slane %v338, 4
        %v341 = vshll.u32 %v219, 16
        %v343 = vrot.slane %v341, 5
        %v344 = vor.u32 %v340, %v343
        %v345 = vrot.slane %v344, 4
        %v347 = vshll.u32 %v220, 16
        %v349 = vrot.slane %v347, 5
        %v350 = vsel %vm264, %v345, %v349
        %v351 = vshrl.u32 %v220, 16
        %v353 = vrot.slane %v351, 4
        %v354 = vor.u32 %v353, %v349
        %v355 = vrot.slane %v354, 4
        %v357 = vshll.u32 %v249, 16
        %v359 = vrot.slane %v357, 5
        %v360 = vsel %vm264, %v355, %v359
        %v362 = vshrl.u32 %v221, 16
        %v364 = vrot.slane %v362, 4
        %v365 = vshll.u32 %v221, 16
        %v367 = vrot.slane %v365, 5
        %v368 = vor.u32 %v364, %v367
        %v369 = vrot.slane %v368, 4
        %v371 = vshll.u32 %v222, 16
        %v373 = vrot.slane %v371, 5
        %v374 = vsel %vm264, %v369, %v373
        %v375 = vshrl.u32 %v222, 16
        %v377 = vrot.slane %v375, 4
        %v378 = vor.u32 %v377, %v373
        %v379 = vrot.slane %v378, 4
        %v381 = vshll.u32 %v250, 16
        %v383 = vrot.slane %v381, 5
        %v384 = vsel %vm264, %v379, %v383
        %v386 = vshrl.u32 %v223, 16
        %v388 = vrot.slane %v386, 4
        %v389 = vshll.u32 %v223, 16
        %v391 = vrot.slane %v389, 5
        %v392 = vor.u32 %v388, %v391
        %v393 = vrot.slane %v392, 4
        %v395 = vshll.u32 %v224, 16
        %v397 = vrot.slane %v395, 5
        %v398 = vsel %vm264, %v393, %v397
        %v399 = vshrl.u32 %v224, 16
        %v401 = vrot.slane %v399, 4
        %v402 = vor.u32 %v401, %v397
        %v403 = vrot.slane %v402, 4
        %v405 = vshll.u32 %v251, 16
        %v407 = vrot.slane %v405, 5
        %v408 = vsel %vm264, %v403, %v407
        %v410 = vshrl.u32 %v225, 16
        %v412 = vrot.slane %v410, 4
        %v413 = vshll.u32 %v225, 16
        %v415 = vrot.slane %v413, 5
        %v416 = vor.u32 %v412, %v415
        %v417 = vrot.slane %v416, 4
        %v419 = vshll.u32 %v226, 16
        %v421 = vrot.slane %v419, 5
        %v422 = vsel %vm264, %v417, %v421
        %v423 = vshrl.u32 %v226, 16
        %v425 = vrot.slane %v423, 4
        %v426 = vor.u32 %v425, %v421
        %v427 = vrot.slane %v426, 4
        %v429 = vshll.u32 %v252, 16
        %v431 = vrot.slane %v429, 5
        %v432 = vsel %vm264, %v427, %v431
        %v434 = vshrl.u32 %v227, 16
        %v436 = vrot.slane %v434, 4
        %v437 = vshll.u32 %v227, 16
        %v439 = vrot.slane %v437, 5
        %v440 = vor.u32 %v436, %v439
        %v441 = vrot.slane %v440, 4
        %v443 = vshll.u32 %v228, 16
        %v445 = vrot.slane %v443, 5
        %v446 = vsel %vm264, %v441, %v445
        %v447 = vshrl.u32 %v228, 16
        %v449 = vrot.slane %v447, 4
        %v450 = vor.u32 %v449, %v445
        %v451 = vrot.slane %v450, 4
        %v453 = vshll.u32 %v253, 16
        %v455 = vrot.slane %v453, 5
        %v456 = vsel %vm264, %v451, %v455
        %v458 = vshrl.u32 %v229, 16
        %v460 = vrot.slane %v458, 4
        %v461 = vshll.u32 %v229, 16
        %v463 = vrot.slane %v461, 5
        %v464 = vor.u32 %v460, %v463
        %v465 = vrot.slane %v464, 4
        %v467 = vshll.u32 %v230, 16
        %v469 = vrot.slane %v467, 5
        %v470 = vsel %vm264, %v465, %v469
        %v471 = vshrl.u32 %v230, 16
        %v473 = vrot.slane %v471, 4
        %v474 = vor.u32 %v473, %v469
        %v475 = vrot.slane %v474, 4
        %v477 = vshll.u32 %v254, 16
        %v479 = vrot.slane %v477, 5
        %v480 = vsel %vm264, %v475, %v479
        %v482 = vshrl.u32 %v231, 16
        %v484 = vrot.slane %v482, 4
        %v485 = vshll.u32 %v231, 16
        %v487 = vrot.slane %v485, 5
        %v488 = vor.u32 %v484, %v487
        %v489 = vrot.slane %v488, 4
        %v491 = vshll.u32 %v232, 16
        %v493 = vrot.slane %v491, 5
        %v494 = vsel %vm264, %v489, %v493
        %v495 = vshrl.u32 %v232, 16
        %v497 = vrot.slane %v495, 4
        %v498 = vor.u32 %v497, %v493
        %v499 = vrot.slane %v498, 4
        %v501 = vshll.u32 %v255, 16
        %v503 = vrot.slane %v501, 5
        %v504 = vsel %vm264, %v499, %v503
        %v506 = vshrl.u32 %v233, 16
        %v508 = vrot.slane %v506, 4
        %v509 = vshll.u32 %v233, 16
        %v511 = vrot.slane %v509, 5
        %v512 = vor.u32 %v508, %v511
        %v513 = vrot.slane %v512, 4
        %v515 = vshll.u32 %v234, 16
        %v517 = vrot.slane %v515, 5
        %v518 = vsel %vm264, %v513, %v517
        %v519 = vshrl.u32 %v234, 16
        %v521 = vrot.slane %v519, 4
        %v522 = vor.u32 %v521, %v517
        %v523 = vrot.slane %v522, 4
        %v525 = vshll.u32 %v256, 16
        %v527 = vrot.slane %v525, 5
        %v528 = vsel %vm264, %v523, %v527
        %v530 = vshrl.u32 %v235, 16
        %v532 = vrot.slane %v530, 4
        %v533 = vshll.u32 %v235, 16
        %v535 = vrot.slane %v533, 5
        %v536 = vor.u32 %v532, %v535
        %v537 = vrot.slane %v536, 4
        %v539 = vshll.u32 %v236, 16
        %v541 = vrot.slane %v539, 5
        %v542 = vsel %vm264, %v537, %v541
        %v543 = vshrl.u32 %v236, 16
        %v545 = vrot.slane %v543, 4
        %v546 = vor.u32 %v545, %v541
        %v547 = vrot.slane %v546, 4
        %v549 = vshll.u32 %v257, 16
        %v551 = vrot.slane %v549, 5
        %v552 = vsel %vm264, %v547, %v551
        %v554 = vshrl.u32 %v237, 16
        %v556 = vrot.slane %v554, 4
        %v557 = vshll.u32 %v237, 16
        %v559 = vrot.slane %v557, 5
        %v560 = vor.u32 %v556, %v559
        %v561 = vrot.slane %v560, 4
        %v563 = vshll.u32 %v238, 16
        %v565 = vrot.slane %v563, 5
        %v566 = vsel %vm264, %v561, %v565
        %v567 = vshrl.u32 %v238, 16
        %v569 = vrot.slane %v567, 4
        %v570 = vor.u32 %v569, %v565
        %v571 = vrot.slane %v570, 4
        %v573 = vshll.u32 %v258, 16
        %v575 = vrot.slane %v573, 5
        %v576 = vsel %vm264, %v571, %v575
        %v578 = vshrl.u32 %v239, 16
        %v580 = vrot.slane %v578, 4
        %v581 = vshll.u32 %v239, 16
        %v583 = vrot.slane %v581, 5
        %v584 = vor.u32 %v580, %v583
        %v585 = vrot.slane %v584, 4
        %v587 = vshll.u32 %v240, 16
        %v589 = vrot.slane %v587, 5
        %v590 = vsel %vm264, %v585, %v589
        %v591 = vshrl.u32 %v240, 16
        %v593 = vrot.slane %v591, 4
        %v594 = vor.u32 %v593, %v589
        %v595 = vrot.slane %v594, 4
        %v597 = vshll.u32 %v259, 16
        %v599 = vrot.slane %v597, 5
        %v600 = vsel %vm264, %v595, %v599
        %v602 = vshrl.u32 %v241, 16
        %v604 = vrot.slane %v602, 4
        %v605 = vshll.u32 %v241, 16
        %v607 = vrot.slane %v605, 5
        %v608 = vor.u32 %v604, %v607
        %v609 = vrot.slane %v608, 4
        %v611 = vshll.u32 %v242, 16
        %v613 = vrot.slane %v611, 5
        %v614 = vsel %vm264, %v609, %v613
        %v615 = vshrl.u32 %v242, 16
        %v617 = vrot.slane %v615, 4
        %v618 = vor.u32 %v617, %v613
        %v619 = vrot.slane %v618, 4
        %v621 = vshll.u32 %v260, 16
        %v623 = vrot.slane %v621, 5
        %v624 = vsel %vm264, %v619, %v623
        %v626 = vshrl.u32 %v243, 16
        %v628 = vrot.slane %v626, 4
        %v629 = vshll.u32 %v243, 16
        %v631 = vrot.slane %v629, 5
        %v632 = vor.u32 %v628, %v631
        %v633 = vrot.slane %v632, 4
        %v635 = vshll.u32 %v244, 16
        %v637 = vrot.slane %v635, 5
        %v638 = vsel %vm264, %v633, %v637
        %v639 = vshrl.u32 %v244, 16
        %v641 = vrot.slane %v639, 4
        %v642 = vor.u32 %v641, %v637
        %v643 = vrot.slane %v642, 4
        %v645 = vshll.u32 %v261, 16
        %v647 = vrot.slane %v645, 5
        %v648 = vsel %vm264, %v643, %v647
        %s649 = scalar_lea.vmem %s1, 2
        %v650 = vld [vmem:[%s649] sm:$0x3]
        %v651 = vunpack.c.l.b16 %v278
        %v652 = vunpack.c.l.b16 %v288
        %v653 = vunpack.c.l.b16 %v302
        %v654 = vunpack.c.l.b16 %v312
        %v655 = vunpack.c.l.b16 %v326
        %v656 = vunpack.c.l.b16 %v336
        %v657 = vunpack.c.l.b16 %v350
        %v658 = vunpack.c.l.b16 %v360
        %v659 = vunpack.c.l.b16 %v374
        %v660 = vunpack.c.l.b16 %v384
        %v661 = vunpack.c.l.b16 %v398
        %v662 = vunpack.c.l.b16 %v408
        %v663 = vunpack.c.l.b16 %v422
        %v664 = vunpack.c.l.b16 %v432
        %v665 = vunpack.c.l.b16 %v446
        %v666 = vunpack.c.l.b16 %v456
        %v667 = vunpack.c.l.b16 %v470
        %v668 = vunpack.c.l.b16 %v480
        %v669 = vunpack.c.l.b16 %v494
        %v670 = vunpack.c.l.b16 %v504
        %v671 = vunpack.c.l.b16 %v518
        %v672 = vunpack.c.l.b16 %v528
        %v673 = vunpack.c.l.b16 %v542
        %v674 = vunpack.c.l.b16 %v552
        %v675 = vunpack.c.l.b16 %v566
        %v676 = vunpack.c.l.b16 %v576
        %v677 = vunpack.c.l.b16 %v590
        %v678 = vunpack.c.l.b16 %v600
        %v679 = vunpack.c.l.b16 %v614
        %v680 = vunpack.c.l.b16 %v624
        %v681 = vunpack.c.l.b16 %v638
        %v682 = vunpack.c.l.b16 %v648
        %v683 = vpack.c.b16 %v652, %v651
        %v684 = vpack.c.b16 %v654, %v653
        %v685 = vpack.c.b16 %v656, %v655
        %v686 = vpack.c.b16 %v658, %v657
        %v687 = vpack.c.b16 %v660, %v659
        %v688 = vpack.c.b16 %v662, %v661
        %v689 = vpack.c.b16 %v664, %v663
        %v690 = vpack.c.b16 %v666, %v665
        %v691 = vpack.c.b16 %v668, %v667
        %v692 = vpack.c.b16 %v670, %v669
        %v693 = vpack.c.b16 %v672, %v671
        %v694 = vpack.c.b16 %v674, %v673
        %v695 = vpack.c.b16 %v676, %v675
        %v696 = vpack.c.b16 %v678, %v677
        %v697 = vpack.c.b16 %v680, %v679
        %v698 = vpack.c.b16 %v682, %v681
        %vm699 = vcmask 31744
        %v701 = vsel %vm699, %v683, 0
        %v704 = vsel %vm699, %v684, 0
        %v707 = vsel %vm699, %v685, 0
        %v710 = vsel %vm699, %v686, 0
        %v713 = vsel %vm699, %v687, 0
        %v716 = vsel %vm699, %v688, 0
        %v719 = vsel %vm699, %v689, 0
        %v722 = vsel %vm699, %v690, 0
        %v725 = vsel %vm699, %v691, 0
        %v728 = vsel %vm699, %v692, 0
        %v731 = vsel %vm699, %v693, 0
        %v734 = vsel %vm699, %v694, 0
        %v737 = vsel %vm699, %v695, 0
        %v740 = vsel %vm699, %v696, 0
        %v743 = vsel %vm699, %v697, 0
        %v746 = vsel %vm699, %v698, 0
        %vm748 = vcmask 1041408
        %v750 = vsel %vm748, %v650, 0
        %752 = vmatpush.bf16.msra.mxu0 0
        %753 = vmatpush.bf16.msra.mxu0 0
        %754 = vmatpush.bf16.msra.mxu0 0
        %755 = vmatpush.bf16.msra.mxu0 0
        %756 = vmatpush.bf16.msra.mxu0 0
        %757 = vmatpush.bf16.msra.mxu0 0
        %758 = vmatpush.bf16.msra.mxu0 0
        %759 = vmatpush.bf16.msra.mxu0 %v750
        %760 = vmatmul.bf16.gmra.mxu0 %v701
        %v761 = vpop.f32.mrf.mxu0
        %v762 = vadd.f32 0.0, %v761
        %v763 = vpop.f32.mrf.mxu0
        %v764 = vadd.f32 0.0, %v763
        %765 = vmatmul.bf16.gmra.mxu0 %v704
        %v766 = vpop.f32.mrf.mxu0
        %v767 = vadd.f32 0.0, %v766
        %v768 = vpop.f32.mrf.mxu0
        %v769 = vadd.f32 0.0, %v768
        %770 = vmatmul.bf16.gmra.mxu0 %v707
        %v771 = vpop.f32.mrf.mxu0
        %v772 = vadd.f32 0.0, %v771
        %v773 = vpop.f32.mrf.mxu0
        %v774 = vadd.f32 0.0, %v773
        %775 = vmatmul.bf16.gmra.mxu0 %v710
        %v776 = vpop.f32.mrf.mxu0
        %v777 = vadd.f32 0.0, %v776
        %v778 = vpop.f32.mrf.mxu0
        %v779 = vadd.f32 0.0, %v778
        %780 = vmatmul.bf16.gmra.mxu0 %v713
        %v781 = vpop.f32.mrf.mxu0
        %v782 = vadd.f32 0.0, %v781
        %v783 = vpop.f32.mrf.mxu0
        %v784 = vadd.f32 0.0, %v783
        %785 = vmatmul.bf16.gmra.mxu0 %v716
        %v786 = vpop.f32.mrf.mxu0
        %v787 = vadd.f32 0.0, %v786
        %v788 = vpop.f32.mrf.mxu0
        %v789 = vadd.f32 0.0, %v788
        %790 = vmatmul.bf16.gmra.mxu0 %v719
        %v791 = vpop.f32.mrf.mxu0
        %v792 = vadd.f32 0.0, %v791
        %v793 = vpop.f32.mrf.mxu0
        %v794 = vadd.f32 0.0, %v793
        %795 = vmatmul.bf16.gmra.mxu0 %v722
        %v796 = vpop.f32.mrf.mxu0
        %v797 = vadd.f32 0.0, %v796
        %v798 = vpop.f32.mrf.mxu0
        %v799 = vadd.f32 0.0, %v798
        %800 = vmatmul.bf16.gmra.mxu0 %v725
        %v801 = vpop.f32.mrf.mxu0
        %v802 = vadd.f32 0.0, %v801
        %v803 = vpop.f32.mrf.mxu0
        %v804 = vadd.f32 0.0, %v803
        %805 = vmatmul.bf16.gmra.mxu0 %v728
        %v806 = vpop.f32.mrf.mxu0
        %v807 = vadd.f32 0.0, %v806
        %v808 = vpop.f32.mrf.mxu0
        %v809 = vadd.f32 0.0, %v808
        %810 = vmatmul.bf16.gmra.mxu0 %v731
        %v811 = vpop.f32.mrf.mxu0
        %v812 = vadd.f32 0.0, %v811
        %v813 = vpop.f32.mrf.mxu0
        %v814 = vadd.f32 0.0, %v813
        %815 = vmatmul.bf16.gmra.mxu0 %v734
        %v816 = vpop.f32.mrf.mxu0
        %v817 = vadd.f32 0.0, %v816
        %v818 = vpop.f32.mrf.mxu0
        %v819 = vadd.f32 0.0, %v818
        %820 = vmatmul.bf16.gmra.mxu0 %v737
        %v821 = vpop.f32.mrf.mxu0
        %v822 = vadd.f32 0.0, %v821
        %v823 = vpop.f32.mrf.mxu0
        %v824 = vadd.f32 0.0, %v823
        %825 = vmatmul.bf16.gmra.mxu0 %v740
        %v826 = vpop.f32.mrf.mxu0
        %v827 = vadd.f32 0.0, %v826
        %v828 = vpop.f32.mrf.mxu0
        %v829 = vadd.f32 0.0, %v828
        %830 = vmatmul.bf16.gmra.mxu0 %v743
        %v831 = vpop.f32.mrf.mxu0
        %v832 = vadd.f32 0.0, %v831
        %v833 = vpop.f32.mrf.mxu0
        %v834 = vadd.f32 0.0, %v833
        %835 = vmatmul.bf16.gmra.mxu0 %v746
        %v836 = vpop.f32.mrf.mxu0
        %v837 = vadd.f32 0.0, %v836
        %v838 = vpop.f32.mrf.mxu0
        %v839 = vadd.f32 0.0, %v838
        %840 = vdwg.mxu0
        %v873 = vunpack.c.l.b16 %v213
        %v874 = vunpack.c.l.b16 %v214
        %v875 = vunpack.c.l.b16 %v215
        %v876 = vunpack.c.l.b16 %v216
        %v877 = vunpack.c.l.b16 %v217
        %v878 = vunpack.c.l.b16 %v218
        %v879 = vunpack.c.l.b16 %v219
        %v880 = vunpack.c.l.b16 %v220
        %v881 = vunpack.c.l.b16 %v221
        %v882 = vunpack.c.l.b16 %v222
        %v883 = vunpack.c.l.b16 %v223
        %v884 = vunpack.c.l.b16 %v224
        %v885 = vunpack.c.l.b16 %v225
        %v886 = vunpack.c.l.b16 %v226
        %v887 = vunpack.c.l.b16 %v227
        %v888 = vunpack.c.l.b16 %v228
        %v889 = vunpack.c.l.b16 %v229
        %v890 = vunpack.c.l.b16 %v230
        %v891 = vunpack.c.l.b16 %v231
        %v892 = vunpack.c.l.b16 %v232
        %v893 = vunpack.c.l.b16 %v233
        %v894 = vunpack.c.l.b16 %v234
        %v895 = vunpack.c.l.b16 %v235
        %v896 = vunpack.c.l.b16 %v236
        %v897 = vunpack.c.l.b16 %v237
        %v898 = vunpack.c.l.b16 %v238
        %v899 = vunpack.c.l.b16 %v239
        %v900 = vunpack.c.l.b16 %v240
        %v901 = vunpack.c.l.b16 %v241
        %v902 = vunpack.c.l.b16 %v242
        %v903 = vunpack.c.l.b16 %v243
        %v904 = vunpack.c.l.b16 %v244
        %v905 = vpack.c.b16 %v874, %v873
        %v906 = vpack.c.b16 %v876, %v875
        %v907 = vpack.c.b16 %v878, %v877
        %v908 = vpack.c.b16 %v880, %v879
        %v909 = vpack.c.b16 %v882, %v881
        %v910 = vpack.c.b16 %v884, %v883
        %v911 = vpack.c.b16 %v886, %v885
        %v912 = vpack.c.b16 %v888, %v887
        %v913 = vpack.c.b16 %v890, %v889
        %v914 = vpack.c.b16 %v892, %v891
        %v915 = vpack.c.b16 %v894, %v893
        %v916 = vpack.c.b16 %v896, %v895
        %v917 = vpack.c.b16 %v898, %v897
        %v918 = vpack.c.b16 %v900, %v899
        %v919 = vpack.c.b16 %v902, %v901
        %v920 = vpack.c.b16 %v904, %v903
        %v922 = vsel %vm699, %v905, 0
        %v925 = vsel %vm699, %v906, 0
        %v928 = vsel %vm699, %v907, 0
        %v931 = vsel %vm699, %v908, 0
        %v934 = vsel %vm699, %v909, 0
        %v937 = vsel %vm699, %v910, 0
        %v940 = vsel %vm699, %v911, 0
        %v943 = vsel %vm699, %v912, 0
        %v946 = vsel %vm699, %v913, 0
        %v949 = vsel %vm699, %v914, 0
        %v952 = vsel %vm699, %v915, 0
        %v955 = vsel %vm699, %v916, 0
        %v958 = vsel %vm699, %v917, 0
        %v961 = vsel %vm699, %v918, 0
        %v964 = vsel %vm699, %v919, 0
        %v967 = vsel %vm699, %v920, 0
        %v970 = vsel %vm748, %v245, 0
        %972 = vmatpush.bf16.msra.mxu0 0
        %973 = vmatpush.bf16.msra.mxu0 0
        %974 = vmatpush.bf16.msra.mxu0 0
        %975 = vmatpush.bf16.msra.mxu0 0
        %976 = vmatpush.bf16.msra.mxu0 0
        %977 = vmatpush.bf16.msra.mxu0 0
        %978 = vmatpush.bf16.msra.mxu0 0
        %979 = vmatpush.bf16.msra.mxu0 %v970
        %980 = vmatmul.bf16.gmra.mxu0 %v922
        %v981 = vpop.f32.mrf.mxu0
        %v982 = vadd.f32 %v762, %v981
        %v983 = vpop.f32.mrf.mxu0
        %v984 = vadd.f32 %v764, %v983
        %985 = vmatmul.bf16.gmra.mxu0 %v925
        %v986 = vpop.f32.mrf.mxu0
        %v987 = vadd.f32 %v767, %v986
        %v988 = vpop.f32.mrf.mxu0
        %v989 = vadd.f32 %v769, %v988
        %990 = vmatmul.bf16.gmra.mxu0 %v928
        %v991 = vpop.f32.mrf.mxu0
        %v992 = vadd.f32 %v772, %v991
        %v993 = vpop.f32.mrf.mxu0
        %v994 = vadd.f32 %v774, %v993
        %995 = vmatmul.bf16.gmra.mxu0 %v931
        %v996 = vpop.f32.mrf.mxu0
        %v997 = vadd.f32 %v777, %v996
        %v998 = vpop.f32.mrf.mxu0
        %v999 = vadd.f32 %v779, %v998
        %1000 = vmatmul.bf16.gmra.mxu0 %v934
        %v1001 = vpop.f32.mrf.mxu0
        %v1002 = vadd.f32 %v782, %v1001
        %v1003 = vpop.f32.mrf.mxu0
        %v1004 = vadd.f32 %v784, %v1003
        %1005 = vmatmul.bf16.gmra.mxu0 %v937
        %v1006 = vpop.f32.mrf.mxu0
        %v1007 = vadd.f32 %v787, %v1006
        %v1008 = vpop.f32.mrf.mxu0
        %v1009 = vadd.f32 %v789, %v1008
        %1010 = vmatmul.bf16.gmra.mxu0 %v940
        %v1011 = vpop.f32.mrf.mxu0
        %v1012 = vadd.f32 %v792, %v1011
        %v1013 = vpop.f32.mrf.mxu0
        %v1014 = vadd.f32 %v794, %v1013
        %1015 = vmatmul.bf16.gmra.mxu0 %v943
        %v1016 = vpop.f32.mrf.mxu0
        %v1017 = vadd.f32 %v797, %v1016
        %v1018 = vpop.f32.mrf.mxu0
        %v1019 = vadd.f32 %v799, %v1018
        %1020 = vmatmul.bf16.gmra.mxu0 %v946
        %v1021 = vpop.f32.mrf.mxu0
        %v1022 = vadd.f32 %v802, %v1021
        %v1023 = vpop.f32.mrf.mxu0
        %v1024 = vadd.f32 %v804, %v1023
        %1025 = vmatmul.bf16.gmra.mxu0 %v949
        %v1026 = vpop.f32.mrf.mxu0
        %v1027 = vadd.f32 %v807, %v1026
        %v1028 = vpop.f32.mrf.mxu0
        %v1029 = vadd.f32 %v809, %v1028
        %1030 = vmatmul.bf16.gmra.mxu0 %v952
        %v1031 = vpop.f32.mrf.mxu0
        %v1032 = vadd.f32 %v812, %v1031
        %v1033 = vpop.f32.mrf.mxu0
        %v1034 = vadd.f32 %v814, %v1033
        %1035 = vmatmul.bf16.gmra.mxu0 %v955
        %v1036 = vpop.f32.mrf.mxu0
        %v1037 = vadd.f32 %v817, %v1036
        %v1038 = vpop.f32.mrf.mxu0
        %v1039 = vadd.f32 %v819, %v1038
        %1040 = vmatmul.bf16.gmra.mxu0 %v958
        %v1041 = vpop.f32.mrf.mxu0
        %v1042 = vadd.f32 %v822, %v1041
        %v1043 = vpop.f32.mrf.mxu0
        %v1044 = vadd.f32 %v824, %v1043
        %1045 = vmatmul.bf16.gmra.mxu0 %v961
        %v1046 = vpop.f32.mrf.mxu0
        %v1047 = vadd.f32 %v827, %v1046
        %v1048 = vpop.f32.mrf.mxu0
        %v1049 = vadd.f32 %v829, %v1048
        %1050 = vmatmul.bf16.gmra.mxu0 %v964
        %v1051 = vpop.f32.mrf.mxu0
        %v1052 = vadd.f32 %v832, %v1051
        %v1053 = vpop.f32.mrf.mxu0
        %v1054 = vadd.f32 %v834, %v1053
        %1055 = vmatmul.bf16.gmra.mxu0 %v967
        %v1056 = vpop.f32.mrf.mxu0
        %v1057 = vadd.f32 %v837, %v1056
        %v1058 = vpop.f32.mrf.mxu0
        %v1059 = vadd.f32 %v839, %v1058
        %1060 = vdwg.mxu0
        %v1061 = vld [vmem:[%s211] sm:$0xe]
        %v1062 = vld [vmem:[%s211 + $0xc] sm:$0xe]
        %v1063 = vld [vmem:[%s211 + $0x18] sm:$0xe]
        %v1064 = vld [vmem:[%s211 + $0x24] sm:$0xe]
        %v1065 = vld [vmem:[%s211 + $0x30] sm:$0xe]
        %v1066 = vld [vmem:[%s211 + $0x3c] sm:$0xe]
        %v1067 = vld [vmem:[%s211 + $0x48] sm:$0xe]
        %v1068 = vld [vmem:[%s211 + $0x54] sm:$0xe]
        %v1069 = vld [vmem:[%s211 + $0x60] sm:$0xe]
        %v1070 = vld [vmem:[%s211 + $0x6c] sm:$0xe]
        %v1071 = vld [vmem:[%s211 + $0x78] sm:$0xe]
        %v1072 = vld [vmem:[%s211 + $0x84] sm:$0xe]
        %v1073 = vld [vmem:[%s211 + $0x90] sm:$0xe]
        %v1074 = vld [vmem:[%s211 + $0x9c] sm:$0xe]
        %v1075 = vld [vmem:[%s211 + $0xa8] sm:$0xe]
        %v1076 = vld [vmem:[%s211 + $0xb4] sm:$0xe]
        %vm1109 = vcmask 1042432
        %vm1110 = vcmask 1046532
        %vm1111 = vmor %vm1109, %vm1110
        %v1112 = vrot.slane %v1061, 5
        %v1113 = vrot.slane %v1112, 4
        %v1114 = vrot.slane %v214, 5
        %v1115 = vsel %vm1111, %v1113, %v1114
        %v1116 = vrot.slane %v1114, 4
        %v1117 = vrot.slane %v246, 5
        %v1118 = vsel %vm1111, %v1116, %v1117
        %v1119 = vrot.slane %v1062, 5
        %v1120 = vrot.slane %v1119, 4
        %v1121 = vrot.slane %v216, 5
        %v1122 = vsel %vm1111, %v1120, %v1121
        %v1123 = vrot.slane %v1121, 4
        %v1124 = vrot.slane %v247, 5
        %v1125 = vsel %vm1111, %v1123, %v1124
        %v1126 = vrot.slane %v1063, 5
        %v1127 = vrot.slane %v1126, 4
        %v1128 = vrot.slane %v218, 5
        %v1129 = vsel %vm1111, %v1127, %v1128
        %v1130 = vrot.slane %v1128, 4
        %v1131 = vrot.slane %v248, 5
        %v1132 = vsel %vm1111, %v1130, %v1131
        %v1133 = vrot.slane %v1064, 5
        %v1134 = vrot.slane %v1133, 4
        %v1135 = vrot.slane %v220, 5
        %v1136 = vsel %vm1111, %v1134, %v1135
        %v1137 = vrot.slane %v1135, 4
        %v1138 = vrot.slane %v249, 5
        %v1139 = vsel %vm1111, %v1137, %v1138
        %v1140 = vrot.slane %v1065, 5
        %v1141 = vrot.slane %v1140, 4
        %v1142 = vrot.slane %v222, 5
        %v1143 = vsel %vm1111, %v1141, %v1142
        %v1144 = vrot.slane %v1142, 4
        %v1145 = vrot.slane %v250, 5
        %v1146 = vsel %vm1111, %v1144, %v1145
        %v1147 = vrot.slane %v1066, 5
        %v1148 = vrot.slane %v1147, 4
        %v1149 = vrot.slane %v224, 5
        %v1150 = vsel %vm1111, %v1148, %v1149
        %v1151 = vrot.slane %v1149, 4
        %v1152 = vrot.slane %v251, 5
        %v1153 = vsel %vm1111, %v1151, %v1152
        %v1154 = vrot.slane %v1067, 5
        %v1155 = vrot.slane %v1154, 4
        %v1156 = vrot.slane %v226, 5
        %v1157 = vsel %vm1111, %v1155, %v1156
        %v1158 = vrot.slane %v1156, 4
        %v1159 = vrot.slane %v252, 5
        %v1160 = vsel %vm1111, %v1158, %v1159
        %v1161 = vrot.slane %v1068, 5
        %v1162 = vrot.slane %v1161, 4
        %v1163 = vrot.slane %v228, 5
        %v1164 = vsel %vm1111, %v1162, %v1163
        %v1165 = vrot.slane %v1163, 4
        %v1166 = vrot.slane %v253, 5
        %v1167 = vsel %vm1111, %v1165, %v1166
        %v1168 = vrot.slane %v1069, 5
        %v1169 = vrot.slane %v1168, 4
        %v1170 = vrot.slane %v230, 5
        %v1171 = vsel %vm1111, %v1169, %v1170
        %v1172 = vrot.slane %v1170, 4
        %v1173 = vrot.slane %v254, 5
        %v1174 = vsel %vm1111, %v1172, %v1173
        %v1175 = vrot.slane %v1070, 5
        %v1176 = vrot.slane %v1175, 4
        %v1177 = vrot.slane %v232, 5
        %v1178 = vsel %vm1111, %v1176, %v1177
        %v1179 = vrot.slane %v1177, 4
        %v1180 = vrot.slane %v255, 5
        %v1181 = vsel %vm1111, %v1179, %v1180
        %v1182 = vrot.slane %v1071, 5
        %v1183 = vrot.slane %v1182, 4
        %v1184 = vrot.slane %v234, 5
        %v1185 = vsel %vm1111, %v1183, %v1184
        %v1186 = vrot.slane %v1184, 4
        %v1187 = vrot.slane %v256, 5
        %v1188 = vsel %vm1111, %v1186, %v1187
        %v1189 = vrot.slane %v1072, 5
        %v1190 = vrot.slane %v1189, 4
        %v1191 = vrot.slane %v236, 5
        %v1192 = vsel %vm1111, %v1190, %v1191
        %v1193 = vrot.slane %v1191, 4
        %v1194 = vrot.slane %v257, 5
        %v1195 = vsel %vm1111, %v1193, %v1194
        %v1196 = vrot.slane %v1073, 5
        %v1197 = vrot.slane %v1196, 4
        %v1198 = vrot.slane %v238, 5
        %v1199 = vsel %vm1111, %v1197, %v1198
        %v1200 = vrot.slane %v1198, 4
        %v1201 = vrot.slane %v258, 5
        %v1202 = vsel %vm1111, %v1200, %v1201
        %v1203 = vrot.slane %v1074, 5
        %v1204 = vrot.slane %v1203, 4
        %v1205 = vrot.slane %v240, 5
        %v1206 = vsel %vm1111, %v1204, %v1205
        %v1207 = vrot.slane %v1205, 4
        %v1208 = vrot.slane %v259, 5
        %v1209 = vsel %vm1111, %v1207, %v1208
        %v1210 = vrot.slane %v1075, 5
        %v1211 = vrot.slane %v1210, 4
        %v1212 = vrot.slane %v242, 5
        %v1213 = vsel %vm1111, %v1211, %v1212
        %v1214 = vrot.slane %v1212, 4
        %v1215 = vrot.slane %v260, 5
        %v1216 = vsel %vm1111, %v1214, %v1215
        %v1217 = vrot.slane %v1076, 5
        %v1218 = vrot.slane %v1217, 4
        %v1219 = vrot.slane %v244, 5
        %v1220 = vsel %vm1111, %v1218, %v1219
        %v1221 = vrot.slane %v1219, 4
        %v1222 = vrot.slane %v261, 5
        %v1223 = vsel %vm1111, %v1221, %v1222
        %s1224 = scalar_lea.vmem %s1, 4
        %v1225 = vld [vmem:[%s1224] sm:$0x3]
        %v1226 = vunpack.c.l.b16 %v1115
        %v1227 = vunpack.c.l.b16 %v1118
        %v1228 = vunpack.c.l.b16 %v1122
        %v1229 = vunpack.c.l.b16 %v1125
        %v1230 = vunpack.c.l.b16 %v1129
        %v1231 = vunpack.c.l.b16 %v1132
        %v1232 = vunpack.c.l.b16 %v1136
        %v1233 = vunpack.c.l.b16 %v1139
        %v1234 = vunpack.c.l.b16 %v1143
        %v1235 = vunpack.c.l.b16 %v1146
        %v1236 = vunpack.c.l.b16 %v1150
        %v1237 = vunpack.c.l.b16 %v1153
        %v1238 = vunpack.c.l.b16 %v1157
        %v1239 = vunpack.c.l.b16 %v1160
        %v1240 = vunpack.c.l.b16 %v1164
        %v1241 = vunpack.c.l.b16 %v1167
        %v1242 = vunpack.c.l.b16 %v1171
        %v1243 = vunpack.c.l.b16 %v1174
        %v1244 = vunpack.c.l.b16 %v1178
        %v1245 = vunpack.c.l.b16 %v1181
        %v1246 = vunpack.c.l.b16 %v1185
        %v1247 = vunpack.c.l.b16 %v1188
        %v1248 = vunpack.c.l.b16 %v1192
        %v1249 = vunpack.c.l.b16 %v1195
        %v1250 = vunpack.c.l.b16 %v1199
        %v1251 = vunpack.c.l.b16 %v1202
        %v1252 = vunpack.c.l.b16 %v1206
        %v1253 = vunpack.c.l.b16 %v1209
        %v1254 = vunpack.c.l.b16 %v1213
        %v1255 = vunpack.c.l.b16 %v1216
        %v1256 = vunpack.c.l.b16 %v1220
        %v1257 = vunpack.c.l.b16 %v1223
        %v1258 = vpack.c.b16 %v1227, %v1226
        %v1259 = vpack.c.b16 %v1229, %v1228
        %v1260 = vpack.c.b16 %v1231, %v1230
        %v1261 = vpack.c.b16 %v1233, %v1232
        %v1262 = vpack.c.b16 %v1235, %v1234
        %v1263 = vpack.c.b16 %v1237, %v1236
        %v1264 = vpack.c.b16 %v1239, %v1238
        %v1265 = vpack.c.b16 %v1241, %v1240
        %v1266 = vpack.c.b16 %v1243, %v1242
        %v1267 = vpack.c.b16 %v1245, %v1244
        %v1268 = vpack.c.b16 %v1247, %v1246
        %v1269 = vpack.c.b16 %v1249, %v1248
        %v1270 = vpack.c.b16 %v1251, %v1250
        %v1271 = vpack.c.b16 %v1253, %v1252
        %v1272 = vpack.c.b16 %v1255, %v1254
        %v1273 = vpack.c.b16 %v1257, %v1256
        %v1275 = vsel %vm699, %v1258, 0
        %v1278 = vsel %vm699, %v1259, 0
        %v1281 = vsel %vm699, %v1260, 0
        %v1284 = vsel %vm699, %v1261, 0
        %v1287 = vsel %vm699, %v1262, 0
        %v1290 = vsel %vm699, %v1263, 0
        %v1293 = vsel %vm699, %v1264, 0
        %v1296 = vsel %vm699, %v1265, 0
        %v1299 = vsel %vm699, %v1266, 0
        %v1302 = vsel %vm699, %v1267, 0
        %v1305 = vsel %vm699, %v1268, 0
        %v1308 = vsel %vm699, %v1269, 0
        %v1311 = vsel %vm699, %v1270, 0
        %v1314 = vsel %vm699, %v1271, 0
        %v1317 = vsel %vm699, %v1272, 0
        %v1320 = vsel %vm699, %v1273, 0
        %v1323 = vsel %vm748, %v1225, 0
        %1325 = vmatpush.bf16.msra.mxu0 0
        %1326 = vmatpush.bf16.msra.mxu0 0
        %1327 = vmatpush.bf16.msra.mxu0 0
        %1328 = vmatpush.bf16.msra.mxu0 0
        %1329 = vmatpush.bf16.msra.mxu0 0
        %1330 = vmatpush.bf16.msra.mxu0 0
        %1331 = vmatpush.bf16.msra.mxu0 0
        %1332 = vmatpush.bf16.msra.mxu0 %v1323
        %1333 = vmatmul.bf16.gmra.mxu0 %v1275
        %v1334 = vpop.f32.mrf.mxu0
        %v1335 = vadd.f32 0.0, %v1334
        %v1336 = vpop.f32.mrf.mxu0
        %v1337 = vadd.f32 0.0, %v1336
        %1338 = vmatmul.bf16.gmra.mxu0 %v1278
        %v1339 = vpop.f32.mrf.mxu0
        %v1340 = vadd.f32 0.0, %v1339
        %v1341 = vpop.f32.mrf.mxu0
        %v1342 = vadd.f32 0.0, %v1341
        %1343 = vmatmul.bf16.gmra.mxu0 %v1281
        %v1344 = vpop.f32.mrf.mxu0
        %v1345 = vadd.f32 0.0, %v1344
        %v1346 = vpop.f32.mrf.mxu0
        %v1347 = vadd.f32 0.0, %v1346
        %1348 = vmatmul.bf16.gmra.mxu0 %v1284
        %v1349 = vpop.f32.mrf.mxu0
        %v1350 = vadd.f32 0.0, %v1349
        %v1351 = vpop.f32.mrf.mxu0
        %v1352 = vadd.f32 0.0, %v1351
        %1353 = vmatmul.bf16.gmra.mxu0 %v1287
        %v1354 = vpop.f32.mrf.mxu0
        %v1355 = vadd.f32 0.0, %v1354
        %v1356 = vpop.f32.mrf.mxu0
        %v1357 = vadd.f32 0.0, %v1356
        %1358 = vmatmul.bf16.gmra.mxu0 %v1290
        %v1359 = vpop.f32.mrf.mxu0
        %v1360 = vadd.f32 0.0, %v1359
        %v1361 = vpop.f32.mrf.mxu0
        %v1362 = vadd.f32 0.0, %v1361
        %1363 = vmatmul.bf16.gmra.mxu0 %v1293
        %v1364 = vpop.f32.mrf.mxu0
        %v1365 = vadd.f32 0.0, %v1364
        %v1366 = vpop.f32.mrf.mxu0
        %v1367 = vadd.f32 0.0, %v1366
        %1368 = vmatmul.bf16.gmra.mxu0 %v1296
        %v1369 = vpop.f32.mrf.mxu0
        %v1370 = vadd.f32 0.0, %v1369
        %v1371 = vpop.f32.mrf.mxu0
        %v1372 = vadd.f32 0.0, %v1371
        %1373 = vmatmul.bf16.gmra.mxu0 %v1299
        %v1374 = vpop.f32.mrf.mxu0
        %v1375 = vadd.f32 0.0, %v1374
        %v1376 = vpop.f32.mrf.mxu0
        %v1377 = vadd.f32 0.0, %v1376
        %1378 = vmatmul.bf16.gmra.mxu0 %v1302
        %v1379 = vpop.f32.mrf.mxu0
        %v1380 = vadd.f32 0.0, %v1379
        %v1381 = vpop.f32.mrf.mxu0
        %v1382 = vadd.f32 0.0, %v1381
        %1383 = vmatmul.bf16.gmra.mxu0 %v1305
        %v1384 = vpop.f32.mrf.mxu0
        %v1385 = vadd.f32 0.0, %v1384
        %v1386 = vpop.f32.mrf.mxu0
        %v1387 = vadd.f32 0.0, %v1386
        %1388 = vmatmul.bf16.gmra.mxu0 %v1308
        %v1389 = vpop.f32.mrf.mxu0
        %v1390 = vadd.f32 0.0, %v1389
        %v1391 = vpop.f32.mrf.mxu0
        %v1392 = vadd.f32 0.0, %v1391
        %1393 = vmatmul.bf16.gmra.mxu0 %v1311
        %v1394 = vpop.f32.mrf.mxu0
        %v1395 = vadd.f32 0.0, %v1394
        %v1396 = vpop.f32.mrf.mxu0
        %v1397 = vadd.f32 0.0, %v1396
        %1398 = vmatmul.bf16.gmra.mxu0 %v1314
        %v1399 = vpop.f32.mrf.mxu0
        %v1400 = vadd.f32 0.0, %v1399
        %v1401 = vpop.f32.mrf.mxu0
        %v1402 = vadd.f32 0.0, %v1401
        %1403 = vmatmul.bf16.gmra.mxu0 %v1317
        %v1404 = vpop.f32.mrf.mxu0
        %v1405 = vadd.f32 0.0, %v1404
        %v1406 = vpop.f32.mrf.mxu0
        %v1407 = vadd.f32 0.0, %v1406
        %1408 = vmatmul.bf16.gmra.mxu0 %v1320
        %v1409 = vpop.f32.mrf.mxu0
        %v1410 = vadd.f32 0.0, %v1409
        %v1411 = vpop.f32.mrf.mxu0
        %v1412 = vadd.f32 0.0, %v1411
        %1413 = vdwg.mxu0
        %v1414 = vadd.f32 %v982, %v1335
        %v1415 = vadd.f32 %v984, %v1337
        %v1416 = vadd.f32 %v987, %v1340
        %v1417 = vadd.f32 %v989, %v1342
        %v1418 = vadd.f32 %v992, %v1345
        %v1419 = vadd.f32 %v994, %v1347
        %v1420 = vadd.f32 %v997, %v1350
        %v1421 = vadd.f32 %v999, %v1352
        %v1422 = vadd.f32 %v1002, %v1355
        %v1423 = vadd.f32 %v1004, %v1357
        %v1424 = vadd.f32 %v1007, %v1360
        %v1425 = vadd.f32 %v1009, %v1362
        %v1426 = vadd.f32 %v1012, %v1365
        %v1427 = vadd.f32 %v1014, %v1367
        %v1428 = vadd.f32 %v1017, %v1370
        %v1429 = vadd.f32 %v1019, %v1372
        %v1430 = vadd.f32 %v1022, %v1375
        %v1431 = vadd.f32 %v1024, %v1377
        %v1432 = vadd.f32 %v1027, %v1380
        %v1433 = vadd.f32 %v1029, %v1382
        %v1434 = vadd.f32 %v1032, %v1385
        %v1435 = vadd.f32 %v1034, %v1387
        %v1436 = vadd.f32 %v1037, %v1390
        %v1437 = vadd.f32 %v1039, %v1392
        %v1438 = vadd.f32 %v1042, %v1395
        %v1439 = vadd.f32 %v1044, %v1397
        %v1440 = vadd.f32 %v1047, %v1400
        %v1441 = vadd.f32 %v1049, %v1402
        %v1442 = vadd.f32 %v1052, %v1405
        %v1443 = vadd.f32 %v1054, %v1407
        %v1444 = vadd.f32 %v1057, %v1410
        %v1445 = vadd.f32 %v1059, %v1412
        %s1446 = scalar_lea.vmem %s211, 12
        %v1447 = vld [vmem:[%s1446] sm:$0xf]
        %v1448 = vld [vmem:[%s1446 + $0x4] sm:$0xf]
        %v1449 = vld [vmem:[%s1446 + $0xc] sm:$0xf]
        %v1450 = vld [vmem:[%s1446 + $0x10] sm:$0xf]
        %v1451 = vld [vmem:[%s1446 + $0x18] sm:$0xf]
        %v1452 = vld [vmem:[%s1446 + $0x1c] sm:$0xf]
        %v1453 = vld [vmem:[%s1446 + $0x24] sm:$0xf]
        %v1454 = vld [vmem:[%s1446 + $0x28] sm:$0xf]
        %v1455 = vld [vmem:[%s1446 + $0x30] sm:$0xf]
        %v1456 = vld [vmem:[%s1446 + $0x34] sm:$0xf]
        %v1457 = vld [vmem:[%s1446 + $0x3c] sm:$0xf]
        %v1458 = vld [vmem:[%s1446 + $0x40] sm:$0xf]
        %v1459 = vld [vmem:[%s1446 + $0x48] sm:$0xf]
        %v1460 = vld [vmem:[%s1446 + $0x4c] sm:$0xf]
        %v1461 = vld [vmem:[%s1446 + $0x54] sm:$0xf]
        %v1462 = vld [vmem:[%s1446 + $0x58] sm:$0xf]
        %v1463 = vld [vmem:[%s1446 + $0x60] sm:$0xf]
        %v1464 = vld [vmem:[%s1446 + $0x64] sm:$0xf]
        %v1465 = vld [vmem:[%s1446 + $0x6c] sm:$0xf]
        %v1466 = vld [vmem:[%s1446 + $0x70] sm:$0xf]
        %v1467 = vld [vmem:[%s1446 + $0x78] sm:$0xf]
        %v1468 = vld [vmem:[%s1446 + $0x7c] sm:$0xf]
        %v1469 = vld [vmem:[%s1446 + $0x84] sm:$0xf]
        %v1470 = vld [vmem:[%s1446 + $0x88] sm:$0xf]
        %v1471 = vld [vmem:[%s1446 + $0x90] sm:$0xf]
        %v1472 = vld [vmem:[%s1446 + $0x94] sm:$0xf]
        %v1473 = vld [vmem:[%s1446 + $0x9c] sm:$0xf]
        %v1474 = vld [vmem:[%s1446 + $0xa0] sm:$0xf]
        %v1475 = vld [vmem:[%s1446 + $0xa8] sm:$0xf]
        %v1476 = vld [vmem:[%s1446 + $0xac] sm:$0xf]
        %v1477 = vld [vmem:[%s1446 + $0xb4] sm:$0xf]
        %v1478 = vld [vmem:[%s1446 + $0xb8] sm:$0xf]
        %s1479 = scalar_lea.vmem %s1, 6
        %v1480 = vld [vmem:[%s1479] sm:$0x3]
        %v1513 = vunpack.c.l.b16 %v1447
        %v1514 = vunpack.c.l.b16 %v1448
        %v1515 = vunpack.c.l.b16 %v1449
        %v1516 = vunpack.c.l.b16 %v1450
        %v1517 = vunpack.c.l.b16 %v1451
        %v1518 = vunpack.c.l.b16 %v1452
        %v1519 = vunpack.c.l.b16 %v1453
        %v1520 = vunpack.c.l.b16 %v1454
        %v1521 = vunpack.c.l.b16 %v1455
        %v1522 = vunpack.c.l.b16 %v1456
        %v1523 = vunpack.c.l.b16 %v1457
        %v1524 = vunpack.c.l.b16 %v1458
        %v1525 = vunpack.c.l.b16 %v1459
        %v1526 = vunpack.c.l.b16 %v1460
        %v1527 = vunpack.c.l.b16 %v1461
        %v1528 = vunpack.c.l.b16 %v1462
        %v1529 = vunpack.c.l.b16 %v1463
        %v1530 = vunpack.c.l.b16 %v1464
        %v1531 = vunpack.c.l.b16 %v1465
        %v1532 = vunpack.c.l.b16 %v1466
        %v1533 = vunpack.c.l.b16 %v1467
        %v1534 = vunpack.c.l.b16 %v1468
        %v1535 = vunpack.c.l.b16 %v1469
        %v1536 = vunpack.c.l.b16 %v1470
        %v1537 = vunpack.c.l.b16 %v1471
        %v1538 = vunpack.c.l.b16 %v1472
        %v1539 = vunpack.c.l.b16 %v1473
        %v1540 = vunpack.c.l.b16 %v1474
        %v1541 = vunpack.c.l.b16 %v1475
        %v1542 = vunpack.c.l.b16 %v1476
        %v1543 = vunpack.c.l.b16 %v1477
        %v1544 = vunpack.c.l.b16 %v1478
        %v1545 = vpack.c.b16 %v1514, %v1513
        %v1546 = vpack.c.b16 %v1516, %v1515
        %v1547 = vpack.c.b16 %v1518, %v1517
        %v1548 = vpack.c.b16 %v1520, %v1519
        %v1549 = vpack.c.b16 %v1522, %v1521
        %v1550 = vpack.c.b16 %v1524, %v1523
        %v1551 = vpack.c.b16 %v1526, %v1525
        %v1552 = vpack.c.b16 %v1528, %v1527
        %v1553 = vpack.c.b16 %v1530, %v1529
        %v1554 = vpack.c.b16 %v1532, %v1531
        %v1555 = vpack.c.b16 %v1534, %v1533
        %v1556 = vpack.c.b16 %v1536, %v1535
        %v1557 = vpack.c.b16 %v1538, %v1537
        %v1558 = vpack.c.b16 %v1540, %v1539
        %v1559 = vpack.c.b16 %v1542, %v1541
        %v1560 = vpack.c.b16 %v1544, %v1543
        %v1562 = vsel %vm699, %v1545, 0
        %v1565 = vsel %vm699, %v1546, 0
        %v1568 = vsel %vm699, %v1547, 0
        %v1571 = vsel %vm699, %v1548, 0
        %v1574 = vsel %vm699, %v1549, 0
        %v1577 = vsel %vm699, %v1550, 0
        %v1580 = vsel %vm699, %v1551, 0
        %v1583 = vsel %vm699, %v1552, 0
        %v1586 = vsel %vm699, %v1553, 0
        %v1589 = vsel %vm699, %v1554, 0
        %v1592 = vsel %vm699, %v1555, 0
        %v1595 = vsel %vm699, %v1556, 0
        %v1598 = vsel %vm699, %v1557, 0
        %v1601 = vsel %vm699, %v1558, 0
        %v1604 = vsel %vm699, %v1559, 0
        %v1607 = vsel %vm699, %v1560, 0
        %v1610 = vsel %vm748, %v1480, 0
        %1612 = vmatpush.bf16.msra.mxu0 0
        %1613 = vmatpush.bf16.msra.mxu0 0
        %1614 = vmatpush.bf16.msra.mxu0 0
        %1615 = vmatpush.bf16.msra.mxu0 0
        %1616 = vmatpush.bf16.msra.mxu0 0
        %1617 = vmatpush.bf16.msra.mxu0 0
        %1618 = vmatpush.bf16.msra.mxu0 0
        %1619 = vmatpush.bf16.msra.mxu0 %v1610
        %1620 = vmatmul.bf16.gmra.mxu0 %v1562
        %v1621 = vpop.f32.mrf.mxu0
        %v1622 = vadd.f32 0.0, %v1621
        %v1623 = vpop.f32.mrf.mxu0
        %v1624 = vadd.f32 0.0, %v1623
        %1625 = vmatmul.bf16.gmra.mxu0 %v1565
        %v1626 = vpop.f32.mrf.mxu0
        %v1627 = vadd.f32 0.0, %v1626
        %v1628 = vpop.f32.mrf.mxu0
        %v1629 = vadd.f32 0.0, %v1628
        %1630 = vmatmul.bf16.gmra.mxu0 %v1568
        %v1631 = vpop.f32.mrf.mxu0
        %v1632 = vadd.f32 0.0, %v1631
        %v1633 = vpop.f32.mrf.mxu0
        %v1634 = vadd.f32 0.0, %v1633
        %1635 = vmatmul.bf16.gmra.mxu0 %v1571
        %v1636 = vpop.f32.mrf.mxu0
        %v1637 = vadd.f32 0.0, %v1636
        %v1638 = vpop.f32.mrf.mxu0
        %v1639 = vadd.f32 0.0, %v1638
        %1640 = vmatmul.bf16.gmra.mxu0 %v1574
        %v1641 = vpop.f32.mrf.mxu0
        %v1642 = vadd.f32 0.0, %v1641
        %v1643 = vpop.f32.mrf.mxu0
        %v1644 = vadd.f32 0.0, %v1643
        %1645 = vmatmul.bf16.gmra.mxu0 %v1577
        %v1646 = vpop.f32.mrf.mxu0
        %v1647 = vadd.f32 0.0, %v1646
        %v1648 = vpop.f32.mrf.mxu0
        %v1649 = vadd.f32 0.0, %v1648
        %1650 = vmatmul.bf16.gmra.mxu0 %v1580
        %v1651 = vpop.f32.mrf.mxu0
        %v1652 = vadd.f32 0.0, %v1651
        %v1653 = vpop.f32.mrf.mxu0
        %v1654 = vadd.f32 0.0, %v1653
        %1655 = vmatmul.bf16.gmra.mxu0 %v1583
        %v1656 = vpop.f32.mrf.mxu0
        %v1657 = vadd.f32 0.0, %v1656
        %v1658 = vpop.f32.mrf.mxu0
        %v1659 = vadd.f32 0.0, %v1658
        %1660 = vmatmul.bf16.gmra.mxu0 %v1586
        %v1661 = vpop.f32.mrf.mxu0
        %v1662 = vadd.f32 0.0, %v1661
        %v1663 = vpop.f32.mrf.mxu0
        %v1664 = vadd.f32 0.0, %v1663
        %1665 = vmatmul.bf16.gmra.mxu0 %v1589
        %v1666 = vpop.f32.mrf.mxu0
        %v1667 = vadd.f32 0.0, %v1666
        %v1668 = vpop.f32.mrf.mxu0
        %v1669 = vadd.f32 0.0, %v1668
        %1670 = vmatmul.bf16.gmra.mxu0 %v1592
        %v1671 = vpop.f32.mrf.mxu0
        %v1672 = vadd.f32 0.0, %v1671
        %v1673 = vpop.f32.mrf.mxu0
        %v1674 = vadd.f32 0.0, %v1673
        %1675 = vmatmul.bf16.gmra.mxu0 %v1595
        %v1676 = vpop.f32.mrf.mxu0
        %v1677 = vadd.f32 0.0, %v1676
        %v1678 = vpop.f32.mrf.mxu0
        %v1679 = vadd.f32 0.0, %v1678
        %1680 = vmatmul.bf16.gmra.mxu0 %v1598
        %v1681 = vpop.f32.mrf.mxu0
        %v1682 = vadd.f32 0.0, %v1681
        %v1683 = vpop.f32.mrf.mxu0
        %v1684 = vadd.f32 0.0, %v1683
        %1685 = vmatmul.bf16.gmra.mxu0 %v1601
        %v1686 = vpop.f32.mrf.mxu0
        %v1687 = vadd.f32 0.0, %v1686
        %v1688 = vpop.f32.mrf.mxu0
        %v1689 = vadd.f32 0.0, %v1688
        %1690 = vmatmul.bf16.gmra.mxu0 %v1604
        %v1691 = vpop.f32.mrf.mxu0
        %v1692 = vadd.f32 0.0, %v1691
        %v1693 = vpop.f32.mrf.mxu0
        %v1694 = vadd.f32 0.0, %v1693
        %1695 = vmatmul.bf16.gmra.mxu0 %v1607
        %v1696 = vpop.f32.mrf.mxu0
        %v1697 = vadd.f32 0.0, %v1696
        %v1698 = vpop.f32.mrf.mxu0
        %v1699 = vadd.f32 0.0, %v1698
        %1700 = vdwg.mxu0
        %v1701 = vadd.f32 %v1414, %v1622
        %v1702 = vadd.f32 %v1415, %v1624
        %v1703 = vadd.f32 %v1416, %v1627
        %v1704 = vadd.f32 %v1417, %v1629
        %v1705 = vadd.f32 %v1418, %v1632
        %v1706 = vadd.f32 %v1419, %v1634
        %v1707 = vadd.f32 %v1420, %v1637
        %v1708 = vadd.f32 %v1421, %v1639
        %v1709 = vadd.f32 %v1422, %v1642
        %v1710 = vadd.f32 %v1423, %v1644
        %v1711 = vadd.f32 %v1424, %v1647
        %v1712 = vadd.f32 %v1425, %v1649
        %v1713 = vadd.f32 %v1426, %v1652
        %v1714 = vadd.f32 %v1427, %v1654
        %v1715 = vadd.f32 %v1428, %v1657
        %v1716 = vadd.f32 %v1429, %v1659
        %v1717 = vadd.f32 %v1430, %v1662
        %v1718 = vadd.f32 %v1431, %v1664
        %v1719 = vadd.f32 %v1432, %v1667
        %v1720 = vadd.f32 %v1433, %v1669
        %v1721 = vadd.f32 %v1434, %v1672
        %v1722 = vadd.f32 %v1435, %v1674
        %v1723 = vadd.f32 %v1436, %v1677
        %v1724 = vadd.f32 %v1437, %v1679
        %v1725 = vadd.f32 %v1438, %v1682
        %v1726 = vadd.f32 %v1439, %v1684
        %v1727 = vadd.f32 %v1440, %v1687
        %v1728 = vadd.f32 %v1441, %v1689
        %v1729 = vadd.f32 %v1442, %v1692
        %v1730 = vadd.f32 %v1443, %v1694
        %v1731 = vadd.f32 %v1444, %v1697
        %v1732 = vadd.f32 %v1445, %v1699
        %v1733 = vld [vmem:[%s1446] sm:$0xf]
        %v1734 = vld [vmem:[%s1446 + $0x4] sm:$0xf]
        %v1735 = vld [vmem:[%s1446 + $0x8] sm:$0x1]
        %v1736 = vld [vmem:[%s1446 + $0xc] sm:$0xf]
        %v1737 = vld [vmem:[%s1446 + $0x10] sm:$0xf]
        %v1738 = vld [vmem:[%s1446 + $0x14] sm:$0x1]
        %v1739 = vld [vmem:[%s1446 + $0x18] sm:$0xf]
        %v1740 = vld [vmem:[%s1446 + $0x1c] sm:$0xf]
        %v1741 = vld [vmem:[%s1446 + $0x20] sm:$0x1]
        %v1742 = vld [vmem:[%s1446 + $0x24] sm:$0xf]
        %v1743 = vld [vmem:[%s1446 + $0x28] sm:$0xf]
        %v1744 = vld [vmem:[%s1446 + $0x2c] sm:$0x1]
        %v1745 = vld [vmem:[%s1446 + $0x30] sm:$0xf]
        %v1746 = vld [vmem:[%s1446 + $0x34] sm:$0xf]
        %v1747 = vld [vmem:[%s1446 + $0x38] sm:$0x1]
        %v1748 = vld [vmem:[%s1446 + $0x3c] sm:$0xf]
        %v1749 = vld [vmem:[%s1446 + $0x40] sm:$0xf]
        %v1750 = vld [vmem:[%s1446 + $0x44] sm:$0x1]
        %v1751 = vld [vmem:[%s1446 + $0x48] sm:$0xf]
        %v1752 = vld [vmem:[%s1446 + $0x4c] sm:$0xf]
        %v1753 = vld [vmem:[%s1446 + $0x50] sm:$0x1]
        %v1754 = vld [vmem:[%s1446 + $0x54] sm:$0xf]
        %v1755 = vld [vmem:[%s1446 + $0x58] sm:$0xf]
        %v1756 = vld [vmem:[%s1446 + $0x5c] sm:$0x1]
        %v1757 = vld [vmem:[%s1446 + $0x60] sm:$0xf]
        %v1758 = vld [vmem:[%s1446 + $0x64] sm:$0xf]
        %v1759 = vld [vmem:[%s1446 + $0x68] sm:$0x1]
        %v1760 = vld [vmem:[%s1446 + $0x6c] sm:$0xf]
        %v1761 = vld [vmem:[%s1446 + $0x70] sm:$0xf]
        %v1762 = vld [vmem:[%s1446 + $0x74] sm:$0x1]
        %v1763 = vld [vmem:[%s1446 + $0x78] sm:$0xf]
        %v1764 = vld [vmem:[%s1446 + $0x7c] sm:$0xf]
        %v1765 = vld [vmem:[%s1446 + $0x80] sm:$0x1]
        %v1766 = vld [vmem:[%s1446 + $0x84] sm:$0xf]
        %v1767 = vld [vmem:[%s1446 + $0x88] sm:$0xf]
        %v1768 = vld [vmem:[%s1446 + $0x8c] sm:$0x1]
        %v1769 = vld [vmem:[%s1446 + $0x90] sm:$0xf]
        %v1770 = vld [vmem:[%s1446 + $0x94] sm:$0xf]
        %v1771 = vld [vmem:[%s1446 + $0x98] sm:$0x1]
        %v1772 = vld [vmem:[%s1446 + $0x9c] sm:$0xf]
        %v1773 = vld [vmem:[%s1446 + $0xa0] sm:$0xf]
        %v1774 = vld [vmem:[%s1446 + $0xa4] sm:$0x1]
        %v1775 = vld [vmem:[%s1446 + $0xa8] sm:$0xf]
        %v1776 = vld [vmem:[%s1446 + $0xac] sm:$0xf]
        %v1777 = vld [vmem:[%s1446 + $0xb0] sm:$0x1]
        %v1778 = vld [vmem:[%s1446 + $0xb4] sm:$0xf]
        %v1779 = vld [vmem:[%s1446 + $0xb8] sm:$0xf]
        %v1780 = vld [vmem:[%s1446 + $0xbc] sm:$0x1]
        %v1782 = vshrl.u32 %v1733, 16
        %v1784 = vrot.slane %v1782, 4
        %v1785 = vshll.u32 %v1733, 16
        %v1787 = vrot.slane %v1785, 5
        %v1788 = vor.u32 %v1784, %v1787
        %v1789 = vrot.slane %v1788, 4
        %v1791 = vshll.u32 %v1734, 16
        %v1793 = vrot.slane %v1791, 5
        %v1794 = vsel %vm264, %v1789, %v1793
        %v1795 = vshrl.u32 %v1734, 16
        %v1797 = vrot.slane %v1795, 4
        %v1798 = vor.u32 %v1797, %v1793
        %v1799 = vrot.slane %v1798, 4
        %v1801 = vshll.u32 %v1735, 16
        %v1803 = vrot.slane %v1801, 5
        %v1804 = vsel %vm264, %v1799, %v1803
        %v1806 = vshrl.u32 %v1736, 16
        %v1808 = vrot.slane %v1806, 4
        %v1809 = vshll.u32 %v1736, 16
        %v1811 = vrot.slane %v1809, 5
        %v1812 = vor.u32 %v1808, %v1811
        %v1813 = vrot.slane %v1812, 4
        %v1815 = vshll.u32 %v1737, 16
        %v1817 = vrot.slane %v1815, 5
        %v1818 = vsel %vm264, %v1813, %v1817
        %v1819 = vshrl.u32 %v1737, 16
        %v1821 = vrot.slane %v1819, 4
        %v1822 = vor.u32 %v1821, %v1817
        %v1823 = vrot.slane %v1822, 4
        %v1825 = vshll.u32 %v1738, 16
        %v1827 = vrot.slane %v1825, 5
        %v1828 = vsel %vm264, %v1823, %v1827
        %v1830 = vshrl.u32 %v1739, 16
        %v1832 = vrot.slane %v1830, 4
        %v1833 = vshll.u32 %v1739, 16
        %v1835 = vrot.slane %v1833, 5
        %v1836 = vor.u32 %v1832, %v1835
        %v1837 = vrot.slane %v1836, 4
        %v1839 = vshll.u32 %v1740, 16
        %v1841 = vrot.slane %v1839, 5
        %v1842 = vsel %vm264, %v1837, %v1841
        %v1843 = vshrl.u32 %v1740, 16
        %v1845 = vrot.slane %v1843, 4
        %v1846 = vor.u32 %v1845, %v1841
        %v1847 = vrot.slane %v1846, 4
        %v1849 = vshll.u32 %v1741, 16
        %v1851 = vrot.slane %v1849, 5
        %v1852 = vsel %vm264, %v1847, %v1851
        %v1854 = vshrl.u32 %v1742, 16
        %v1856 = vrot.slane %v1854, 4
        %v1857 = vshll.u32 %v1742, 16
        %v1859 = vrot.slane %v1857, 5
        %v1860 = vor.u32 %v1856, %v1859
        %v1861 = vrot.slane %v1860, 4
        %v1863 = vshll.u32 %v1743, 16
        %v1865 = vrot.slane %v1863, 5
        %v1866 = vsel %vm264, %v1861, %v1865
        %v1867 = vshrl.u32 %v1743, 16
        %v1869 = vrot.slane %v1867, 4
        %v1870 = vor.u32 %v1869, %v1865
        %v1871 = vrot.slane %v1870, 4
        %v1873 = vshll.u32 %v1744, 16
        %v1875 = vrot.slane %v1873, 5
        %v1876 = vsel %vm264, %v1871, %v1875
        %v1878 = vshrl.u32 %v1745, 16
        %v1880 = vrot.slane %v1878, 4
        %v1881 = vshll.u32 %v1745, 16
        %v1883 = vrot.slane %v1881, 5
        %v1884 = vor.u32 %v1880, %v1883
        %v1885 = vrot.slane %v1884, 4
        %v1887 = vshll.u32 %v1746, 16
        %v1889 = vrot.slane %v1887, 5
        %v1890 = vsel %vm264, %v1885, %v1889
        %v1891 = vshrl.u32 %v1746, 16
        %v1893 = vrot.slane %v1891, 4
        %v1894 = vor.u32 %v1893, %v1889
        %v1895 = vrot.slane %v1894, 4
        %v1897 = vshll.u32 %v1747, 16
        %v1899 = vrot.slane %v1897, 5
        %v1900 = vsel %vm264, %v1895, %v1899
        %v1902 = vshrl.u32 %v1748, 16
        %v1904 = vrot.slane %v1902, 4
        %v1905 = vshll.u32 %v1748, 16
        %v1907 = vrot.slane %v1905, 5
        %v1908 = vor.u32 %v1904, %v1907
        %v1909 = vrot.slane %v1908, 4
        %v1911 = vshll.u32 %v1749, 16
        %v1913 = vrot.slane %v1911, 5
        %v1914 = vsel %vm264, %v1909, %v1913
        %v1915 = vshrl.u32 %v1749, 16
        %v1917 = vrot.slane %v1915, 4
        %v1918 = vor.u32 %v1917, %v1913
        %v1919 = vrot.slane %v1918, 4
        %v1921 = vshll.u32 %v1750, 16
        %v1923 = vrot.slane %v1921, 5
        %v1924 = vsel %vm264, %v1919, %v1923
        %v1926 = vshrl.u32 %v1751, 16
        %v1928 = vrot.slane %v1926, 4
        %v1929 = vshll.u32 %v1751, 16
        %v1931 = vrot.slane %v1929, 5
        %v1932 = vor.u32 %v1928, %v1931
        %v1933 = vrot.slane %v1932, 4
        %v1935 = vshll.u32 %v1752, 16
        %v1937 = vrot.slane %v1935, 5
        %v1938 = vsel %vm264, %v1933, %v1937
        %v1939 = vshrl.u32 %v1752, 16
        %v1941 = vrot.slane %v1939, 4
        %v1942 = vor.u32 %v1941, %v1937
        %v1943 = vrot.slane %v1942, 4
        %v1945 = vshll.u32 %v1753, 16
        %v1947 = vrot.slane %v1945, 5
        %v1948 = vsel %vm264, %v1943, %v1947
        %v1950 = vshrl.u32 %v1754, 16
        %v1952 = vrot.slane %v1950, 4
        %v1953 = vshll.u32 %v1754, 16
        %v1955 = vrot.slane %v1953, 5
        %v1956 = vor.u32 %v1952, %v1955
        %v1957 = vrot.slane %v1956, 4
        %v1959 = vshll.u32 %v1755, 16
        %v1961 = vrot.slane %v1959, 5
        %v1962 = vsel %vm264, %v1957, %v1961
        %v1963 = vshrl.u32 %v1755, 16
        %v1965 = vrot.slane %v1963, 4
        %v1966 = vor.u32 %v1965, %v1961
        %v1967 = vrot.slane %v1966, 4
        %v1969 = vshll.u32 %v1756, 16
        %v1971 = vrot.slane %v1969, 5
        %v1972 = vsel %vm264, %v1967, %v1971
        %v1974 = vshrl.u32 %v1757, 16
        %v1976 = vrot.slane %v1974, 4
        %v1977 = vshll.u32 %v1757, 16
        %v1979 = vrot.slane %v1977, 5
        %v1980 = vor.u32 %v1976, %v1979
        %v1981 = vrot.slane %v1980, 4
        %v1983 = vshll.u32 %v1758, 16
        %v1985 = vrot.slane %v1983, 5
        %v1986 = vsel %vm264, %v1981, %v1985
        %v1987 = vshrl.u32 %v1758, 16
        %v1989 = vrot.slane %v1987, 4
        %v1990 = vor.u32 %v1989, %v1985
        %v1991 = vrot.slane %v1990, 4
        %v1993 = vshll.u32 %v1759, 16
        %v1995 = vrot.slane %v1993, 5
        %v1996 = vsel %vm264, %v1991, %v1995
        %v1998 = vshrl.u32 %v1760, 16
        %v2000 = vrot.slane %v1998, 4
        %v2001 = vshll.u32 %v1760, 16
        %v2003 = vrot.slane %v2001, 5
        %v2004 = vor.u32 %v2000, %v2003
        %v2005 = vrot.slane %v2004, 4
        %v2007 = vshll.u32 %v1761, 16
        %v2009 = vrot.slane %v2007, 5
        %v2010 = vsel %vm264, %v2005, %v2009
        %v2011 = vshrl.u32 %v1761, 16
        %v2013 = vrot.slane %v2011, 4
        %v2014 = vor.u32 %v2013, %v2009
        %v2015 = vrot.slane %v2014, 4
        %v2017 = vshll.u32 %v1762, 16
        %v2019 = vrot.slane %v2017, 5
        %v2020 = vsel %vm264, %v2015, %v2019
        %v2022 = vshrl.u32 %v1763, 16
        %v2024 = vrot.slane %v2022, 4
        %v2025 = vshll.u32 %v1763, 16
        %v2027 = vrot.slane %v2025, 5
        %v2028 = vor.u32 %v2024, %v2027
        %v2029 = vrot.slane %v2028, 4
        %v2031 = vshll.u32 %v1764, 16
        %v2033 = vrot.slane %v2031, 5
        %v2034 = vsel %vm264, %v2029, %v2033
        %v2035 = vshrl.u32 %v1764, 16
        %v2037 = vrot.slane %v2035, 4
        %v2038 = vor.u32 %v2037, %v2033
        %v2039 = vrot.slane %v2038, 4
        %v2041 = vshll.u32 %v1765, 16
        %v2043 = vrot.slane %v2041, 5
        %v2044 = vsel %vm264, %v2039, %v2043
        %v2046 = vshrl.u32 %v1766, 16
        %v2048 = vrot.slane %v2046, 4
        %v2049 = vshll.u32 %v1766, 16
        %v2051 = vrot.slane %v2049, 5
        %v2052 = vor.u32 %v2048, %v2051
        %v2053 = vrot.slane %v2052, 4
        %v2055 = vshll.u32 %v1767, 16
        %v2057 = vrot.slane %v2055, 5
        %v2058 = vsel %vm264, %v2053, %v2057
        %v2059 = vshrl.u32 %v1767, 16
        %v2061 = vrot.slane %v2059, 4
        %v2062 = vor.u32 %v2061, %v2057
        %v2063 = vrot.slane %v2062, 4
        %v2065 = vshll.u32 %v1768, 16
        %v2067 = vrot.slane %v2065, 5
        %v2068 = vsel %vm264, %v2063, %v2067
        %v2070 = vshrl.u32 %v1769, 16
        %v2072 = vrot.slane %v2070, 4
        %v2073 = vshll.u32 %v1769, 16
        %v2075 = vrot.slane %v2073, 5
        %v2076 = vor.u32 %v2072, %v2075
        %v2077 = vrot.slane %v2076, 4
        %v2079 = vshll.u32 %v1770, 16
        %v2081 = vrot.slane %v2079, 5
        %v2082 = vsel %vm264, %v2077, %v2081
        %v2083 = vshrl.u32 %v1770, 16
        %v2085 = vrot.slane %v2083, 4
        %v2086 = vor.u32 %v2085, %v2081
        %v2087 = vrot.slane %v2086, 4
        %v2089 = vshll.u32 %v1771, 16
        %v2091 = vrot.slane %v2089, 5
        %v2092 = vsel %vm264, %v2087, %v2091
        %v2094 = vshrl.u32 %v1772, 16
        %v2096 = vrot.slane %v2094, 4
        %v2097 = vshll.u32 %v1772, 16
        %v2099 = vrot.slane %v2097, 5
        %v2100 = vor.u32 %v2096, %v2099
        %v2101 = vrot.slane %v2100, 4
        %v2103 = vshll.u32 %v1773, 16
        %v2105 = vrot.slane %v2103, 5
        %v2106 = vsel %vm264, %v2101, %v2105
        %v2107 = vshrl.u32 %v1773, 16
        %v2109 = vrot.slane %v2107, 4
        %v2110 = vor.u32 %v2109, %v2105
        %v2111 = vrot.slane %v2110, 4
        %v2113 = vshll.u32 %v1774, 16
        %v2115 = vrot.slane %v2113, 5
        %v2116 = vsel %vm264, %v2111, %v2115
        %v2118 = vshrl.u32 %v1775, 16
        %v2120 = vrot.slane %v2118, 4
        %v2121 = vshll.u32 %v1775, 16
        %v2123 = vrot.slane %v2121, 5
        %v2124 = vor.u32 %v2120, %v2123
        %v2125 = vrot.slane %v2124, 4
        %v2127 = vshll.u32 %v1776, 16
        %v2129 = vrot.slane %v2127, 5
        %v2130 = vsel %vm264, %v2125, %v2129
        %v2131 = vshrl.u32 %v1776, 16
        %v2133 = vrot.slane %v2131, 4
        %v2134 = vor.u32 %v2133, %v2129
        %v2135 = vrot.slane %v2134, 4
        %v2137 = vshll.u32 %v1777, 16
        %v2139 = vrot.slane %v2137, 5
        %v2140 = vsel %vm264, %v2135, %v2139
        %v2142 = vshrl.u32 %v1778, 16
        %v2144 = vrot.slane %v2142, 4
        %v2145 = vshll.u32 %v1778, 16
        %v2147 = vrot.slane %v2145, 5
        %v2148 = vor.u32 %v2144, %v2147
        %v2149 = vrot.slane %v2148, 4
        %v2151 = vshll.u32 %v1779, 16
        %v2153 = vrot.slane %v2151, 5
        %v2154 = vsel %vm264, %v2149, %v2153
        %v2155 = vshrl.u32 %v1779, 16
        %v2157 = vrot.slane %v2155, 4
        %v2158 = vor.u32 %v2157, %v2153
        %v2159 = vrot.slane %v2158, 4
        %v2161 = vshll.u32 %v1780, 16
        %v2163 = vrot.slane %v2161, 5
        %v2164 = vsel %vm264, %v2159, %v2163
        %s2165 = scalar_lea.vmem %s1, 8
        %v2166 = vld [vmem:[%s2165] sm:$0x3]
        %v2167 = vunpack.c.l.b16 %v1794
        %v2168 = vunpack.c.l.b16 %v1804
        %v2169 = vunpack.c.l.b16 %v1818
        %v2170 = vunpack.c.l.b16 %v1828
        %v2171 = vunpack.c.l.b16 %v1842
        %v2172 = vunpack.c.l.b16 %v1852
        %v2173 = vunpack.c.l.b16 %v1866
        %v2174 = vunpack.c.l.b16 %v1876
        %v2175 = vunpack.c.l.b16 %v1890
        %v2176 = vunpack.c.l.b16 %v1900
        %v2177 = vunpack.c.l.b16 %v1914
        %v2178 = vunpack.c.l.b16 %v1924
        %v2179 = vunpack.c.l.b16 %v1938
        %v2180 = vunpack.c.l.b16 %v1948
        %v2181 = vunpack.c.l.b16 %v1962
        %v2182 = vunpack.c.l.b16 %v1972
        %v2183 = vunpack.c.l.b16 %v1986
        %v2184 = vunpack.c.l.b16 %v1996
        %v2185 = vunpack.c.l.b16 %v2010
        %v2186 = vunpack.c.l.b16 %v2020
        %v2187 = vunpack.c.l.b16 %v2034
        %v2188 = vunpack.c.l.b16 %v2044
        %v2189 = vunpack.c.l.b16 %v2058
        %v2190 = vunpack.c.l.b16 %v2068
        %v2191 = vunpack.c.l.b16 %v2082
        %v2192 = vunpack.c.l.b16 %v2092
        %v2193 = vunpack.c.l.b16 %v2106
        %v2194 = vunpack.c.l.b16 %v2116
        %v2195 = vunpack.c.l.b16 %v2130
        %v2196 = vunpack.c.l.b16 %v2140
        %v2197 = vunpack.c.l.b16 %v2154
        %v2198 = vunpack.c.l.b16 %v2164
        %v2199 = vpack.c.b16 %v2168, %v2167
        %v2200 = vpack.c.b16 %v2170, %v2169
        %v2201 = vpack.c.b16 %v2172, %v2171
        %v2202 = vpack.c.b16 %v2174, %v2173
        %v2203 = vpack.c.b16 %v2176, %v2175
        %v2204 = vpack.c.b16 %v2178, %v2177
        %v2205 = vpack.c.b16 %v2180, %v2179
        %v2206 = vpack.c.b16 %v2182, %v2181
        %v2207 = vpack.c.b16 %v2184, %v2183
        %v2208 = vpack.c.b16 %v2186, %v2185
        %v2209 = vpack.c.b16 %v2188, %v2187
        %v2210 = vpack.c.b16 %v2190, %v2189
        %v2211 = vpack.c.b16 %v2192, %v2191
        %v2212 = vpack.c.b16 %v2194, %v2193
        %v2213 = vpack.c.b16 %v2196, %v2195
        %v2214 = vpack.c.b16 %v2198, %v2197
        %v2216 = vsel %vm699, %v2199, 0
        %v2219 = vsel %vm699, %v2200, 0
        %v2222 = vsel %vm699, %v2201, 0
        %v2225 = vsel %vm699, %v2202, 0
        %v2228 = vsel %vm699, %v2203, 0
        %v2231 = vsel %vm699, %v2204, 0
        %v2234 = vsel %vm699, %v2205, 0
        %v2237 = vsel %vm699, %v2206, 0
        %v2240 = vsel %vm699, %v2207, 0
        %v2243 = vsel %vm699, %v2208, 0
        %v2246 = vsel %vm699, %v2209, 0
        %v2249 = vsel %vm699, %v2210, 0
        %v2252 = vsel %vm699, %v2211, 0
        %v2255 = vsel %vm699, %v2212, 0
        %v2258 = vsel %vm699, %v2213, 0
        %v2261 = vsel %vm699, %v2214, 0
        %v2264 = vsel %vm748, %v2166, 0
        %2266 = vmatpush.bf16.msra.mxu0 0
        %2267 = vmatpush.bf16.msra.mxu0 0
        %2268 = vmatpush.bf16.msra.mxu0 0
        %2269 = vmatpush.bf16.msra.mxu0 0
        %2270 = vmatpush.bf16.msra.mxu0 0
        %2271 = vmatpush.bf16.msra.mxu0 0
        %2272 = vmatpush.bf16.msra.mxu0 0
        %2273 = vmatpush.bf16.msra.mxu0 %v2264
        %2274 = vmatmul.bf16.gmra.mxu0 %v2216
        %v2275 = vpop.f32.mrf.mxu0
        %v2276 = vadd.f32 0.0, %v2275
        %v2277 = vpop.f32.mrf.mxu0
        %v2278 = vadd.f32 0.0, %v2277
        %2279 = vmatmul.bf16.gmra.mxu0 %v2219
        %v2280 = vpop.f32.mrf.mxu0
        %v2281 = vadd.f32 0.0, %v2280
        %v2282 = vpop.f32.mrf.mxu0
        %v2283 = vadd.f32 0.0, %v2282
        %2284 = vmatmul.bf16.gmra.mxu0 %v2222
        %v2285 = vpop.f32.mrf.mxu0
        %v2286 = vadd.f32 0.0, %v2285
        %v2287 = vpop.f32.mrf.mxu0
        %v2288 = vadd.f32 0.0, %v2287
        %2289 = vmatmul.bf16.gmra.mxu0 %v2225
        %v2290 = vpop.f32.mrf.mxu0
        %v2291 = vadd.f32 0.0, %v2290
        %v2292 = vpop.f32.mrf.mxu0
        %v2293 = vadd.f32 0.0, %v2292
        %2294 = vmatmul.bf16.gmra.mxu0 %v2228
        %v2295 = vpop.f32.mrf.mxu0
        %v2296 = vadd.f32 0.0, %v2295
        %v2297 = vpop.f32.mrf.mxu0
        %v2298 = vadd.f32 0.0, %v2297
        %2299 = vmatmul.bf16.gmra.mxu0 %v2231
        %v2300 = vpop.f32.mrf.mxu0
        %v2301 = vadd.f32 0.0, %v2300
        %v2302 = vpop.f32.mrf.mxu0
        %v2303 = vadd.f32 0.0, %v2302
        %2304 = vmatmul.bf16.gmra.mxu0 %v2234
        %v2305 = vpop.f32.mrf.mxu0
        %v2306 = vadd.f32 0.0, %v2305
        %v2307 = vpop.f32.mrf.mxu0
        %v2308 = vadd.f32 0.0, %v2307
        %2309 = vmatmul.bf16.gmra.mxu0 %v2237
        %v2310 = vpop.f32.mrf.mxu0
        %v2311 = vadd.f32 0.0, %v2310
        %v2312 = vpop.f32.mrf.mxu0
        %v2313 = vadd.f32 0.0, %v2312
        %2314 = vmatmul.bf16.gmra.mxu0 %v2240
        %v2315 = vpop.f32.mrf.mxu0
        %v2316 = vadd.f32 0.0, %v2315
        %v2317 = vpop.f32.mrf.mxu0
        %v2318 = vadd.f32 0.0, %v2317
        %2319 = vmatmul.bf16.gmra.mxu0 %v2243
        %v2320 = vpop.f32.mrf.mxu0
        %v2321 = vadd.f32 0.0, %v2320
        %v2322 = vpop.f32.mrf.mxu0
        %v2323 = vadd.f32 0.0, %v2322
        %2324 = vmatmul.bf16.gmra.mxu0 %v2246
        %v2325 = vpop.f32.mrf.mxu0
        %v2326 = vadd.f32 0.0, %v2325
        %v2327 = vpop.f32.mrf.mxu0
        %v2328 = vadd.f32 0.0, %v2327
        %2329 = vmatmul.bf16.gmra.mxu0 %v2249
        %v2330 = vpop.f32.mrf.mxu0
        %v2331 = vadd.f32 0.0, %v2330
        %v2332 = vpop.f32.mrf.mxu0
        %v2333 = vadd.f32 0.0, %v2332
        %2334 = vmatmul.bf16.gmra.mxu0 %v2252
        %v2335 = vpop.f32.mrf.mxu0
        %v2336 = vadd.f32 0.0, %v2335
        %v2337 = vpop.f32.mrf.mxu0
        %v2338 = vadd.f32 0.0, %v2337
        %2339 = vmatmul.bf16.gmra.mxu0 %v2255
        %v2340 = vpop.f32.mrf.mxu0
        %v2341 = vadd.f32 0.0, %v2340
        %v2342 = vpop.f32.mrf.mxu0
        %v2343 = vadd.f32 0.0, %v2342
        %2344 = vmatmul.bf16.gmra.mxu0 %v2258
        %v2345 = vpop.f32.mrf.mxu0
        %v2346 = vadd.f32 0.0, %v2345
        %v2347 = vpop.f32.mrf.mxu0
        %v2348 = vadd.f32 0.0, %v2347
        %2349 = vmatmul.bf16.gmra.mxu0 %v2261
        %v2350 = vpop.f32.mrf.mxu0
        %v2351 = vadd.f32 0.0, %v2350
        %v2352 = vpop.f32.mrf.mxu0
        %v2353 = vadd.f32 0.0, %v2352
        %2354 = vdwg.mxu0
        %v2355 = vadd.f32 %v1701, %v2276
        %v2356 = vadd.f32 %v1702, %v2278
        %v2357 = vadd.f32 %v1703, %v2281
        %v2358 = vadd.f32 %v1704, %v2283
        %v2359 = vadd.f32 %v1705, %v2286
        %v2360 = vadd.f32 %v1706, %v2288
        %v2361 = vadd.f32 %v1707, %v2291
        %v2362 = vadd.f32 %v1708, %v2293
        %v2363 = vadd.f32 %v1709, %v2296
        %v2364 = vadd.f32 %v1710, %v2298
        %v2365 = vadd.f32 %v1711, %v2301
        %v2366 = vadd.f32 %v1712, %v2303
        %v2367 = vadd.f32 %v1713, %v2306
        %v2368 = vadd.f32 %v1714, %v2308
        %v2369 = vadd.f32 %v1715, %v2311
        %v2370 = vadd.f32 %v1716, %v2313
        %v2371 = vadd.f32 %v1717, %v2316
        %v2372 = vadd.f32 %v1718, %v2318
        %v2373 = vadd.f32 %v1719, %v2321
        %v2374 = vadd.f32 %v1720, %v2323
        %v2375 = vadd.f32 %v1721, %v2326
        %v2376 = vadd.f32 %v1722, %v2328
        %v2377 = vadd.f32 %v1723, %v2331
        %v2378 = vadd.f32 %v1724, %v2333
        %v2379 = vadd.f32 %v1725, %v2336
        %v2380 = vadd.f32 %v1726, %v2338
        %v2381 = vadd.f32 %v1727, %v2341
        %v2382 = vadd.f32 %v1728, %v2343
        %v2383 = vadd.f32 %v1729, %v2346
        %v2384 = vadd.f32 %v1730, %v2348
        %v2385 = vadd.f32 %v1731, %v2351
        %v2386 = vadd.f32 %v1732, %v2353
        %v2387 = vld [vmem:[%s1446] sm:$0xe]
        %v2388 = vld [vmem:[%s1446 + $0xc] sm:$0xe]
        %v2389 = vld [vmem:[%s1446 + $0x18] sm:$0xe]
        %v2390 = vld [vmem:[%s1446 + $0x24] sm:$0xe]
        %v2391 = vld [vmem:[%s1446 + $0x30] sm:$0xe]
        %v2392 = vld [vmem:[%s1446 + $0x3c] sm:$0xe]
        %v2393 = vld [vmem:[%s1446 + $0x48] sm:$0xe]
        %v2394 = vld [vmem:[%s1446 + $0x54] sm:$0xe]
        %v2395 = vld [vmem:[%s1446 + $0x60] sm:$0xe]
        %v2396 = vld [vmem:[%s1446 + $0x6c] sm:$0xe]
        %v2397 = vld [vmem:[%s1446 + $0x78] sm:$0xe]
        %v2398 = vld [vmem:[%s1446 + $0x84] sm:$0xe]
        %v2399 = vld [vmem:[%s1446 + $0x90] sm:$0xe]
        %v2400 = vld [vmem:[%s1446 + $0x9c] sm:$0xe]
        %v2401 = vld [vmem:[%s1446 + $0xa8] sm:$0xe]
        %v2402 = vld [vmem:[%s1446 + $0xb4] sm:$0xe]
        %v2451 = vrot.slane %v2387, 5
        %v2452 = vrot.slane %v2451, 4
        %v2453 = vrot.slane %v1734, 5
        %v2454 = vsel %vm1111, %v2452, %v2453
        %v2455 = vrot.slane %v2453, 4
        %v2456 = vrot.slane %v1735, 5
        %v2457 = vsel %vm1111, %v2455, %v2456
        %v2458 = vrot.slane %v2388, 5
        %v2459 = vrot.slane %v2458, 4
        %v2460 = vrot.slane %v1737, 5
        %v2461 = vsel %vm1111, %v2459, %v2460
        %v2462 = vrot.slane %v2460, 4
        %v2463 = vrot.slane %v1738, 5
        %v2464 = vsel %vm1111, %v2462, %v2463
        %v2465 = vrot.slane %v2389, 5
        %v2466 = vrot.slane %v2465, 4
        %v2467 = vrot.slane %v1740, 5
        %v2468 = vsel %vm1111, %v2466, %v2467
        %v2469 = vrot.slane %v2467, 4
        %v2470 = vrot.slane %v1741, 5
        %v2471 = vsel %vm1111, %v2469, %v2470
        %v2472 = vrot.slane %v2390, 5
        %v2473 = vrot.slane %v2472, 4
        %v2474 = vrot.slane %v1743, 5
        %v2475 = vsel %vm1111, %v2473, %v2474
        %v2476 = vrot.slane %v2474, 4
        %v2477 = vrot.slane %v1744, 5
        %v2478 = vsel %vm1111, %v2476, %v2477
        %v2479 = vrot.slane %v2391, 5
        %v2480 = vrot.slane %v2479, 4
        %v2481 = vrot.slane %v1746, 5
        %v2482 = vsel %vm1111, %v2480, %v2481
        %v2483 = vrot.slane %v2481, 4
        %v2484 = vrot.slane %v1747, 5
        %v2485 = vsel %vm1111, %v2483, %v2484
        %v2486 = vrot.slane %v2392, 5
        %v2487 = vrot.slane %v2486, 4
        %v2488 = vrot.slane %v1749, 5
        %v2489 = vsel %vm1111, %v2487, %v2488
        %v2490 = vrot.slane %v2488, 4
        %v2491 = vrot.slane %v1750, 5
        %v2492 = vsel %vm1111, %v2490, %v2491
        %v2493 = vrot.slane %v2393, 5
        %v2494 = vrot.slane %v2493, 4
        %v2495 = vrot.slane %v1752, 5
        %v2496 = vsel %vm1111, %v2494, %v2495
        %v2497 = vrot.slane %v2495, 4
        %v2498 = vrot.slane %v1753, 5
        %v2499 = vsel %vm1111, %v2497, %v2498
        %v2500 = vrot.slane %v2394, 5
        %v2501 = vrot.slane %v2500, 4
        %v2502 = vrot.slane %v1755, 5
        %v2503 = vsel %vm1111, %v2501, %v2502
        %v2504 = vrot.slane %v2502, 4
        %v2505 = vrot.slane %v1756, 5
        %v2506 = vsel %vm1111, %v2504, %v2505
        %v2507 = vrot.slane %v2395, 5
        %v2508 = vrot.slane %v2507, 4
        %v2509 = vrot.slane %v1758, 5
        %v2510 = vsel %vm1111, %v2508, %v2509
        %v2511 = vrot.slane %v2509, 4
        %v2512 = vrot.slane %v1759, 5
        %v2513 = vsel %vm1111, %v2511, %v2512
        %v2514 = vrot.slane %v2396, 5
        %v2515 = vrot.slane %v2514, 4
        %v2516 = vrot.slane %v1761, 5
        %v2517 = vsel %vm1111, %v2515, %v2516
        %v2518 = vrot.slane %v2516, 4
        %v2519 = vrot.slane %v1762, 5
        %v2520 = vsel %vm1111, %v2518, %v2519
        %v2521 = vrot.slane %v2397, 5
        %v2522 = vrot.slane %v2521, 4
        %v2523 = vrot.slane %v1764, 5
        %v2524 = vsel %vm1111, %v2522, %v2523
        %v2525 = vrot.slane %v2523, 4
        %v2526 = vrot.slane %v1765, 5
        %v2527 = vsel %vm1111, %v2525, %v2526
        %v2528 = vrot.slane %v2398, 5
        %v2529 = vrot.slane %v2528, 4
        %v2530 = vrot.slane %v1767, 5
        %v2531 = vsel %vm1111, %v2529, %v2530
        %v2532 = vrot.slane %v2530, 4
        %v2533 = vrot.slane %v1768, 5
        %v2534 = vsel %vm1111, %v2532, %v2533
        %v2535 = vrot.slane %v2399, 5
        %v2536 = vrot.slane %v2535, 4
        %v2537 = vrot.slane %v1770, 5
        %v2538 = vsel %vm1111, %v2536, %v2537
        %v2539 = vrot.slane %v2537, 4
        %v2540 = vrot.slane %v1771, 5
        %v2541 = vsel %vm1111, %v2539, %v2540
        %v2542 = vrot.slane %v2400, 5
        %v2543 = vrot.slane %v2542, 4
        %v2544 = vrot.slane %v1773, 5
        %v2545 = vsel %vm1111, %v2543, %v2544
        %v2546 = vrot.slane %v2544, 4
        %v2547 = vrot.slane %v1774, 5
        %v2548 = vsel %vm1111, %v2546, %v2547
        %v2549 = vrot.slane %v2401, 5
        %v2550 = vrot.slane %v2549, 4
        %v2551 = vrot.slane %v1776, 5
        %v2552 = vsel %vm1111, %v2550, %v2551
        %v2553 = vrot.slane %v2551, 4
        %v2554 = vrot.slane %v1777, 5
        %v2555 = vsel %vm1111, %v2553, %v2554
        %v2556 = vrot.slane %v2402, 5
        %v2557 = vrot.slane %v2556, 4
        %v2558 = vrot.slane %v1779, 5
        %v2559 = vsel %vm1111, %v2557, %v2558
        %v2560 = vrot.slane %v2558, 4
        %v2561 = vrot.slane %v1780, 5
        %v2562 = vsel %vm1111, %v2560, %v2561
        %s2563 = scalar_lea.vmem %s1, 10
        %v2564 = vld [vmem:[%s2563] sm:$0x3]
        %v2565 = vunpack.c.l.b16 %v2454
        %v2566 = vunpack.c.l.b16 %v2457
        %v2567 = vunpack.c.l.b16 %v2461
        %v2568 = vunpack.c.l.b16 %v2464
        %v2569 = vunpack.c.l.b16 %v2468
        %v2570 = vunpack.c.l.b16 %v2471
        %v2571 = vunpack.c.l.b16 %v2475
        %v2572 = vunpack.c.l.b16 %v2478
        %v2573 = vunpack.c.l.b16 %v2482
        %v2574 = vunpack.c.l.b16 %v2485
        %v2575 = vunpack.c.l.b16 %v2489
        %v2576 = vunpack.c.l.b16 %v2492
        %v2577 = vunpack.c.l.b16 %v2496
        %v2578 = vunpack.c.l.b16 %v2499
        %v2579 = vunpack.c.l.b16 %v2503
        %v2580 = vunpack.c.l.b16 %v2506
        %v2581 = vunpack.c.l.b16 %v2510
        %v2582 = vunpack.c.l.b16 %v2513
        %v2583 = vunpack.c.l.b16 %v2517
        %v2584 = vunpack.c.l.b16 %v2520
        %v2585 = vunpack.c.l.b16 %v2524
        %v2586 = vunpack.c.l.b16 %v2527
        %v2587 = vunpack.c.l.b16 %v2531
        %v2588 = vunpack.c.l.b16 %v2534
        %v2589 = vunpack.c.l.b16 %v2538
        %v2590 = vunpack.c.l.b16 %v2541
        %v2591 = vunpack.c.l.b16 %v2545
        %v2592 = vunpack.c.l.b16 %v2548
        %v2593 = vunpack.c.l.b16 %v2552
        %v2594 = vunpack.c.l.b16 %v2555
        %v2595 = vunpack.c.l.b16 %v2559
        %v2596 = vunpack.c.l.b16 %v2562
        %v2597 = vpack.c.b16 %v2566, %v2565
        %v2598 = vpack.c.b16 %v2568, %v2567
        %v2599 = vpack.c.b16 %v2570, %v2569
        %v2600 = vpack.c.b16 %v2572, %v2571
        %v2601 = vpack.c.b16 %v2574, %v2573
        %v2602 = vpack.c.b16 %v2576, %v2575
        %v2603 = vpack.c.b16 %v2578, %v2577
        %v2604 = vpack.c.b16 %v2580, %v2579
        %v2605 = vpack.c.b16 %v2582, %v2581
        %v2606 = vpack.c.b16 %v2584, %v2583
        %v2607 = vpack.c.b16 %v2586, %v2585
        %v2608 = vpack.c.b16 %v2588, %v2587
        %v2609 = vpack.c.b16 %v2590, %v2589
        %v2610 = vpack.c.b16 %v2592, %v2591
        %v2611 = vpack.c.b16 %v2594, %v2593
        %v2612 = vpack.c.b16 %v2596, %v2595
        %v2614 = vsel %vm699, %v2597, 0
        %v2617 = vsel %vm699, %v2598, 0
        %v2620 = vsel %vm699, %v2599, 0
        %v2623 = vsel %vm699, %v2600, 0
        %v2626 = vsel %vm699, %v2601, 0
        %v2629 = vsel %vm699, %v2602, 0
        %v2632 = vsel %vm699, %v2603, 0
        %v2635 = vsel %vm699, %v2604, 0
        %v2638 = vsel %vm699, %v2605, 0
        %v2641 = vsel %vm699, %v2606, 0
        %v2644 = vsel %vm699, %v2607, 0
        %v2647 = vsel %vm699, %v2608, 0
        %v2650 = vsel %vm699, %v2609, 0
        %v2653 = vsel %vm699, %v2610, 0
        %v2656 = vsel %vm699, %v2611, 0
        %v2659 = vsel %vm699, %v2612, 0
        %v2662 = vsel %vm748, %v2564, 0
        %2664 = vmatpush.bf16.msra.mxu0 0
        %2665 = vmatpush.bf16.msra.mxu0 0
        %2666 = vmatpush.bf16.msra.mxu0 0
        %2667 = vmatpush.bf16.msra.mxu0 0
        %2668 = vmatpush.bf16.msra.mxu0 0
        %2669 = vmatpush.bf16.msra.mxu0 0
        %2670 = vmatpush.bf16.msra.mxu0 0
        %2671 = vmatpush.bf16.msra.mxu0 %v2662
        %2672 = vmatmul.bf16.gmra.mxu0 %v2614
        %v2673 = vpop.f32.mrf.mxu0
        %v2674 = vadd.f32 0.0, %v2673
        %v2675 = vpop.f32.mrf.mxu0
        %v2676 = vadd.f32 0.0, %v2675
        %2677 = vmatmul.bf16.gmra.mxu0 %v2617
        %v2678 = vpop.f32.mrf.mxu0
        %v2679 = vadd.f32 0.0, %v2678
        %v2680 = vpop.f32.mrf.mxu0
        %v2681 = vadd.f32 0.0, %v2680
        %2682 = vmatmul.bf16.gmra.mxu0 %v2620
        %v2683 = vpop.f32.mrf.mxu0
        %v2684 = vadd.f32 0.0, %v2683
        %v2685 = vpop.f32.mrf.mxu0
        %v2686 = vadd.f32 0.0, %v2685
        %2687 = vmatmul.bf16.gmra.mxu0 %v2623
        %v2688 = vpop.f32.mrf.mxu0
        %v2689 = vadd.f32 0.0, %v2688
        %v2690 = vpop.f32.mrf.mxu0
        %v2691 = vadd.f32 0.0, %v2690
        %2692 = vmatmul.bf16.gmra.mxu0 %v2626
        %v2693 = vpop.f32.mrf.mxu0
        %v2694 = vadd.f32 0.0, %v2693
        %v2695 = vpop.f32.mrf.mxu0
        %v2696 = vadd.f32 0.0, %v2695
        %2697 = vmatmul.bf16.gmra.mxu0 %v2629
        %v2698 = vpop.f32.mrf.mxu0
        %v2699 = vadd.f32 0.0, %v2698
        %v2700 = vpop.f32.mrf.mxu0
        %v2701 = vadd.f32 0.0, %v2700
        %2702 = vmatmul.bf16.gmra.mxu0 %v2632
        %v2703 = vpop.f32.mrf.mxu0
        %v2704 = vadd.f32 0.0, %v2703
        %v2705 = vpop.f32.mrf.mxu0
        %v2706 = vadd.f32 0.0, %v2705
        %2707 = vmatmul.bf16.gmra.mxu0 %v2635
        %v2708 = vpop.f32.mrf.mxu0
        %v2709 = vadd.f32 0.0, %v2708
        %v2710 = vpop.f32.mrf.mxu0
        %v2711 = vadd.f32 0.0, %v2710
        %2712 = vmatmul.bf16.gmra.mxu0 %v2638
        %v2713 = vpop.f32.mrf.mxu0
        %v2714 = vadd.f32 0.0, %v2713
        %v2715 = vpop.f32.mrf.mxu0
        %v2716 = vadd.f32 0.0, %v2715
        %2717 = vmatmul.bf16.gmra.mxu0 %v2641
        %v2718 = vpop.f32.mrf.mxu0
        %v2719 = vadd.f32 0.0, %v2718
        %v2720 = vpop.f32.mrf.mxu0
        %v2721 = vadd.f32 0.0, %v2720
        %2722 = vmatmul.bf16.gmra.mxu0 %v2644
        %v2723 = vpop.f32.mrf.mxu0
        %v2724 = vadd.f32 0.0, %v2723
        %v2725 = vpop.f32.mrf.mxu0
        %v2726 = vadd.f32 0.0, %v2725
        %2727 = vmatmul.bf16.gmra.mxu0 %v2647
        %v2728 = vpop.f32.mrf.mxu0
        %v2729 = vadd.f32 0.0, %v2728
        %v2730 = vpop.f32.mrf.mxu0
        %v2731 = vadd.f32 0.0, %v2730
        %2732 = vmatmul.bf16.gmra.mxu0 %v2650
        %v2733 = vpop.f32.mrf.mxu0
        %v2734 = vadd.f32 0.0, %v2733
        %v2735 = vpop.f32.mrf.mxu0
        %v2736 = vadd.f32 0.0, %v2735
        %2737 = vmatmul.bf16.gmra.mxu0 %v2653
        %v2738 = vpop.f32.mrf.mxu0
        %v2739 = vadd.f32 0.0, %v2738
        %v2740 = vpop.f32.mrf.mxu0
        %v2741 = vadd.f32 0.0, %v2740
        %2742 = vmatmul.bf16.gmra.mxu0 %v2656
        %v2743 = vpop.f32.mrf.mxu0
        %v2744 = vadd.f32 0.0, %v2743
        %v2745 = vpop.f32.mrf.mxu0
        %v2746 = vadd.f32 0.0, %v2745
        %2747 = vmatmul.bf16.gmra.mxu0 %v2659
        %v2748 = vpop.f32.mrf.mxu0
        %v2749 = vadd.f32 0.0, %v2748
        %v2750 = vpop.f32.mrf.mxu0
        %v2751 = vadd.f32 0.0, %v2750
        %2752 = vdwg.mxu0
        %v2753 = vadd.f32 %v2355, %v2674
        %v2754 = vadd.f32 %v2356, %v2676
        %v2755 = vadd.f32 %v2357, %v2679
        %v2756 = vadd.f32 %v2358, %v2681
        %v2757 = vadd.f32 %v2359, %v2684
        %v2758 = vadd.f32 %v2360, %v2686
        %v2759 = vadd.f32 %v2361, %v2689
        %v2760 = vadd.f32 %v2362, %v2691
        %v2761 = vadd.f32 %v2363, %v2694
        %v2762 = vadd.f32 %v2364, %v2696
        %v2763 = vadd.f32 %v2365, %v2699
        %v2764 = vadd.f32 %v2366, %v2701
        %v2765 = vadd.f32 %v2367, %v2704
        %v2766 = vadd.f32 %v2368, %v2706
        %v2767 = vadd.f32 %v2369, %v2709
        %v2768 = vadd.f32 %v2370, %v2711
        %v2769 = vadd.f32 %v2371, %v2714
        %v2770 = vadd.f32 %v2372, %v2716
        %v2771 = vadd.f32 %v2373, %v2719
        %v2772 = vadd.f32 %v2374, %v2721
        %v2773 = vadd.f32 %v2375, %v2724
        %v2774 = vadd.f32 %v2376, %v2726
        %v2775 = vadd.f32 %v2377, %v2729
        %v2776 = vadd.f32 %v2378, %v2731
        %v2777 = vadd.f32 %v2379, %v2734
        %v2778 = vadd.f32 %v2380, %v2736
        %v2779 = vadd.f32 %v2381, %v2739
        %v2780 = vadd.f32 %v2382, %v2741
        %v2781 = vadd.f32 %v2383, %v2744
        %v2782 = vadd.f32 %v2384, %v2746
        %v2783 = vadd.f32 %v2385, %v2749
        %v2784 = vadd.f32 %v2386, %v2751
        %s2785 = scalar_lea.vmem %s211, 24
        %v2786 = vld [vmem:[%s2785] sm:$0xf]
        %v2787 = vld [vmem:[%s2785 + $0x4] sm:$0xf]
        %v2788 = vld [vmem:[%s2785 + $0xc] sm:$0xf]
        %v2789 = vld [vmem:[%s2785 + $0x10] sm:$0xf]
        %v2790 = vld [vmem:[%s2785 + $0x18] sm:$0xf]
        %v2791 = vld [vmem:[%s2785 + $0x1c] sm:$0xf]
        %v2792 = vld [vmem:[%s2785 + $0x24] sm:$0xf]
        %v2793 = vld [vmem:[%s2785 + $0x28] sm:$0xf]
        %v2794 = vld [vmem:[%s2785 + $0x30] sm:$0xf]
        %v2795 = vld [vmem:[%s2785 + $0x34] sm:$0xf]
        %v2796 = vld [vmem:[%s2785 + $0x3c] sm:$0xf]
        %v2797 = vld [vmem:[%s2785 + $0x40] sm:$0xf]
        %v2798 = vld [vmem:[%s2785 + $0x48] sm:$0xf]
        %v2799 = vld [vmem:[%s2785 + $0x4c] sm:$0xf]
        %v2800 = vld [vmem:[%s2785 + $0x54] sm:$0xf]
        %v2801 = vld [vmem:[%s2785 + $0x58] sm:$0xf]
        %v2802 = vld [vmem:[%s2785 + $0x60] sm:$0xf]
        %v2803 = vld [vmem:[%s2785 + $0x64] sm:$0xf]
        %v2804 = vld [vmem:[%s2785 + $0x6c] sm:$0xf]
        %v2805 = vld [vmem:[%s2785 + $0x70] sm:$0xf]
        %v2806 = vld [vmem:[%s2785 + $0x78] sm:$0xf]
        %v2807 = vld [vmem:[%s2785 + $0x7c] sm:$0xf]
        %v2808 = vld [vmem:[%s2785 + $0x84] sm:$0xf]
        %v2809 = vld [vmem:[%s2785 + $0x88] sm:$0xf]
        %v2810 = vld [vmem:[%s2785 + $0x90] sm:$0xf]
        %v2811 = vld [vmem:[%s2785 + $0x94] sm:$0xf]
        %v2812 = vld [vmem:[%s2785 + $0x9c] sm:$0xf]
        %v2813 = vld [vmem:[%s2785 + $0xa0] sm:$0xf]
        %v2814 = vld [vmem:[%s2785 + $0xa8] sm:$0xf]
        %v2815 = vld [vmem:[%s2785 + $0xac] sm:$0xf]
        %v2816 = vld [vmem:[%s2785 + $0xb4] sm:$0xf]
        %v2817 = vld [vmem:[%s2785 + $0xb8] sm:$0xf]
        %s2818 = scalar_lea.vmem %s1, 12
        %v2819 = vld [vmem:[%s2818] sm:$0x3]
        %v2852 = vunpack.c.l.b16 %v2786
        %v2853 = vunpack.c.l.b16 %v2787
        %v2854 = vunpack.c.l.b16 %v2788
        %v2855 = vunpack.c.l.b16 %v2789
        %v2856 = vunpack.c.l.b16 %v2790
        %v2857 = vunpack.c.l.b16 %v2791
        %v2858 = vunpack.c.l.b16 %v2792
        %v2859 = vunpack.c.l.b16 %v2793
        %v2860 = vunpack.c.l.b16 %v2794
        %v2861 = vunpack.c.l.b16 %v2795
        %v2862 = vunpack.c.l.b16 %v2796
        %v2863 = vunpack.c.l.b16 %v2797
        %v2864 = vunpack.c.l.b16 %v2798
        %v2865 = vunpack.c.l.b16 %v2799
        %v2866 = vunpack.c.l.b16 %v2800
        %v2867 = vunpack.c.l.b16 %v2801
        %v2868 = vunpack.c.l.b16 %v2802
        %v2869 = vunpack.c.l.b16 %v2803
        %v2870 = vunpack.c.l.b16 %v2804
        %v2871 = vunpack.c.l.b16 %v2805
        %v2872 = vunpack.c.l.b16 %v2806
        %v2873 = vunpack.c.l.b16 %v2807
        %v2874 = vunpack.c.l.b16 %v2808
        %v2875 = vunpack.c.l.b16 %v2809
        %v2876 = vunpack.c.l.b16 %v2810
        %v2877 = vunpack.c.l.b16 %v2811
        %v2878 = vunpack.c.l.b16 %v2812
        %v2879 = vunpack.c.l.b16 %v2813
        %v2880 = vunpack.c.l.b16 %v2814
        %v2881 = vunpack.c.l.b16 %v2815
        %v2882 = vunpack.c.l.b16 %v2816
        %v2883 = vunpack.c.l.b16 %v2817
        %v2884 = vpack.c.b16 %v2853, %v2852
        %v2885 = vpack.c.b16 %v2855, %v2854
        %v2886 = vpack.c.b16 %v2857, %v2856
        %v2887 = vpack.c.b16 %v2859, %v2858
        %v2888 = vpack.c.b16 %v2861, %v2860
        %v2889 = vpack.c.b16 %v2863, %v2862
        %v2890 = vpack.c.b16 %v2865, %v2864
        %v2891 = vpack.c.b16 %v2867, %v2866
        %v2892 = vpack.c.b16 %v2869, %v2868
        %v2893 = vpack.c.b16 %v2871, %v2870
        %v2894 = vpack.c.b16 %v2873, %v2872
        %v2895 = vpack.c.b16 %v2875, %v2874
        %v2896 = vpack.c.b16 %v2877, %v2876
        %v2897 = vpack.c.b16 %v2879, %v2878
        %v2898 = vpack.c.b16 %v2881, %v2880
        %v2899 = vpack.c.b16 %v2883, %v2882
        %v2901 = vsel %vm699, %v2884, 0
        %v2904 = vsel %vm699, %v2885, 0
        %v2907 = vsel %vm699, %v2886, 0
        %v2910 = vsel %vm699, %v2887, 0
        %v2913 = vsel %vm699, %v2888, 0
        %v2916 = vsel %vm699, %v2889, 0
        %v2919 = vsel %vm699, %v2890, 0
        %v2922 = vsel %vm699, %v2891, 0
        %v2925 = vsel %vm699, %v2892, 0
        %v2928 = vsel %vm699, %v2893, 0
        %v2931 = vsel %vm699, %v2894, 0
        %v2934 = vsel %vm699, %v2895, 0
        %v2937 = vsel %vm699, %v2896, 0
        %v2940 = vsel %vm699, %v2897, 0
        %v2943 = vsel %vm699, %v2898, 0
        %v2946 = vsel %vm699, %v2899, 0
        %v2949 = vsel %vm748, %v2819, 0
        %2951 = vmatpush.bf16.msra.mxu0 0
        %2952 = vmatpush.bf16.msra.mxu0 0
        %2953 = vmatpush.bf16.msra.mxu0 0
        %2954 = vmatpush.bf16.msra.mxu0 0
        %2955 = vmatpush.bf16.msra.mxu0 0
        %2956 = vmatpush.bf16.msra.mxu0 0
        %2957 = vmatpush.bf16.msra.mxu0 0
        %2958 = vmatpush.bf16.msra.mxu0 %v2949
        %2959 = vmatmul.bf16.gmra.mxu0 %v2901
        %v2960 = vpop.f32.mrf.mxu0
        %v2961 = vadd.f32 0.0, %v2960
        %v2962 = vpop.f32.mrf.mxu0
        %v2963 = vadd.f32 0.0, %v2962
        %2964 = vmatmul.bf16.gmra.mxu0 %v2904
        %v2965 = vpop.f32.mrf.mxu0
        %v2966 = vadd.f32 0.0, %v2965
        %v2967 = vpop.f32.mrf.mxu0
        %v2968 = vadd.f32 0.0, %v2967
        %2969 = vmatmul.bf16.gmra.mxu0 %v2907
        %v2970 = vpop.f32.mrf.mxu0
        %v2971 = vadd.f32 0.0, %v2970
        %v2972 = vpop.f32.mrf.mxu0
        %v2973 = vadd.f32 0.0, %v2972
        %2974 = vmatmul.bf16.gmra.mxu0 %v2910
        %v2975 = vpop.f32.mrf.mxu0
        %v2976 = vadd.f32 0.0, %v2975
        %v2977 = vpop.f32.mrf.mxu0
        %v2978 = vadd.f32 0.0, %v2977
        %2979 = vmatmul.bf16.gmra.mxu0 %v2913
        %v2980 = vpop.f32.mrf.mxu0
        %v2981 = vadd.f32 0.0, %v2980
        %v2982 = vpop.f32.mrf.mxu0
        %v2983 = vadd.f32 0.0, %v2982
        %2984 = vmatmul.bf16.gmra.mxu0 %v2916
        %v2985 = vpop.f32.mrf.mxu0
        %v2986 = vadd.f32 0.0, %v2985
        %v2987 = vpop.f32.mrf.mxu0
        %v2988 = vadd.f32 0.0, %v2987
        %2989 = vmatmul.bf16.gmra.mxu0 %v2919
        %v2990 = vpop.f32.mrf.mxu0
        %v2991 = vadd.f32 0.0, %v2990
        %v2992 = vpop.f32.mrf.mxu0
        %v2993 = vadd.f32 0.0, %v2992
        %2994 = vmatmul.bf16.gmra.mxu0 %v2922
        %v2995 = vpop.f32.mrf.mxu0
        %v2996 = vadd.f32 0.0, %v2995
        %v2997 = vpop.f32.mrf.mxu0
        %v2998 = vadd.f32 0.0, %v2997
        %2999 = vmatmul.bf16.gmra.mxu0 %v2925
        %v3000 = vpop.f32.mrf.mxu0
        %v3001 = vadd.f32 0.0, %v3000
        %v3002 = vpop.f32.mrf.mxu0
        %v3003 = vadd.f32 0.0, %v3002
        %3004 = vmatmul.bf16.gmra.mxu0 %v2928
        %v3005 = vpop.f32.mrf.mxu0
        %v3006 = vadd.f32 0.0, %v3005
        %v3007 = vpop.f32.mrf.mxu0
        %v3008 = vadd.f32 0.0, %v3007
        %3009 = vmatmul.bf16.gmra.mxu0 %v2931
        %v3010 = vpop.f32.mrf.mxu0
        %v3011 = vadd.f32 0.0, %v3010
        %v3012 = vpop.f32.mrf.mxu0
        %v3013 = vadd.f32 0.0, %v3012
        %3014 = vmatmul.bf16.gmra.mxu0 %v2934
        %v3015 = vpop.f32.mrf.mxu0
        %v3016 = vadd.f32 0.0, %v3015
        %v3017 = vpop.f32.mrf.mxu0
        %v3018 = vadd.f32 0.0, %v3017
        %3019 = vmatmul.bf16.gmra.mxu0 %v2937
        %v3020 = vpop.f32.mrf.mxu0
        %v3021 = vadd.f32 0.0, %v3020
        %v3022 = vpop.f32.mrf.mxu0
        %v3023 = vadd.f32 0.0, %v3022
        %3024 = vmatmul.bf16.gmra.mxu0 %v2940
        %v3025 = vpop.f32.mrf.mxu0
        %v3026 = vadd.f32 0.0, %v3025
        %v3027 = vpop.f32.mrf.mxu0
        %v3028 = vadd.f32 0.0, %v3027
        %3029 = vmatmul.bf16.gmra.mxu0 %v2943
        %v3030 = vpop.f32.mrf.mxu0
        %v3031 = vadd.f32 0.0, %v3030
        %v3032 = vpop.f32.mrf.mxu0
        %v3033 = vadd.f32 0.0, %v3032
        %3034 = vmatmul.bf16.gmra.mxu0 %v2946
        %v3035 = vpop.f32.mrf.mxu0
        %v3036 = vadd.f32 0.0, %v3035
        %v3037 = vpop.f32.mrf.mxu0
        %v3038 = vadd.f32 0.0, %v3037
        %3039 = vdwg.mxu0
        %v3040 = vadd.f32 %v2753, %v2961
        %v3041 = vadd.f32 %v2754, %v2963
        %v3042 = vadd.f32 %v2755, %v2966
        %v3043 = vadd.f32 %v2756, %v2968
        %v3044 = vadd.f32 %v2757, %v2971
        %v3045 = vadd.f32 %v2758, %v2973
        %v3046 = vadd.f32 %v2759, %v2976
        %v3047 = vadd.f32 %v2760, %v2978
        %v3048 = vadd.f32 %v2761, %v2981
        %v3049 = vadd.f32 %v2762, %v2983
        %v3050 = vadd.f32 %v2763, %v2986
        %v3051 = vadd.f32 %v2764, %v2988
        %v3052 = vadd.f32 %v2765, %v2991
        %v3053 = vadd.f32 %v2766, %v2993
        %v3054 = vadd.f32 %v2767, %v2996
        %v3055 = vadd.f32 %v2768, %v2998
        %v3056 = vadd.f32 %v2769, %v3001
        %v3057 = vadd.f32 %v2770, %v3003
        %v3058 = vadd.f32 %v2771, %v3006
        %v3059 = vadd.f32 %v2772, %v3008
        %v3060 = vadd.f32 %v2773, %v3011
        %v3061 = vadd.f32 %v2774, %v3013
        %v3062 = vadd.f32 %v2775, %v3016
        %v3063 = vadd.f32 %v2776, %v3018
        %v3064 = vadd.f32 %v2777, %v3021
        %v3065 = vadd.f32 %v2778, %v3023
        %v3066 = vadd.f32 %v2779, %v3026
        %v3067 = vadd.f32 %v2780, %v3028
        %v3068 = vadd.f32 %v2781, %v3031
        %v3069 = vadd.f32 %v2782, %v3033
        %v3070 = vadd.f32 %v2783, %v3036
        %v3071 = vadd.f32 %v2784, %v3038
        %v3072 = vld [vmem:[%s2785] sm:$0xf]
        %v3073 = vld [vmem:[%s2785 + $0x4] sm:$0xf]
        %v3074 = vld [vmem:[%s2785 + $0x8] sm:$0x1]
        %v3075 = vld [vmem:[%s2785 + $0xc] sm:$0xf]
        %v3076 = vld [vmem:[%s2785 + $0x10] sm:$0xf]
        %v3077 = vld [vmem:[%s2785 + $0x14] sm:$0x1]
        %v3078 = vld [vmem:[%s2785 + $0x18] sm:$0xf]
        %v3079 = vld [vmem:[%s2785 + $0x1c] sm:$0xf]
        %v3080 = vld [vmem:[%s2785 + $0x20] sm:$0x1]
        %v3081 = vld [vmem:[%s2785 + $0x24] sm:$0xf]
        %v3082 = vld [vmem:[%s2785 + $0x28] sm:$0xf]
        %v3083 = vld [vmem:[%s2785 + $0x2c] sm:$0x1]
        %v3084 = vld [vmem:[%s2785 + $0x30] sm:$0xf]
        %v3085 = vld [vmem:[%s2785 + $0x34] sm:$0xf]
        %v3086 = vld [vmem:[%s2785 + $0x38] sm:$0x1]
        %v3087 = vld [vmem:[%s2785 + $0x3c] sm:$0xf]
        %v3088 = vld [vmem:[%s2785 + $0x40] sm:$0xf]
        %v3089 = vld [vmem:[%s2785 + $0x44] sm:$0x1]
        %v3090 = vld [vmem:[%s2785 + $0x48] sm:$0xf]
        %v3091 = vld [vmem:[%s2785 + $0x4c] sm:$0xf]
        %v3092 = vld [vmem:[%s2785 + $0x50] sm:$0x1]
        %v3093 = vld [vmem:[%s2785 + $0x54] sm:$0xf]
        %v3094 = vld [vmem:[%s2785 + $0x58] sm:$0xf]
        %v3095 = vld [vmem:[%s2785 + $0x5c] sm:$0x1]
        %v3096 = vld [vmem:[%s2785 + $0x60] sm:$0xf]
        %v3097 = vld [vmem:[%s2785 + $0x64] sm:$0xf]
        %v3098 = vld [vmem:[%s2785 + $0x68] sm:$0x1]
        %v3099 = vld [vmem:[%s2785 + $0x6c] sm:$0xf]
        %v3100 = vld [vmem:[%s2785 + $0x70] sm:$0xf]
        %v3101 = vld [vmem:[%s2785 + $0x74] sm:$0x1]
        %v3102 = vld [vmem:[%s2785 + $0x78] sm:$0xf]
        %v3103 = vld [vmem:[%s2785 + $0x7c] sm:$0xf]
        %v3104 = vld [vmem:[%s2785 + $0x80] sm:$0x1]
        %v3105 = vld [vmem:[%s2785 + $0x84] sm:$0xf]
        %v3106 = vld [vmem:[%s2785 + $0x88] sm:$0xf]
        %v3107 = vld [vmem:[%s2785 + $0x8c] sm:$0x1]
        %v3108 = vld [vmem:[%s2785 + $0x90] sm:$0xf]
        %v3109 = vld [vmem:[%s2785 + $0x94] sm:$0xf]
        %v3110 = vld [vmem:[%s2785 + $0x98] sm:$0x1]
        %v3111 = vld [vmem:[%s2785 + $0x9c] sm:$0xf]
        %v3112 = vld [vmem:[%s2785 + $0xa0] sm:$0xf]
        %v3113 = vld [vmem:[%s2785 + $0xa4] sm:$0x1]
        %v3114 = vld [vmem:[%s2785 + $0xa8] sm:$0xf]
        %v3115 = vld [vmem:[%s2785 + $0xac] sm:$0xf]
        %v3116 = vld [vmem:[%s2785 + $0xb0] sm:$0x1]
        %v3117 = vld [vmem:[%s2785 + $0xb4] sm:$0xf]
        %v3118 = vld [vmem:[%s2785 + $0xb8] sm:$0xf]
        %v3119 = vld [vmem:[%s2785 + $0xbc] sm:$0x1]
        %v3121 = vshrl.u32 %v3072, 16
        %v3123 = vrot.slane %v3121, 4
        %v3124 = vshll.u32 %v3072, 16
        %v3126 = vrot.slane %v3124, 5
        %v3127 = vor.u32 %v3123, %v3126
        %v3128 = vrot.slane %v3127, 4
        %v3130 = vshll.u32 %v3073, 16
        %v3132 = vrot.slane %v3130, 5
        %v3133 = vsel %vm264, %v3128, %v3132
        %v3134 = vshrl.u32 %v3073, 16
        %v3136 = vrot.slane %v3134, 4
        %v3137 = vor.u32 %v3136, %v3132
        %v3138 = vrot.slane %v3137, 4
        %v3140 = vshll.u32 %v3074, 16
        %v3142 = vrot.slane %v3140, 5
        %v3143 = vsel %vm264, %v3138, %v3142
        %v3145 = vshrl.u32 %v3075, 16
        %v3147 = vrot.slane %v3145, 4
        %v3148 = vshll.u32 %v3075, 16
        %v3150 = vrot.slane %v3148, 5
        %v3151 = vor.u32 %v3147, %v3150
        %v3152 = vrot.slane %v3151, 4
        %v3154 = vshll.u32 %v3076, 16
        %v3156 = vrot.slane %v3154, 5
        %v3157 = vsel %vm264, %v3152, %v3156
        %v3158 = vshrl.u32 %v3076, 16
        %v3160 = vrot.slane %v3158, 4
        %v3161 = vor.u32 %v3160, %v3156
        %v3162 = vrot.slane %v3161, 4
        %v3164 = vshll.u32 %v3077, 16
        %v3166 = vrot.slane %v3164, 5
        %v3167 = vsel %vm264, %v3162, %v3166
        %v3169 = vshrl.u32 %v3078, 16
        %v3171 = vrot.slane %v3169, 4
        %v3172 = vshll.u32 %v3078, 16
        %v3174 = vrot.slane %v3172, 5
        %v3175 = vor.u32 %v3171, %v3174
        %v3176 = vrot.slane %v3175, 4
        %v3178 = vshll.u32 %v3079, 16
        %v3180 = vrot.slane %v3178, 5
        %v3181 = vsel %vm264, %v3176, %v3180
        %v3182 = vshrl.u32 %v3079, 16
        %v3184 = vrot.slane %v3182, 4
        %v3185 = vor.u32 %v3184, %v3180
        %v3186 = vrot.slane %v3185, 4
        %v3188 = vshll.u32 %v3080, 16
        %v3190 = vrot.slane %v3188, 5
        %v3191 = vsel %vm264, %v3186, %v3190
        %v3193 = vshrl.u32 %v3081, 16
        %v3195 = vrot.slane %v3193, 4
        %v3196 = vshll.u32 %v3081, 16
        %v3198 = vrot.slane %v3196, 5
        %v3199 = vor.u32 %v3195, %v3198
        %v3200 = vrot.slane %v3199, 4
        %v3202 = vshll.u32 %v3082, 16
        %v3204 = vrot.slane %v3202, 5
        %v3205 = vsel %vm264, %v3200, %v3204
        %v3206 = vshrl.u32 %v3082, 16
        %v3208 = vrot.slane %v3206, 4
        %v3209 = vor.u32 %v3208, %v3204
        %v3210 = vrot.slane %v3209, 4
        %v3212 = vshll.u32 %v3083, 16
        %v3214 = vrot.slane %v3212, 5
        %v3215 = vsel %vm264, %v3210, %v3214
        %v3217 = vshrl.u32 %v3084, 16
        %v3219 = vrot.slane %v3217, 4
        %v3220 = vshll.u32 %v3084, 16
        %v3222 = vrot.slane %v3220, 5
        %v3223 = vor.u32 %v3219, %v3222
        %v3224 = vrot.slane %v3223, 4
        %v3226 = vshll.u32 %v3085, 16
        %v3228 = vrot.slane %v3226, 5
        %v3229 = vsel %vm264, %v3224, %v3228
        %v3230 = vshrl.u32 %v3085, 16
        %v3232 = vrot.slane %v3230, 4
        %v3233 = vor.u32 %v3232, %v3228
        %v3234 = vrot.slane %v3233, 4
        %v3236 = vshll.u32 %v3086, 16
        %v3238 = vrot.slane %v3236, 5
        %v3239 = vsel %vm264, %v3234, %v3238
        %v3241 = vshrl.u32 %v3087, 16
        %v3243 = vrot.slane %v3241, 4
        %v3244 = vshll.u32 %v3087, 16
        %v3246 = vrot.slane %v3244, 5
        %v3247 = vor.u32 %v3243, %v3246
        %v3248 = vrot.slane %v3247, 4
        %v3250 = vshll.u32 %v3088, 16
        %v3252 = vrot.slane %v3250, 5
        %v3253 = vsel %vm264, %v3248, %v3252
        %v3254 = vshrl.u32 %v3088, 16
        %v3256 = vrot.slane %v3254, 4
        %v3257 = vor.u32 %v3256, %v3252
        %v3258 = vrot.slane %v3257, 4
        %v3260 = vshll.u32 %v3089, 16
        %v3262 = vrot.slane %v3260, 5
        %v3263 = vsel %vm264, %v3258, %v3262
        %v3265 = vshrl.u32 %v3090, 16
        %v3267 = vrot.slane %v3265, 4
        %v3268 = vshll.u32 %v3090, 16
        %v3270 = vrot.slane %v3268, 5
        %v3271 = vor.u32 %v3267, %v3270
        %v3272 = vrot.slane %v3271, 4
        %v3274 = vshll.u32 %v3091, 16
        %v3276 = vrot.slane %v3274, 5
        %v3277 = vsel %vm264, %v3272, %v3276
        %v3278 = vshrl.u32 %v3091, 16
        %v3280 = vrot.slane %v3278, 4
        %v3281 = vor.u32 %v3280, %v3276
        %v3282 = vrot.slane %v3281, 4
        %v3284 = vshll.u32 %v3092, 16
        %v3286 = vrot.slane %v3284, 5
        %v3287 = vsel %vm264, %v3282, %v3286
        %v3289 = vshrl.u32 %v3093, 16
        %v3291 = vrot.slane %v3289, 4
        %v3292 = vshll.u32 %v3093, 16
        %v3294 = vrot.slane %v3292, 5
        %v3295 = vor.u32 %v3291, %v3294
        %v3296 = vrot.slane %v3295, 4
        %v3298 = vshll.u32 %v3094, 16
        %v3300 = vrot.slane %v3298, 5
        %v3301 = vsel %vm264, %v3296, %v3300
        %v3302 = vshrl.u32 %v3094, 16
        %v3304 = vrot.slane %v3302, 4
        %v3305 = vor.u32 %v3304, %v3300
        %v3306 = vrot.slane %v3305, 4
        %v3308 = vshll.u32 %v3095, 16
        %v3310 = vrot.slane %v3308, 5
        %v3311 = vsel %vm264, %v3306, %v3310
        %v3313 = vshrl.u32 %v3096, 16
        %v3315 = vrot.slane %v3313, 4
        %v3316 = vshll.u32 %v3096, 16
        %v3318 = vrot.slane %v3316, 5
        %v3319 = vor.u32 %v3315, %v3318
        %v3320 = vrot.slane %v3319, 4
        %v3322 = vshll.u32 %v3097, 16
        %v3324 = vrot.slane %v3322, 5
        %v3325 = vsel %vm264, %v3320, %v3324
        %v3326 = vshrl.u32 %v3097, 16
        %v3328 = vrot.slane %v3326, 4
        %v3329 = vor.u32 %v3328, %v3324
        %v3330 = vrot.slane %v3329, 4
        %v3332 = vshll.u32 %v3098, 16
        %v3334 = vrot.slane %v3332, 5
        %v3335 = vsel %vm264, %v3330, %v3334
        %v3337 = vshrl.u32 %v3099, 16
        %v3339 = vrot.slane %v3337, 4
        %v3340 = vshll.u32 %v3099, 16
        %v3342 = vrot.slane %v3340, 5
        %v3343 = vor.u32 %v3339, %v3342
        %v3344 = vrot.slane %v3343, 4
        %v3346 = vshll.u32 %v3100, 16
        %v3348 = vrot.slane %v3346, 5
        %v3349 = vsel %vm264, %v3344, %v3348
        %v3350 = vshrl.u32 %v3100, 16
        %v3352 = vrot.slane %v3350, 4
        %v3353 = vor.u32 %v3352, %v3348
        %v3354 = vrot.slane %v3353, 4
        %v3356 = vshll.u32 %v3101, 16
        %v3358 = vrot.slane %v3356, 5
        %v3359 = vsel %vm264, %v3354, %v3358
        %v3361 = vshrl.u32 %v3102, 16
        %v3363 = vrot.slane %v3361, 4
        %v3364 = vshll.u32 %v3102, 16
        %v3366 = vrot.slane %v3364, 5
        %v3367 = vor.u32 %v3363, %v3366
        %v3368 = vrot.slane %v3367, 4
        %v3370 = vshll.u32 %v3103, 16
        %v3372 = vrot.slane %v3370, 5
        %v3373 = vsel %vm264, %v3368, %v3372
        %v3374 = vshrl.u32 %v3103, 16
        %v3376 = vrot.slane %v3374, 4
        %v3377 = vor.u32 %v3376, %v3372
        %v3378 = vrot.slane %v3377, 4
        %v3380 = vshll.u32 %v3104, 16
        %v3382 = vrot.slane %v3380, 5
        %v3383 = vsel %vm264, %v3378, %v3382
        %v3385 = vshrl.u32 %v3105, 16
        %v3387 = vrot.slane %v3385, 4
        %v3388 = vshll.u32 %v3105, 16
        %v3390 = vrot.slane %v3388, 5
        %v3391 = vor.u32 %v3387, %v3390
        %v3392 = vrot.slane %v3391, 4
        %v3394 = vshll.u32 %v3106, 16
        %v3396 = vrot.slane %v3394, 5
        %v3397 = vsel %vm264, %v3392, %v3396
        %v3398 = vshrl.u32 %v3106, 16
        %v3400 = vrot.slane %v3398, 4
        %v3401 = vor.u32 %v3400, %v3396
        %v3402 = vrot.slane %v3401, 4
        %v3404 = vshll.u32 %v3107, 16
        %v3406 = vrot.slane %v3404, 5
        %v3407 = vsel %vm264, %v3402, %v3406
        %v3409 = vshrl.u32 %v3108, 16
        %v3411 = vrot.slane %v3409, 4
        %v3412 = vshll.u32 %v3108, 16
        %v3414 = vrot.slane %v3412, 5
        %v3415 = vor.u32 %v3411, %v3414
        %v3416 = vrot.slane %v3415, 4
        %v3418 = vshll.u32 %v3109, 16
        %v3420 = vrot.slane %v3418, 5
        %v3421 = vsel %vm264, %v3416, %v3420
        %v3422 = vshrl.u32 %v3109, 16
        %v3424 = vrot.slane %v3422, 4
        %v3425 = vor.u32 %v3424, %v3420
        %v3426 = vrot.slane %v3425, 4
        %v3428 = vshll.u32 %v3110, 16
        %v3430 = vrot.slane %v3428, 5
        %v3431 = vsel %vm264, %v3426, %v3430
        %v3433 = vshrl.u32 %v3111, 16
        %v3435 = vrot.slane %v3433, 4
        %v3436 = vshll.u32 %v3111, 16
        %v3438 = vrot.slane %v3436, 5
        %v3439 = vor.u32 %v3435, %v3438
        %v3440 = vrot.slane %v3439, 4
        %v3442 = vshll.u32 %v3112, 16
        %v3444 = vrot.slane %v3442, 5
        %v3445 = vsel %vm264, %v3440, %v3444
        %v3446 = vshrl.u32 %v3112, 16
        %v3448 = vrot.slane %v3446, 4
        %v3449 = vor.u32 %v3448, %v3444
        %v3450 = vrot.slane %v3449, 4
        %v3452 = vshll.u32 %v3113, 16
        %v3454 = vrot.slane %v3452, 5
        %v3455 = vsel %vm264, %v3450, %v3454
        %v3457 = vshrl.u32 %v3114, 16
        %v3459 = vrot.slane %v3457, 4
        %v3460 = vshll.u32 %v3114, 16
        %v3462 = vrot.slane %v3460, 5
        %v3463 = vor.u32 %v3459, %v3462
        %v3464 = vrot.slane %v3463, 4
        %v3466 = vshll.u32 %v3115, 16
        %v3468 = vrot.slane %v3466, 5
        %v3469 = vsel %vm264, %v3464, %v3468
        %v3470 = vshrl.u32 %v3115, 16
        %v3472 = vrot.slane %v3470, 4
        %v3473 = vor.u32 %v3472, %v3468
        %v3474 = vrot.slane %v3473, 4
        %v3476 = vshll.u32 %v3116, 16
        %v3478 = vrot.slane %v3476, 5
        %v3479 = vsel %vm264, %v3474, %v3478
        %v3481 = vshrl.u32 %v3117, 16
        %v3483 = vrot.slane %v3481, 4
        %v3484 = vshll.u32 %v3117, 16
        %v3486 = vrot.slane %v3484, 5
        %v3487 = vor.u32 %v3483, %v3486
        %v3488 = vrot.slane %v3487, 4
        %v3490 = vshll.u32 %v3118, 16
        %v3492 = vrot.slane %v3490, 5
        %v3493 = vsel %vm264, %v3488, %v3492
        %v3494 = vshrl.u32 %v3118, 16
        %v3496 = vrot.slane %v3494, 4
        %v3497 = vor.u32 %v3496, %v3492
        %v3498 = vrot.slane %v3497, 4
        %v3500 = vshll.u32 %v3119, 16
        %v3502 = vrot.slane %v3500, 5
        %v3503 = vsel %vm264, %v3498, %v3502
        %s3504 = scalar_lea.vmem %s1, 14
        %v3505 = vld [vmem:[%s3504] sm:$0x3]
        %v3506 = vunpack.c.l.b16 %v3133
        %v3507 = vunpack.c.l.b16 %v3143
        %v3508 = vunpack.c.l.b16 %v3157
        %v3509 = vunpack.c.l.b16 %v3167
        %v3510 = vunpack.c.l.b16 %v3181
        %v3511 = vunpack.c.l.b16 %v3191
        %v3512 = vunpack.c.l.b16 %v3205
        %v3513 = vunpack.c.l.b16 %v3215
        %v3514 = vunpack.c.l.b16 %v3229
        %v3515 = vunpack.c.l.b16 %v3239
        %v3516 = vunpack.c.l.b16 %v3253
        %v3517 = vunpack.c.l.b16 %v3263
        %v3518 = vunpack.c.l.b16 %v3277
        %v3519 = vunpack.c.l.b16 %v3287
        %v3520 = vunpack.c.l.b16 %v3301
        %v3521 = vunpack.c.l.b16 %v3311
        %v3522 = vunpack.c.l.b16 %v3325
        %v3523 = vunpack.c.l.b16 %v3335
        %v3524 = vunpack.c.l.b16 %v3349
        %v3525 = vunpack.c.l.b16 %v3359
        %v3526 = vunpack.c.l.b16 %v3373
        %v3527 = vunpack.c.l.b16 %v3383
        %v3528 = vunpack.c.l.b16 %v3397
        %v3529 = vunpack.c.l.b16 %v3407
        %v3530 = vunpack.c.l.b16 %v3421
        %v3531 = vunpack.c.l.b16 %v3431
        %v3532 = vunpack.c.l.b16 %v3445
        %v3533 = vunpack.c.l.b16 %v3455
        %v3534 = vunpack.c.l.b16 %v3469
        %v3535 = vunpack.c.l.b16 %v3479
        %v3536 = vunpack.c.l.b16 %v3493
        %v3537 = vunpack.c.l.b16 %v3503
        %v3538 = vpack.c.b16 %v3507, %v3506
        %v3539 = vpack.c.b16 %v3509, %v3508
        %v3540 = vpack.c.b16 %v3511, %v3510
        %v3541 = vpack.c.b16 %v3513, %v3512
        %v3542 = vpack.c.b16 %v3515, %v3514
        %v3543 = vpack.c.b16 %v3517, %v3516
        %v3544 = vpack.c.b16 %v3519, %v3518
        %v3545 = vpack.c.b16 %v3521, %v3520
        %v3546 = vpack.c.b16 %v3523, %v3522
        %v3547 = vpack.c.b16 %v3525, %v3524
        %v3548 = vpack.c.b16 %v3527, %v3526
        %v3549 = vpack.c.b16 %v3529, %v3528
        %v3550 = vpack.c.b16 %v3531, %v3530
        %v3551 = vpack.c.b16 %v3533, %v3532
        %v3552 = vpack.c.b16 %v3535, %v3534
        %v3553 = vpack.c.b16 %v3537, %v3536
        %v3555 = vsel %vm699, %v3538, 0
        %v3558 = vsel %vm699, %v3539, 0
        %v3561 = vsel %vm699, %v3540, 0
        %v3564 = vsel %vm699, %v3541, 0
        %v3567 = vsel %vm699, %v3542, 0
        %v3570 = vsel %vm699, %v3543, 0
        %v3573 = vsel %vm699, %v3544, 0
        %v3576 = vsel %vm699, %v3545, 0
        %v3579 = vsel %vm699, %v3546, 0
        %v3582 = vsel %vm699, %v3547, 0
        %v3585 = vsel %vm699, %v3548, 0
        %v3588 = vsel %vm699, %v3549, 0
        %v3591 = vsel %vm699, %v3550, 0
        %v3594 = vsel %vm699, %v3551, 0
        %v3597 = vsel %vm699, %v3552, 0
        %v3600 = vsel %vm699, %v3553, 0
        %v3603 = vsel %vm748, %v3505, 0
        %3605 = vmatpush.bf16.msra.mxu0 0
        %3606 = vmatpush.bf16.msra.mxu0 0
        %3607 = vmatpush.bf16.msra.mxu0 0
        %3608 = vmatpush.bf16.msra.mxu0 0
        %3609 = vmatpush.bf16.msra.mxu0 0
        %3610 = vmatpush.bf16.msra.mxu0 0
        %3611 = vmatpush.bf16.msra.mxu0 0
        %3612 = vmatpush.bf16.msra.mxu0 %v3603
        %3613 = vmatmul.bf16.gmra.mxu0 %v3555
        %v3614 = vpop.f32.mrf.mxu0
        %v3615 = vadd.f32 0.0, %v3614
        %v3616 = vpop.f32.mrf.mxu0
        %v3617 = vadd.f32 0.0, %v3616
        %3618 = vmatmul.bf16.gmra.mxu0 %v3558
        %v3619 = vpop.f32.mrf.mxu0
        %v3620 = vadd.f32 0.0, %v3619
        %v3621 = vpop.f32.mrf.mxu0
        %v3622 = vadd.f32 0.0, %v3621
        %3623 = vmatmul.bf16.gmra.mxu0 %v3561
        %v3624 = vpop.f32.mrf.mxu0
        %v3625 = vadd.f32 0.0, %v3624
        %v3626 = vpop.f32.mrf.mxu0
        %v3627 = vadd.f32 0.0, %v3626
        %3628 = vmatmul.bf16.gmra.mxu0 %v3564
        %v3629 = vpop.f32.mrf.mxu0
        %v3630 = vadd.f32 0.0, %v3629
        %v3631 = vpop.f32.mrf.mxu0
        %v3632 = vadd.f32 0.0, %v3631
        %3633 = vmatmul.bf16.gmra.mxu0 %v3567
        %v3634 = vpop.f32.mrf.mxu0
        %v3635 = vadd.f32 0.0, %v3634
        %v3636 = vpop.f32.mrf.mxu0
        %v3637 = vadd.f32 0.0, %v3636
        %3638 = vmatmul.bf16.gmra.mxu0 %v3570
        %v3639 = vpop.f32.mrf.mxu0
        %v3640 = vadd.f32 0.0, %v3639
        %v3641 = vpop.f32.mrf.mxu0
        %v3642 = vadd.f32 0.0, %v3641
        %3643 = vmatmul.bf16.gmra.mxu0 %v3573
        %v3644 = vpop.f32.mrf.mxu0
        %v3645 = vadd.f32 0.0, %v3644
        %v3646 = vpop.f32.mrf.mxu0
        %v3647 = vadd.f32 0.0, %v3646
        %3648 = vmatmul.bf16.gmra.mxu0 %v3576
        %v3649 = vpop.f32.mrf.mxu0
        %v3650 = vadd.f32 0.0, %v3649
        %v3651 = vpop.f32.mrf.mxu0
        %v3652 = vadd.f32 0.0, %v3651
        %3653 = vmatmul.bf16.gmra.mxu0 %v3579
        %v3654 = vpop.f32.mrf.mxu0
        %v3655 = vadd.f32 0.0, %v3654
        %v3656 = vpop.f32.mrf.mxu0
        %v3657 = vadd.f32 0.0, %v3656
        %3658 = vmatmul.bf16.gmra.mxu0 %v3582
        %v3659 = vpop.f32.mrf.mxu0
        %v3660 = vadd.f32 0.0, %v3659
        %v3661 = vpop.f32.mrf.mxu0
        %v3662 = vadd.f32 0.0, %v3661
        %3663 = vmatmul.bf16.gmra.mxu0 %v3585
        %v3664 = vpop.f32.mrf.mxu0
        %v3665 = vadd.f32 0.0, %v3664
        %v3666 = vpop.f32.mrf.mxu0
        %v3667 = vadd.f32 0.0, %v3666
        %3668 = vmatmul.bf16.gmra.mxu0 %v3588
        %v3669 = vpop.f32.mrf.mxu0
        %v3670 = vadd.f32 0.0, %v3669
        %v3671 = vpop.f32.mrf.mxu0
        %v3672 = vadd.f32 0.0, %v3671
        %3673 = vmatmul.bf16.gmra.mxu0 %v3591
        %v3674 = vpop.f32.mrf.mxu0
        %v3675 = vadd.f32 0.0, %v3674
        %v3676 = vpop.f32.mrf.mxu0
        %v3677 = vadd.f32 0.0, %v3676
        %3678 = vmatmul.bf16.gmra.mxu0 %v3594
        %v3679 = vpop.f32.mrf.mxu0
        %v3680 = vadd.f32 0.0, %v3679
        %v3681 = vpop.f32.mrf.mxu0
        %v3682 = vadd.f32 0.0, %v3681
        %3683 = vmatmul.bf16.gmra.mxu0 %v3597
        %v3684 = vpop.f32.mrf.mxu0
        %v3685 = vadd.f32 0.0, %v3684
        %v3686 = vpop.f32.mrf.mxu0
        %v3687 = vadd.f32 0.0, %v3686
        %3688 = vmatmul.bf16.gmra.mxu0 %v3600
        %v3689 = vpop.f32.mrf.mxu0
        %v3690 = vadd.f32 0.0, %v3689
        %v3691 = vpop.f32.mrf.mxu0
        %v3692 = vadd.f32 0.0, %v3691
        %3693 = vdwg.mxu0
        %v3694 = vadd.f32 %v3040, %v3615
        %v3695 = vadd.f32 %v3041, %v3617
        %v3696 = vadd.f32 %v3042, %v3620
        %v3697 = vadd.f32 %v3043, %v3622
        %v3698 = vadd.f32 %v3044, %v3625
        %v3699 = vadd.f32 %v3045, %v3627
        %v3700 = vadd.f32 %v3046, %v3630
        %v3701 = vadd.f32 %v3047, %v3632
        %v3702 = vadd.f32 %v3048, %v3635
        %v3703 = vadd.f32 %v3049, %v3637
        %v3704 = vadd.f32 %v3050, %v3640
        %v3705 = vadd.f32 %v3051, %v3642
        %v3706 = vadd.f32 %v3052, %v3645
        %v3707 = vadd.f32 %v3053, %v3647
        %v3708 = vadd.f32 %v3054, %v3650
        %v3709 = vadd.f32 %v3055, %v3652
        %v3710 = vadd.f32 %v3056, %v3655
        %v3711 = vadd.f32 %v3057, %v3657
        %v3712 = vadd.f32 %v3058, %v3660
        %v3713 = vadd.f32 %v3059, %v3662
        %v3714 = vadd.f32 %v3060, %v3665
        %v3715 = vadd.f32 %v3061, %v3667
        %v3716 = vadd.f32 %v3062, %v3670
        %v3717 = vadd.f32 %v3063, %v3672
        %v3718 = vadd.f32 %v3064, %v3675
        %v3719 = vadd.f32 %v3065, %v3677
        %v3720 = vadd.f32 %v3066, %v3680
        %v3721 = vadd.f32 %v3067, %v3682
        %v3722 = vadd.f32 %v3068, %v3685
        %v3723 = vadd.f32 %v3069, %v3687
        %v3724 = vadd.f32 %v3070, %v3690
        %v3725 = vadd.f32 %v3071, %v3692
        %v3726 = vld [vmem:[%s2785] sm:$0xe]
        %v3727 = vld [vmem:[%s2785 + $0xc] sm:$0xe]
        %v3728 = vld [vmem:[%s2785 + $0x18] sm:$0xe]
        %v3729 = vld [vmem:[%s2785 + $0x24] sm:$0xe]
        %v3730 = vld [vmem:[%s2785 + $0x30] sm:$0xe]
        %v3731 = vld [vmem:[%s2785 + $0x3c] sm:$0xe]
        %v3732 = vld [vmem:[%s2785 + $0x48] sm:$0xe]
        %v3733 = vld [vmem:[%s2785 + $0x54] sm:$0xe]
        %v3734 = vld [vmem:[%s2785 + $0x60] sm:$0xe]
        %v3735 = vld [vmem:[%s2785 + $0x6c] sm:$0xe]
        %v3736 = vld [vmem:[%s2785 + $0x78] sm:$0xe]
        %v3737 = vld [vmem:[%s2785 + $0x84] sm:$0xe]
        %v3738 = vld [vmem:[%s2785 + $0x90] sm:$0xe]
        %v3739 = vld [vmem:[%s2785 + $0x9c] sm:$0xe]
        %v3740 = vld [vmem:[%s2785 + $0xa8] sm:$0xe]
        %v3741 = vld [vmem:[%s2785 + $0xb4] sm:$0xe]
        %v3790 = vrot.slane %v3726, 5
        %v3791 = vrot.slane %v3790, 4
        %v3792 = vrot.slane %v3073, 5
        %v3793 = vsel %vm1111, %v3791, %v3792
        %v3794 = vrot.slane %v3792, 4
        %v3795 = vrot.slane %v3074, 5
        %v3796 = vsel %vm1111, %v3794, %v3795
        %v3797 = vrot.slane %v3727, 5
        %v3798 = vrot.slane %v3797, 4
        %v3799 = vrot.slane %v3076, 5
        %v3800 = vsel %vm1111, %v3798, %v3799
        %v3801 = vrot.slane %v3799, 4
        %v3802 = vrot.slane %v3077, 5
        %v3803 = vsel %vm1111, %v3801, %v3802
        %v3804 = vrot.slane %v3728, 5
        %v3805 = vrot.slane %v3804, 4
        %v3806 = vrot.slane %v3079, 5
        %v3807 = vsel %vm1111, %v3805, %v3806
        %v3808 = vrot.slane %v3806, 4
        %v3809 = vrot.slane %v3080, 5
        %v3810 = vsel %vm1111, %v3808, %v3809
        %v3811 = vrot.slane %v3729, 5
        %v3812 = vrot.slane %v3811, 4
        %v3813 = vrot.slane %v3082, 5
        %v3814 = vsel %vm1111, %v3812, %v3813
        %v3815 = vrot.slane %v3813, 4
        %v3816 = vrot.slane %v3083, 5
        %v3817 = vsel %vm1111, %v3815, %v3816
        %v3818 = vrot.slane %v3730, 5
        %v3819 = vrot.slane %v3818, 4
        %v3820 = vrot.slane %v3085, 5
        %v3821 = vsel %vm1111, %v3819, %v3820
        %v3822 = vrot.slane %v3820, 4
        %v3823 = vrot.slane %v3086, 5
        %v3824 = vsel %vm1111, %v3822, %v3823
        %v3825 = vrot.slane %v3731, 5
        %v3826 = vrot.slane %v3825, 4
        %v3827 = vrot.slane %v3088, 5
        %v3828 = vsel %vm1111, %v3826, %v3827
        %v3829 = vrot.slane %v3827, 4
        %v3830 = vrot.slane %v3089, 5
        %v3831 = vsel %vm1111, %v3829, %v3830
        %v3832 = vrot.slane %v3732, 5
        %v3833 = vrot.slane %v3832, 4
        %v3834 = vrot.slane %v3091, 5
        %v3835 = vsel %vm1111, %v3833, %v3834
        %v3836 = vrot.slane %v3834, 4
        %v3837 = vrot.slane %v3092, 5
        %v3838 = vsel %vm1111, %v3836, %v3837
        %v3839 = vrot.slane %v3733, 5
        %v3840 = vrot.slane %v3839, 4
        %v3841 = vrot.slane %v3094, 5
        %v3842 = vsel %vm1111, %v3840, %v3841
        %v3843 = vrot.slane %v3841, 4
        %v3844 = vrot.slane %v3095, 5
        %v3845 = vsel %vm1111, %v3843, %v3844
        %v3846 = vrot.slane %v3734, 5
        %v3847 = vrot.slane %v3846, 4
        %v3848 = vrot.slane %v3097, 5
        %v3849 = vsel %vm1111, %v3847, %v3848
        %v3850 = vrot.slane %v3848, 4
        %v3851 = vrot.slane %v3098, 5
        %v3852 = vsel %vm1111, %v3850, %v3851
        %v3853 = vrot.slane %v3735, 5
        %v3854 = vrot.slane %v3853, 4
        %v3855 = vrot.slane %v3100, 5
        %v3856 = vsel %vm1111, %v3854, %v3855
        %v3857 = vrot.slane %v3855, 4
        %v3858 = vrot.slane %v3101, 5
        %v3859 = vsel %vm1111, %v3857, %v3858
        %v3860 = vrot.slane %v3736, 5
        %v3861 = vrot.slane %v3860, 4
        %v3862 = vrot.slane %v3103, 5
        %v3863 = vsel %vm1111, %v3861, %v3862
        %v3864 = vrot.slane %v3862, 4
        %v3865 = vrot.slane %v3104, 5
        %v3866 = vsel %vm1111, %v3864, %v3865
        %v3867 = vrot.slane %v3737, 5
        %v3868 = vrot.slane %v3867, 4
        %v3869 = vrot.slane %v3106, 5
        %v3870 = vsel %vm1111, %v3868, %v3869
        %v3871 = vrot.slane %v3869, 4
        %v3872 = vrot.slane %v3107, 5
        %v3873 = vsel %vm1111, %v3871, %v3872
        %v3874 = vrot.slane %v3738, 5
        %v3875 = vrot.slane %v3874, 4
        %v3876 = vrot.slane %v3109, 5
        %v3877 = vsel %vm1111, %v3875, %v3876
        %v3878 = vrot.slane %v3876, 4
        %v3879 = vrot.slane %v3110, 5
        %v3880 = vsel %vm1111, %v3878, %v3879
        %v3881 = vrot.slane %v3739, 5
        %v3882 = vrot.slane %v3881, 4
        %v3883 = vrot.slane %v3112, 5
        %v3884 = vsel %vm1111, %v3882, %v3883
        %v3885 = vrot.slane %v3883, 4
        %v3886 = vrot.slane %v3113, 5
        %v3887 = vsel %vm1111, %v3885, %v3886
        %v3888 = vrot.slane %v3740, 5
        %v3889 = vrot.slane %v3888, 4
        %v3890 = vrot.slane %v3115, 5
        %v3891 = vsel %vm1111, %v3889, %v3890
        %v3892 = vrot.slane %v3890, 4
        %v3893 = vrot.slane %v3116, 5
        %v3894 = vsel %vm1111, %v3892, %v3893
        %v3895 = vrot.slane %v3741, 5
        %v3896 = vrot.slane %v3895, 4
        %v3897 = vrot.slane %v3118, 5
        %v3898 = vsel %vm1111, %v3896, %v3897
        %v3899 = vrot.slane %v3897, 4
        %v3900 = vrot.slane %v3119, 5
        %v3901 = vsel %vm1111, %v3899, %v3900
        %s3902 = scalar_lea.vmem %s1, 16
        %v3903 = vld [vmem:[%s3902] sm:$0x3]
        %v3904 = vunpack.c.l.b16 %v3793
        %v3905 = vunpack.c.l.b16 %v3796
        %v3906 = vunpack.c.l.b16 %v3800
        %v3907 = vunpack.c.l.b16 %v3803
        %v3908 = vunpack.c.l.b16 %v3807
        %v3909 = vunpack.c.l.b16 %v3810
        %v3910 = vunpack.c.l.b16 %v3814
        %v3911 = vunpack.c.l.b16 %v3817
        %v3912 = vunpack.c.l.b16 %v3821
        %v3913 = vunpack.c.l.b16 %v3824
        %v3914 = vunpack.c.l.b16 %v3828
        %v3915 = vunpack.c.l.b16 %v3831
        %v3916 = vunpack.c.l.b16 %v3835
        %v3917 = vunpack.c.l.b16 %v3838
        %v3918 = vunpack.c.l.b16 %v3842
        %v3919 = vunpack.c.l.b16 %v3845
        %v3920 = vunpack.c.l.b16 %v3849
        %v3921 = vunpack.c.l.b16 %v3852
        %v3922 = vunpack.c.l.b16 %v3856
        %v3923 = vunpack.c.l.b16 %v3859
        %v3924 = vunpack.c.l.b16 %v3863
        %v3925 = vunpack.c.l.b16 %v3866
        %v3926 = vunpack.c.l.b16 %v3870
        %v3927 = vunpack.c.l.b16 %v3873
        %v3928 = vunpack.c.l.b16 %v3877
        %v3929 = vunpack.c.l.b16 %v3880
        %v3930 = vunpack.c.l.b16 %v3884
        %v3931 = vunpack.c.l.b16 %v3887
        %v3932 = vunpack.c.l.b16 %v3891
        %v3933 = vunpack.c.l.b16 %v3894
        %v3934 = vunpack.c.l.b16 %v3898
        %v3935 = vunpack.c.l.b16 %v3901
        %v3936 = vpack.c.b16 %v3905, %v3904
        %v3937 = vpack.c.b16 %v3907, %v3906
        %v3938 = vpack.c.b16 %v3909, %v3908
        %v3939 = vpack.c.b16 %v3911, %v3910
        %v3940 = vpack.c.b16 %v3913, %v3912
        %v3941 = vpack.c.b16 %v3915, %v3914
        %v3942 = vpack.c.b16 %v3917, %v3916
        %v3943 = vpack.c.b16 %v3919, %v3918
        %v3944 = vpack.c.b16 %v3921, %v3920
        %v3945 = vpack.c.b16 %v3923, %v3922
        %v3946 = vpack.c.b16 %v3925, %v3924
        %v3947 = vpack.c.b16 %v3927, %v3926
        %v3948 = vpack.c.b16 %v3929, %v3928
        %v3949 = vpack.c.b16 %v3931, %v3930
        %v3950 = vpack.c.b16 %v3933, %v3932
        %v3951 = vpack.c.b16 %v3935, %v3934
        %v3953 = vsel %vm699, %v3936, 0
        %v3956 = vsel %vm699, %v3937, 0
        %v3959 = vsel %vm699, %v3938, 0
        %v3962 = vsel %vm699, %v3939, 0
        %v3965 = vsel %vm699, %v3940, 0
        %v3968 = vsel %vm699, %v3941, 0
        %v3971 = vsel %vm699, %v3942, 0
        %v3974 = vsel %vm699, %v3943, 0
        %v3977 = vsel %vm699, %v3944, 0
        %v3980 = vsel %vm699, %v3945, 0
        %v3983 = vsel %vm699, %v3946, 0
        %v3986 = vsel %vm699, %v3947, 0
        %v3989 = vsel %vm699, %v3948, 0
        %v3992 = vsel %vm699, %v3949, 0
        %v3995 = vsel %vm699, %v3950, 0
        %v3998 = vsel %vm699, %v3951, 0
        %v4001 = vsel %vm748, %v3903, 0
        %4003 = vmatpush.bf16.msra.mxu0 0
        %4004 = vmatpush.bf16.msra.mxu0 0
        %4005 = vmatpush.bf16.msra.mxu0 0
        %4006 = vmatpush.bf16.msra.mxu0 0
        %4007 = vmatpush.bf16.msra.mxu0 0
        %4008 = vmatpush.bf16.msra.mxu0 0
        %4009 = vmatpush.bf16.msra.mxu0 0
        %4010 = vmatpush.bf16.msra.mxu0 %v4001
        %4011 = vmatmul.bf16.gmra.mxu0 %v3953
        %v4012 = vpop.f32.mrf.mxu0
        %v4013 = vadd.f32 0.0, %v4012
        %v4014 = vpop.f32.mrf.mxu0
        %v4015 = vadd.f32 0.0, %v4014
        %4016 = vmatmul.bf16.gmra.mxu0 %v3956
        %v4017 = vpop.f32.mrf.mxu0
        %v4018 = vadd.f32 0.0, %v4017
        %v4019 = vpop.f32.mrf.mxu0
        %v4020 = vadd.f32 0.0, %v4019
        %4021 = vmatmul.bf16.gmra.mxu0 %v3959
        %v4022 = vpop.f32.mrf.mxu0
        %v4023 = vadd.f32 0.0, %v4022
        %v4024 = vpop.f32.mrf.mxu0
        %v4025 = vadd.f32 0.0, %v4024
        %4026 = vmatmul.bf16.gmra.mxu0 %v3962
        %v4027 = vpop.f32.mrf.mxu0
        %v4028 = vadd.f32 0.0, %v4027
        %v4029 = vpop.f32.mrf.mxu0
        %v4030 = vadd.f32 0.0, %v4029
        %4031 = vmatmul.bf16.gmra.mxu0 %v3965
        %v4032 = vpop.f32.mrf.mxu0
        %v4033 = vadd.f32 0.0, %v4032
        %v4034 = vpop.f32.mrf.mxu0
        %v4035 = vadd.f32 0.0, %v4034
        %4036 = vmatmul.bf16.gmra.mxu0 %v3968
        %v4037 = vpop.f32.mrf.mxu0
        %v4038 = vadd.f32 0.0, %v4037
        %v4039 = vpop.f32.mrf.mxu0
        %v4040 = vadd.f32 0.0, %v4039
        %4041 = vmatmul.bf16.gmra.mxu0 %v3971
        %v4042 = vpop.f32.mrf.mxu0
        %v4043 = vadd.f32 0.0, %v4042
        %v4044 = vpop.f32.mrf.mxu0
        %v4045 = vadd.f32 0.0, %v4044
        %4046 = vmatmul.bf16.gmra.mxu0 %v3974
        %v4047 = vpop.f32.mrf.mxu0
        %v4048 = vadd.f32 0.0, %v4047
        %v4049 = vpop.f32.mrf.mxu0
        %v4050 = vadd.f32 0.0, %v4049
        %4051 = vmatmul.bf16.gmra.mxu0 %v3977
        %v4052 = vpop.f32.mrf.mxu0
        %v4053 = vadd.f32 0.0, %v4052
        %v4054 = vpop.f32.mrf.mxu0
        %v4055 = vadd.f32 0.0, %v4054
        %4056 = vmatmul.bf16.gmra.mxu0 %v3980
        %v4057 = vpop.f32.mrf.mxu0
        %v4058 = vadd.f32 0.0, %v4057
        %v4059 = vpop.f32.mrf.mxu0
        %v4060 = vadd.f32 0.0, %v4059
        %4061 = vmatmul.bf16.gmra.mxu0 %v3983
        %v4062 = vpop.f32.mrf.mxu0
        %v4063 = vadd.f32 0.0, %v4062
        %v4064 = vpop.f32.mrf.mxu0
        %v4065 = vadd.f32 0.0, %v4064
        %4066 = vmatmul.bf16.gmra.mxu0 %v3986
        %v4067 = vpop.f32.mrf.mxu0
        %v4068 = vadd.f32 0.0, %v4067
        %v4069 = vpop.f32.mrf.mxu0
        %v4070 = vadd.f32 0.0, %v4069
        %4071 = vmatmul.bf16.gmra.mxu0 %v3989
        %v4072 = vpop.f32.mrf.mxu0
        %v4073 = vadd.f32 0.0, %v4072
        %v4074 = vpop.f32.mrf.mxu0
        %v4075 = vadd.f32 0.0, %v4074
        %4076 = vmatmul.bf16.gmra.mxu0 %v3992
        %v4077 = vpop.f32.mrf.mxu0
        %v4078 = vadd.f32 0.0, %v4077
        %v4079 = vpop.f32.mrf.mxu0
        %v4080 = vadd.f32 0.0, %v4079
        %4081 = vmatmul.bf16.gmra.mxu0 %v3995
        %v4082 = vpop.f32.mrf.mxu0
        %v4083 = vadd.f32 0.0, %v4082
        %v4084 = vpop.f32.mrf.mxu0
        %v4085 = vadd.f32 0.0, %v4084
        %4086 = vmatmul.bf16.gmra.mxu0 %v3998
        %v4087 = vpop.f32.mrf.mxu0
        %v4088 = vadd.f32 0.0, %v4087
        %v4089 = vpop.f32.mrf.mxu0
        %v4090 = vadd.f32 0.0, %v4089
        %4091 = vdwg.mxu0
        %v4092 = vadd.f32 %v3694, %v4013
        %v4093 = vadd.f32 %v3695, %v4015
        %v4094 = vadd.f32 %v3696, %v4018
        %v4095 = vadd.f32 %v3697, %v4020
        %v4096 = vadd.f32 %v3698, %v4023
        %v4097 = vadd.f32 %v3699, %v4025
        %v4098 = vadd.f32 %v3700, %v4028
        %v4099 = vadd.f32 %v3701, %v4030
        %v4100 = vadd.f32 %v3702, %v4033
        %v4101 = vadd.f32 %v3703, %v4035
        %v4102 = vadd.f32 %v3704, %v4038
        %v4103 = vadd.f32 %v3705, %v4040
        %v4104 = vadd.f32 %v3706, %v4043
        %v4105 = vadd.f32 %v3707, %v4045
        %v4106 = vadd.f32 %v3708, %v4048
        %v4107 = vadd.f32 %v3709, %v4050
        %v4108 = vadd.f32 %v3710, %v4053
        %v4109 = vadd.f32 %v3711, %v4055
        %v4110 = vadd.f32 %v3712, %v4058
        %v4111 = vadd.f32 %v3713, %v4060
        %v4112 = vadd.f32 %v3714, %v4063
        %v4113 = vadd.f32 %v3715, %v4065
        %v4114 = vadd.f32 %v3716, %v4068
        %v4115 = vadd.f32 %v3717, %v4070
        %v4116 = vadd.f32 %v3718, %v4073
        %v4117 = vadd.f32 %v3719, %v4075
        %v4118 = vadd.f32 %v3720, %v4078
        %v4119 = vadd.f32 %v3721, %v4080
        %v4120 = vadd.f32 %v3722, %v4083
        %v4121 = vadd.f32 %v3723, %v4085
        %v4122 = vadd.f32 %v3724, %v4088
        %v4123 = vadd.f32 %v3725, %v4090
        %v4124 = vadd.f32 %v4092, %v4093
        %v4125 = vadd.f32 %v4124, %v4094
        %v4126 = vadd.f32 %v4125, %v4095
        %v4127 = vadd.f32 %v4126, %v4096
        %v4128 = vadd.f32 %v4127, %v4097
        %v4129 = vadd.f32 %v4128, %v4098
        %v4130 = vadd.f32 %v4129, %v4099
        %v4131 = vadd.f32 %v4130, %v4100
        %v4132 = vadd.f32 %v4131, %v4101
        %v4133 = vadd.f32 %v4132, %v4102
        %v4134 = vadd.f32 %v4133, %v4103
        %v4135 = vadd.f32 %v4134, %v4104
        %v4136 = vadd.f32 %v4135, %v4105
        %v4137 = vadd.f32 %v4136, %v4106
        %v4138 = vadd.f32 %v4137, %v4107
        %v4139 = vadd.f32 %v4138, %v4108
        %v4140 = vadd.f32 %v4139, %v4109
        %v4141 = vadd.f32 %v4140, %v4110
        %v4142 = vadd.f32 %v4141, %v4111
        %v4143 = vadd.f32 %v4142, %v4112
        %v4144 = vadd.f32 %v4143, %v4113
        %v4145 = vadd.f32 %v4144, %v4114
        %v4146 = vadd.f32 %v4145, %v4115
        %v4147 = vadd.f32 %v4146, %v4116
        %v4148 = vadd.f32 %v4147, %v4117
        %v4149 = vadd.f32 %v4148, %v4118
        %v4150 = vadd.f32 %v4149, %v4119
        %v4151 = vadd.f32 %v4150, %v4120
        %v4152 = vadd.f32 %v4151, %v4121
        %v4153 = vadd.f32 %v4152, %v4122
        %v4154 = vadd.f32 %v4153, %v4123
        %v4155 = vrot.slane %v4154, 4
        %v4156 = vadd.f32 %v4154, %v4155
        %v4157 = vrot.slane %v4156, 2
        %v4158 = vadd.f32 %v4156, %v4157
        %v4159 = vrot.slane %v4158, 1
        %v4160 = vadd.f32 %v4158, %v4159
        %4161 = vst [vmem:[%s200] sm:$0x1] %v4160
        %v4162 = vmul.f32 %v4092, %v4092
        %v4163 = vmul.f32 %v4093, %v4093
        %v4164 = vmul.f32 %v4094, %v4094
        %v4165 = vmul.f32 %v4095, %v4095
        %v4166 = vmul.f32 %v4096, %v4096
        %v4167 = vmul.f32 %v4097, %v4097
        %v4168 = vmul.f32 %v4098, %v4098
        %v4169 = vmul.f32 %v4099, %v4099
        %v4170 = vmul.f32 %v4100, %v4100
        %v4171 = vmul.f32 %v4101, %v4101
        %v4172 = vmul.f32 %v4102, %v4102
        %v4173 = vmul.f32 %v4103, %v4103
        %v4174 = vmul.f32 %v4104, %v4104
        %v4175 = vmul.f32 %v4105, %v4105
        %v4176 = vmul.f32 %v4106, %v4106
        %v4177 = vmul.f32 %v4107, %v4107
        %v4178 = vmul.f32 %v4108, %v4108
        %v4179 = vmul.f32 %v4109, %v4109
        %v4180 = vmul.f32 %v4110, %v4110
        %v4181 = vmul.f32 %v4111, %v4111
        %v4182 = vmul.f32 %v4112, %v4112
        %v4183 = vmul.f32 %v4113, %v4113
        %v4184 = vmul.f32 %v4114, %v4114
        %v4185 = vmul.f32 %v4115, %v4115
        %v4186 = vmul.f32 %v4116, %v4116
        %v4187 = vmul.f32 %v4117, %v4117
        %v4188 = vmul.f32 %v4118, %v4118
        %v4189 = vmul.f32 %v4119, %v4119
        %v4190 = vmul.f32 %v4120, %v4120
        %v4191 = vmul.f32 %v4121, %v4121
        %v4192 = vmul.f32 %v4122, %v4122
        %v4193 = vmul.f32 %v4123, %v4123
        %v4194 = vadd.f32 %v4162, %v4163
        %v4195 = vadd.f32 %v4194, %v4164
        %v4196 = vadd.f32 %v4195, %v4165
        %v4197 = vadd.f32 %v4196, %v4166
        %v4198 = vadd.f32 %v4197, %v4167
        %v4199 = vadd.f32 %v4198, %v4168
        %v4200 = vadd.f32 %v4199, %v4169
        %v4201 = vadd.f32 %v4200, %v4170
        %v4202 = vadd.f32 %v4201, %v4171
        %v4203 = vadd.f32 %v4202, %v4172
        %v4204 = vadd.f32 %v4203, %v4173
        %v4205 = vadd.f32 %v4204, %v4174
        %v4206 = vadd.f32 %v4205, %v4175
        %v4207 = vadd.f32 %v4206, %v4176
        %v4208 = vadd.f32 %v4207, %v4177
        %v4209 = vadd.f32 %v4208, %v4178
        %v4210 = vadd.f32 %v4209, %v4179
        %v4211 = vadd.f32 %v4210, %v4180
        %v4212 = vadd.f32 %v4211, %v4181
        %v4213 = vadd.f32 %v4212, %v4182
        %v4214 = vadd.f32 %v4213, %v4183
        %v4215 = vadd.f32 %v4214, %v4184
        %v4216 = vadd.f32 %v4215, %v4185
        %v4217 = vadd.f32 %v4216, %v4186
        %v4218 = vadd.f32 %v4217, %v4187
        %v4219 = vadd.f32 %v4218, %v4188
        %v4220 = vadd.f32 %v4219, %v4189
        %v4221 = vadd.f32 %v4220, %v4190
        %v4222 = vadd.f32 %v4221, %v4191
        %v4223 = vadd.f32 %v4222, %v4192
        %v4224 = vadd.f32 %v4223, %v4193
        %v4225 = vrot.slane %v4224, 4
        %v4226 = vadd.f32 %v4224, %v4225
        %v4227 = vrot.slane %v4226, 2
        %v4228 = vadd.f32 %v4226, %v4227
        %v4229 = vrot.slane %v4228, 1
        %v4230 = vadd.f32 %v4228, %v4229
        %4231 = vst [vmem:[%s206] sm:$0x1] %v4230
        %v4232 = vpack.c.bf16 %v4092, %v4092
        %v4233 = vpack.c.bf16 %v4093, %v4093
        %v4234 = vpack.c.bf16 %v4094, %v4094
        %v4235 = vpack.c.bf16 %v4095, %v4095
        %v4236 = vpack.c.bf16 %v4096, %v4096
        %v4237 = vpack.c.bf16 %v4097, %v4097
        %v4238 = vpack.c.bf16 %v4098, %v4098
        %v4239 = vpack.c.bf16 %v4099, %v4099
        %v4240 = vpack.c.bf16 %v4100, %v4100
        %v4241 = vpack.c.bf16 %v4101, %v4101
        %v4242 = vpack.c.bf16 %v4102, %v4102
        %v4243 = vpack.c.bf16 %v4103, %v4103
        %v4244 = vpack.c.bf16 %v4104, %v4104
        %v4245 = vpack.c.bf16 %v4105, %v4105
        %v4246 = vpack.c.bf16 %v4106, %v4106
        %v4247 = vpack.c.bf16 %v4107, %v4107
        %v4248 = vpack.c.bf16 %v4108, %v4108
        %v4249 = vpack.c.bf16 %v4109, %v4109
        %v4250 = vpack.c.bf16 %v4110, %v4110
        %v4251 = vpack.c.bf16 %v4111, %v4111
        %v4252 = vpack.c.bf16 %v4112, %v4112
        %v4253 = vpack.c.bf16 %v4113, %v4113
        %v4254 = vpack.c.bf16 %v4114, %v4114
        %v4255 = vpack.c.bf16 %v4115, %v4115
        %v4256 = vpack.c.bf16 %v4116, %v4116
        %v4257 = vpack.c.bf16 %v4117, %v4117
        %v4258 = vpack.c.bf16 %v4118, %v4118
        %v4259 = vpack.c.bf16 %v4119, %v4119
        %v4260 = vpack.c.bf16 %v4120, %v4120
        %v4261 = vpack.c.bf16 %v4121, %v4121
        %v4262 = vpack.c.bf16 %v4122, %v4122
        %v4263 = vpack.c.bf16 %v4123, %v4123
        %4264 = vst [vmem:[%s194] sm:$0xf] %v4232
        %4265 = vst [vmem:[%s194 + $0x4] sm:$0xf] %v4233
        %4266 = vst [vmem:[%s194 + $0x8] sm:$0xf] %v4234
        %4267 = vst [vmem:[%s194 + $0xc] sm:$0xf] %v4235
        %4268 = vst [vmem:[%s194 + $0x10] sm:$0xf] %v4236
        %4269 = vst [vmem:[%s194 + $0x14] sm:$0xf] %v4237
        %4270 = vst [vmem:[%s194 + $0x18] sm:$0xf] %v4238
        %4271 = vst [vmem:[%s194 + $0x1c] sm:$0xf] %v4239
        %4272 = vst [vmem:[%s194 + $0x20] sm:$0xf] %v4240
        %4273 = vst [vmem:[%s194 + $0x24] sm:$0xf] %v4241
        %4274 = vst [vmem:[%s194 + $0x28] sm:$0xf] %v4242
        %4275 = vst [vmem:[%s194 + $0x2c] sm:$0xf] %v4243
        %4276 = vst [vmem:[%s194 + $0x30] sm:$0xf] %v4244
        %4277 = vst [vmem:[%s194 + $0x34] sm:$0xf] %v4245
        %4278 = vst [vmem:[%s194 + $0x38] sm:$0xf] %v4246
        %4279 = vst [vmem:[%s194 + $0x3c] sm:$0xf] %v4247
        %4280 = vst [vmem:[%s194 + $0x40] sm:$0xf] %v4248
        %4281 = vst [vmem:[%s194 + $0x44] sm:$0xf] %v4249
        %4282 = vst [vmem:[%s194 + $0x48] sm:$0xf] %v4250
        %4283 = vst [vmem:[%s194 + $0x4c] sm:$0xf] %v4251
        %4284 = vst [vmem:[%s194 + $0x50] sm:$0xf] %v4252
        %4285 = vst [vmem:[%s194 + $0x54] sm:$0xf] %v4253
        %4286 = vst [vmem:[%s194 + $0x58] sm:$0xf] %v4254
        %4287 = vst [vmem:[%s194 + $0x5c] sm:$0xf] %v4255
        %4288 = vst [vmem:[%s194 + $0x60] sm:$0xf] %v4256
        %4289 = vst [vmem:[%s194 + $0x64] sm:$0xf] %v4257
        %4290 = vst [vmem:[%s194 + $0x68] sm:$0xf] %v4258
        %4291 = vst [vmem:[%s194 + $0x6c] sm:$0xf] %v4259
        %4292 = vst [vmem:[%s194 + $0x70] sm:$0xf] %v4260
        %4293 = vst [vmem:[%s194 + $0x74] sm:$0xf] %v4261
        %4294 = vst [vmem:[%s194 + $0x78] sm:$0xf] %v4262
        %4295 = vst [vmem:[%s194 + $0x7c] sm:$0xf] %v4263
        %s4296 = sand.u32 %s77, 1
        %s4297 = scalar_lea.sflag [#allocation3], %s4296
        %s4298 = sand.u32 %s77, 1
        %s4299 = smul.addr %s4298, 128
        %s4300 = scalar_lea.vmem [#allocation2], %s4299
        %s4301 = sand.u32 %s22, 1
        %s4302 = scalar_lea.sflag [#allocation5], %s4301
        %s4303 = sand.u32 %s103, 1
        %s4304 = scalar_lea.vmem [#allocation4], %s4303
        %s4305 = sand.u32 %s22, 1
        %s4306 = scalar_lea.sflag [#allocation5], %s4305
        %s4307 = sand.u32 %s129, 1
        %s4308 = scalar_lea.vmem [#allocation6], %s4307
        // Predicated region
        $region29: #{tpu_custom_call.1} parent=27 // pred_check
          %p4309 = pneg %p87
        $region30: #{tpu_custom_call.1} parent=27 // pred_check_branch
          %4311 = sbr.rel (%p4309) target = $region32
        $region31: #{tpu_custom_call.1} parent=27 // pred_region
          %4313 = vsyncadd %s4297, 0
          %s4314 = smul.addr %s22, 32
          %s4315 = smul.addr %s4314, 4
          %s4316 = scalar_lea.hbm %s2, %s4315
          %s4317 = sshll.u32 %s4300, 4
          %s4318 = int_to_ptr.vmem [resolvable:$true] %s4317
          %s4319 = sshll.u32 %s4316, 4
          %s4320 = int_to_ptr.hbm [resolvable:$true] %s4319
          %4325 = dma.vmem_to_hbm [thread:$0]  %s4318, 2048, %s4320, %s4297, 64, 64, 4
        $region32: #{tpu_custom_call.1} parent=27 // pred_fallthru
          _
        // Predicated region
        $region33: #{tpu_custom_call.1} parent=27 // pred_check
          %p4326 = pneg %p113
        $region34: #{tpu_custom_call.1} parent=27 // pred_check_branch
          %4328 = sbr.rel (%p4326) target = $region36
        $region35: #{tpu_custom_call.1} parent=27 // pred_region
          %4330 = vsyncadd %s4302, 0
          %s4331 = scalar_lea.hbm %s3, %s22
          %s4333 = sshll.u32 %s4304, 4
          %s4334 = int_to_ptr.vmem [resolvable:$true] %s4333
          %s4335 = sshll.u32 %s4331, 4
          %s4336 = int_to_ptr.hbm [resolvable:$true] %s4335
          %4338 = dma.vmem_to_hbm [thread:$0]  %s4334, 16, %s4336, %s4302
        $region36: #{tpu_custom_call.1} parent=27 // pred_fallthru
          _
        // Predicated region
        $region37: #{tpu_custom_call.1} parent=27 // pred_check
          %p4339 = pneg %p139
        $region38: #{tpu_custom_call.1} parent=27 // pred_check_branch
          %4341 = sbr.rel (%p4339) target = $region40
        $region39: #{tpu_custom_call.1} parent=27 // pred_region
          %4343 = vsyncadd %s4306, 0
          %s4344 = scalar_lea.hbm %s4, %s22
          %s4346 = sshll.u32 %s4308, 4
          %s4347 = int_to_ptr.vmem [resolvable:$true] %s4346
          %s4348 = sshll.u32 %s4344, 4
          %s4349 = int_to_ptr.hbm [resolvable:$true] %s4348
          %4351 = dma.vmem_to_hbm [thread:$0]  %s4347, 16, %s4349, %s4306
        $region40: #{tpu_custom_call.1} parent=27 // pred_fallthru
          _
      $region28: #{tpu_custom_call.1} parent=5 // pred_fallthru
        _
      %p4352 = scmp.le.s32.totalorder 2, %s17
      // Predicated region
      $region41: #{tpu_custom_call.1} parent=5 // pred_check
        %p4353 = pneg %p4352
      $region42: #{tpu_custom_call.1} parent=5 // pred_check_branch
        %4355 = sbr.rel (%p4353) target = $region44
      $region43: #{tpu_custom_call.1} parent=5 // pred_region
        %s4356 = ssub.s32 %s17, 2
        // Predicated region
        $region45: #{tpu_custom_call.1} parent=43 // pred_check
          %p4357 = pneg %p93
        $region46: #{tpu_custom_call.1} parent=43 // pred_check_branch
          %4359 = sbr.rel (%p4357) target = $region48
        $region47: #{tpu_custom_call.1} parent=43 // pred_region
          %s4360 = sand.u32 %s78, 1
          %s4361 = scalar_lea.sflag [#allocation3], %s4360
          %s4362 = sand.u32 %s78, 1
          %s4363 = smul.addr %s4362, 128
          %s4364 = scalar_lea.vmem [#allocation2], %s4363
          %4366 = dma.done %s4361, 2048
        $region48: #{tpu_custom_call.1} parent=43 // pred_fallthru
          _
        // Predicated region
        $region49: #{tpu_custom_call.1} parent=43 // pred_check
          %p4367 = pneg %p119
        $region50: #{tpu_custom_call.1} parent=43 // pred_check_branch
          %4369 = sbr.rel (%p4367) target = $region52
        $region51: #{tpu_custom_call.1} parent=43 // pred_region
          %s4370 = sand.u32 %s23, 1
          %s4371 = scalar_lea.sflag [#allocation5], %s4370
          %s4372 = sand.u32 %s104, 1
          %s4373 = scalar_lea.vmem [#allocation4], %s4372
          %4375 = dma.done %s4371, 16
        $region52: #{tpu_custom_call.1} parent=43 // pred_fallthru
          _
        // Predicated region
        $region53: #{tpu_custom_call.1} parent=43 // pred_check
          %p4376 = pneg %p145
        $region54: #{tpu_custom_call.1} parent=43 // pred_check_branch
          %4378 = sbr.rel (%p4376) target = $region56
        $region55: #{tpu_custom_call.1} parent=43 // pred_region
          %s4379 = sand.u32 %s23, 1
          %s4380 = scalar_lea.sflag [#allocation5], %s4379
          %s4381 = sand.u32 %s130, 1
          %s4382 = scalar_lea.vmem [#allocation6], %s4381
          %4384 = dma.done %s4380, 16
        $region56: #{tpu_custom_call.1} parent=43 // pred_fallthru
          _
      $region44: #{tpu_custom_call.1} parent=5 // pred_fallthru
        _
    $region6: #{tpu_custom_call.1} parent=1 // loop_footer
      %s21 = sadd.s32 1, %s17
    $region7: #{tpu_custom_call.1} parent=1 // loop_footer_branch
      %16 = sbr.rel target = $region3
    $region8: #{tpu_custom_call.1} parent=1 // loop_exit
      _
    %4385 = vsyncpa [#allocation3], 1
    %s4386 = scalar_lea.sflag [#allocation3], 1
    %4387 = vsyncpa %s4386, 1
    %4388 = vsyncpa [#allocation5], 1
    %s4389 = scalar_lea.sflag [#allocation5], 1
    %4390 = vsyncpa %s4389, 1

</llo_original>
